<compile_context>
chip_gen: v6e
topology: v6e:2x2x1
jax: 0.10.0
libtpu: 0.0.40
codegen_flags: <defaults>
</compile_context>

<pallas_src>
import functools

import numpy as np
import jax
import jax.numpy as jnp
from jax.experimental import pallas as pl
from jax.experimental.pallas import tpu as pltpu


# ----------------------------------------------------------------------------
# Kernel
# ----------------------------------------------------------------------------
def _qgen_kernel(tt_ref, tc_ref, tb_ref,          # target: halo-top / centre / halo-bot
                 st_ref, sc_ref, sb_ref,          # support: halo-top / centre / halo-bot
                 wt_ref, ws_ref, b_ref,           # packed weights (target/support), bias
                 ml_ref, mr_ref,                  # column-boundary masks
                 out_ref,                         # (TH*W, Cp) output tile
                 acc_ref, xt_ref, xs_ref,         # scratch: f32 acc, assembled tiles
                 *, W, TH):
    THW = TH * W
    NROWS = (TH + 2) * W
    Cp = out_ref.shape[-1]

    h = pl.program_id(1)
    t = pl.program_id(2)
    n_h = pl.num_programs(1)

    dt = sc_ref.dtype
    # Zero the halo row at the global top/bottom border (the clamped index_map
    # loads a duplicate row there; zero == the conv's zero padding).
    top_keep = jnp.where(h == 0, 0, 1).astype(dt)
    bot_keep = jnp.where(h == n_h - 1, 0, 1).astype(dt)

    ml = ml_ref[...]            # (NROWS, 1): reading (h, w-1) is in-bounds
    mr = mr_ref[...]            # (NROWS, 1): reading (h, w+1) is in-bounds

    def conv_half(xbuf, top, ctr, bot, w_ref):
        # Assemble [halo_top ; tile rows ; halo_bot] with aligned VMEM stores
        # (W and TH*W are multiples of 8 -> sublane-aligned, no layout copies).
        xbuf[0:W, :] = top
        xbuf[W:W + THW, :] = ctr
        xbuf[W + THW:NROWS, :] = bot
        x = xbuf[...]                                        # (NROWS, C), native dtype
        # Horizontal taps: +/-1 sublane roll (XLU slot) + column-boundary mask
        # (mask stays in the native dtype so the MXU inputs are not promoted).
        x_l = pltpu.roll(x, shift=1, axis=0) * ml            # x[h, w-1]
        x_r = pltpu.roll(x, shift=NROWS - 1, axis=0) * mr    # x[h, w+1]
        # 9 taps -> 3 matmuls; native (e.g. bf16) MXU inputs, f32 accumulation.
        m = (jnp.dot(x_l, w_ref[0], preferred_element_type=jnp.float32)
             + jnp.dot(x, w_ref[1], preferred_element_type=jnp.float32)
             + jnp.dot(x_r, w_ref[2], preferred_element_type=jnp.float32))
        # Vertical taps: aligned sublane/lane slices of m (dy blocks are
        # Cp-wide = 128-multiple; sublane offsets 0 / W / 2W are 8-multiples).
        return (m[0:THW, 0:Cp]                               # dy = 0 (row above)
                + m[W:W + THW, Cp:2 * Cp]                    # dy = 1 (same row)
                + m[2 * W:2 * W + THW, 2 * Cp:3 * Cp])       # dy = 2 (row below)

    # Target-half contribution + bias is identical for every t: compute once
    # per (b, h-tile).  Correctness relies on t being the innermost,
    # sequentially-ordered ("arbitrary") grid axis.
    @pl.when(t == 0)
    def _():
        acc_ref[...] = (conv_half(xt_ref, tt_ref[...] * top_keep, tc_ref[...],
                                  tb_ref[...] * bot_keep, wt_ref)
                        + b_ref[...])

    y = acc_ref[...] + conv_half(xs_ref, st_ref[...] * top_keep, sc_ref[...],
                                 sb_ref[...] * bot_keep, ws_ref)
    out_ref[...] = y.astype(out_ref.dtype)


# ----------------------------------------------------------------------------
# VMEM sizing helpers
# ----------------------------------------------------------------------------
def _pick_vmem_limit_bytes():
    cap = 0
    try:
        info = pltpu.get_tpu_info()
        cap = int(getattr(info, "vmem_capacity_bytes", 0) or 0)
    except Exception:
        cap = 0
    if cap <= 0:
        cap = 64 * 1024 * 1024        # conservative: v7x per-core physical VMEM
    return int(cap * 0.85)


def _vmem_bytes_estimate(TH, W, C, Cp, in_itemsize):
    """Generous per-step working-set estimate (double-buffered streams +
    revisited operands + scratch + large live temporaries)."""
    thw, nrows = TH * W, (TH + 2) * W
    db = 2
    sup_in = db * (thw + 2 * W) * C * in_itemsize
    tgt_in = db * (thw + 2 * W) * C * in_itemsize
    out_buf = db * thw * Cp * in_itemsize
    weights = db * 2 * (3 * C * 3 * Cp) * in_itemsize
    small = db * (Cp * 4 + 2 * nrows * in_itemsize)
    scratch = thw * Cp * 4 + 2 * nrows * C * in_itemsize
    temps = 3 * nrows * C * in_itemsize + nrows * 3 * Cp * 4 + 2 * thw * Cp * 4
    return sup_in + tgt_in + out_buf + weights + small + scratch + temps


def _choose_rows_per_tile(H, W, C, Cp, in_itemsize, budget_bytes):
    best = 1
    for d in range(1, H + 1):
        if H % d:
            continue
        if _vmem_bytes_estimate(d, W, C, Cp, in_itemsize) <= budget_bytes:
            best = d
    return best


# ----------------------------------------------------------------------------
# Wrapper
# ----------------------------------------------------------------------------
def query_generator_forward(src_stacked, weight_hwio, bias, scale_hw, *,
                            rows_per_tile=None):
    """src_stacked: (T, B, H*W, C) stacked inputs.  Returns (T, B, H*W, Cout)."""
    H, W = scale_hw
    T, B, HW, C = src_stacked.shape
    assert HW == H * W
    Cout = weight_hwio.shape[-1]
    assert weight_hwio.shape == (3, 3, 2 * C, Cout)
    assert W % 8 == 0, "flat-layout halo blocks require W % 8 == 0"
    # TODO(synk): support BEV widths that are not multiples of 8 (needs width
    # padding or a different halo/block strategy).

    dt = src_stacked.dtype
    itemsize = jnp.dtype(dt).itemsize
    Cp = ((Cout + 127) // 128) * 128      # lane-dense output / dy blocks

    vmem_limit = _pick_vmem_limit_bytes()
    if rows_per_tile is None:
        budget = min(28 * 1024 * 1024, vmem_limit // 2)
        rows_per_tile = _choose_rows_per_tile(H, W, C, Cp, itemsize, budget)
    assert H % rows_per_tile == 0, "rows_per_tile must divide H"
    TH = rows_per_tile
    HT = H // TH
    THW = TH * W
    NROWS = (TH + 2) * W

    # Pre-pack weights ONCE on the host side (no per-step casts in-kernel):
    # (dy, dx, 2C, Cout) -> pad Cout to Cp -> split target/support halves ->
    # (dx, C, 3*Cp) with the 3 vertical (dy) taps side by side on the output
    # axis, cast to the input dtype so the MXU runs in its native precision.
    w = weight_hwio.astype(jnp.float32)
    if Cp != Cout:
        w = jnp.pad(w, ((0, 0), (0, 0), (0, 0), (0, Cp - Cout)))

    def pack(wh):
        return jnp.transpose(wh, (1, 2, 0, 3)).reshape(3, C, 3 * Cp).astype(dt)

    w_tgt = pack(w[:, :, :C, :])   # channel order matches cat([target, support])
    w_sup = pack(w[:, :, C:, :])
    bias_p = jnp.zeros((1, Cp), jnp.float32).at[0, :Cout].set(
        bias.astype(jnp.float32))

    # Column-boundary masks, precomputed on the host (grid-invariant VMEM
    # inputs; no per-step iota/div/mod on the VPU).  Kept in the input dtype
    # so the masked MXU operands are not promoted to f32.
    col = np.arange(NROWS) % W
    mask_l = jnp.asarray((col != 0).astype(np.float32).reshape(NROWS, 1), dt)
    mask_r = jnp.asarray((col != W - 1).astype(np.float32).reshape(NROWS, 1), dt)

    kernel = functools.partial(_qgen_kernel, W=W, TH=TH)

    row_blk = (None, None, W, C)          # one H-row (halo stream)
    ctr_blk = (None, None, THW, C)        # TH H-rows (centre stream)

    # NOTE: the target streams / weights / bias / masks have index_maps that
    # are constant in t, so Pallas revisits the resident block instead of
    # re-DMA'ing it every step; the support/out streams use the default
    # double buffering (raise to pl.Buffered(3) only if a trace shows
    # exposed DMA).
    out_padded = pl.pallas_call(
        kernel,
        out_shape=jax.ShapeDtypeStruct((T, B, HW, Cp), dt),
        grid_spec=pltpu.PrefetchScalarGridSpec(
            num_scalar_prefetch=0,
            # b, h-tile parallel (megacore); t innermost "arbitrary" so the
            # target-half scratch accumulator legally carries across t.
            grid=(B, HT, T),
            in_specs=[
                # target (= src[0]): halo-above / centre / halo-below rows.
                pl.BlockSpec(row_blk,
                             lambda b, h, t: (0, b, jnp.maximum(h * TH - 1, 0), 0)),
                pl.BlockSpec(ctr_blk, lambda b, h, t: (0, b, h, 0)),
                pl.BlockSpec(row_blk,
                             lambda b, h, t: (0, b, jnp.minimum((h + 1) * TH, H - 1), 0)),
                # support (= src[t]): halo-above / centre / halo-below rows.
                pl.BlockSpec(row_blk,
                             lambda b, h, t: (t, b, jnp.maximum(h * TH - 1, 0), 0)),
                pl.BlockSpec(ctr_blk, lambda b, h, t: (t, b, h, 0)),
                pl.BlockSpec(row_blk,
                             lambda b, h, t: (t, b, jnp.minimum((h + 1) * TH, H - 1), 0)),
                # packed conv weights, bias, column masks: grid-invariant.
                pl.BlockSpec((3, C, 3 * Cp), lambda b, h, t: (0, 0, 0)),
                pl.BlockSpec((3, C, 3 * Cp), lambda b, h, t: (0, 0, 0)),
                pl.BlockSpec((1, Cp), lambda b, h, t: (0, 0)),
                pl.BlockSpec((NROWS, 1), lambda b, h, t: (0, 0)),
                pl.BlockSpec((NROWS, 1), lambda b, h, t: (0, 0)),
            ],
            out_specs=pl.BlockSpec((None, None, THW, Cp),
                                   lambda b, h, t: (t, b, h, 0)),
            scratch_shapes=[
                pltpu.VMEM((THW, Cp), jnp.float32),   # target-half + bias accumulator
                pltpu.VMEM((NROWS, C), dt),           # assembled target tile (+halos)
                pltpu.VMEM((NROWS, C), dt),           # assembled support tile (+halos)
            ],
        ),
        compiler_params=pltpu.CompilerParams(
            dimension_semantics=("parallel", "parallel", "arbitrary"),
            vmem_limit_bytes=vmem_limit,
        ),
        # src_stacked is passed for all six spatial streams: read-only operands
        # alias the same HBM buffer, so no duplicate copy is materialized.
    )(src_stacked, src_stacked, src_stacked,
      src_stacked, src_stacked, src_stacked,
      w_tgt, w_sup, bias_p, mask_l, mask_r)

    return out_padded if Cp == Cout else out_padded[..., :Cout]


def query_generator_forward_list(src_all, weight_hwio, bias, scale_hw, **kw):
    """List-in / list-out convenience wrapper matching the torch module."""
    out = query_generator_forward(jnp.stack(src_all, axis=0),
                                  weight_hwio, bias, scale_hw, **kw)
    return list(out)


# ----------------------------------------------------------------------------
# Params / reference / test
# ----------------------------------------------------------------------------
def make_params(in_channels, key):
    """Deterministic xavier_uniform conv weight (2C -> C, 3x3), zero bias (HWIO)."""
    C = in_channels
    fan_in = 2 * C * 3 * 3
    fan_out = C * 3 * 3
    bound = float(np.sqrt(6.0 / (fan_in + fan_out)))
    w = jax.random.uniform(key, (3, 3, 2 * C, C), jnp.float32,
                           minval=-bound, maxval=bound)
    b = jnp.zeros((C,), jnp.float32)
    return w, b


def _reference_forward(src_all, weight_hwio, bias, scale_hw):
    """Pure-JAX reference (lax conv) for correctness checking."""
    H, W = scale_hw
    B, HW, C = src_all[0].shape
    tgt = src_all[0].reshape(B, H, W, C)
    outs = []
    for x in src_all:
        sup = x.reshape(B, H, W, C)
        inp = jnp.concatenate([tgt, sup], axis=-1)  # (B, H, W, 2C)
        y = jax.lax.conv_general_dilated(
            inp, weight_hwio,
            window_strides=(1, 1), padding="SAME",
            dimension_numbers=("NHWC", "HWIO", "NHWC"),
            precision=jax.lax.Precision.HIGHEST,
        ) + bias
        outs.append(y.reshape(B, HW, C))
    return outs


if __name__ == "__main__":
    key = jax.random.PRNGKey(0)
    k_w, *k_src = jax.random.split(key, 1 + 3)

    in_channels = 4
    seq_len = 3
    B = 2
    scale_hw = (16, 16)
    H, W = scale_hw

    weight, bias = make_params(in_channels, k_w)

    src_all = [
        jax.random.normal(k_src[i], (B, H * W, in_channels), jnp.float32)
        for i in range(seq_len)
    ]
    src_stacked = jnp.stack(src_all, axis=0)   # (T, B, H*W, C)

    refs = _reference_forward(src_all, weight, bias, scale_hw)

    # f32 path: auto tile choice (single tile here) and explicit H-tilings
    # (exercise the halo path across tiles).
    for rpt in (None, 8, 4):
        out = jax.block_until_ready(
            query_generator_forward(src_stacked, weight, bias, scale_hw,
                                    rows_per_tile=rpt))
        for t in range(seq_len):
            np.testing.assert_allclose(np.asarray(out[t]), np.asarray(refs[t]),
                                       rtol=1e-2, atol=1e-2)

    # bf16 path: MXU runs natively in bf16 (no in-kernel f32 casts).
    src_bf = src_stacked.astype(jnp.bfloat16)
    out_bf = jax.block_until_ready(
        query_generator_forward(src_bf, weight, bias, scale_hw, rows_per_tile=8))
    src_r = [s.astype(jnp.bfloat16).astype(jnp.float32) for s in src_all]
    w_r = weight.astype(jnp.bfloat16).astype(jnp.float32)
    refs_bf = _reference_forward(src_r, w_r, bias, scale_hw)
    for t in range(seq_len):
        np.testing.assert_allclose(np.asarray(out_bf[t]).astype(np.float32),
                                   np.asarray(refs_bf[t]),
                                   rtol=3e-2, atol=3e-2)

    outs_list = query_generator_forward_list(src_all, weight, bias, scale_hw)
    assert len(outs_list) == seq_len
    assert all(o.shape == (B, H * W, in_channels) for o in outs_list)
    print("KERNEL_OK")
</pallas_src>

<mosaic_0001>
module attributes {stable_mosaic.version = 11 : i64} {
  func.func @_qgen_kernel(%arg0: i32, %arg1: i32, %arg2: i32, %arg3: memref<1x1x16x4xf32, #tpu.memory_space<vmem>>, %arg4: memref<1x1x256x4xf32, #tpu.memory_space<vmem>>, %arg5: memref<1x1x16x4xf32, #tpu.memory_space<vmem>>, %arg6: memref<1x1x16x4xf32, #tpu.memory_space<vmem>>, %arg7: memref<1x1x256x4xf32, #tpu.memory_space<vmem>>, %arg8: memref<1x1x16x4xf32, #tpu.memory_space<vmem>>, %arg9: memref<3x4x384xf32, #tpu.memory_space<vmem>>, %arg10: memref<3x4x384xf32, #tpu.memory_space<vmem>>, %arg11: memref<1x128xf32, #tpu.memory_space<vmem>>, %arg12: memref<288x1xf32, #tpu.memory_space<vmem>>, %arg13: memref<288x1xf32, #tpu.memory_space<vmem>>, %arg14: memref<1x1x256x128xf32, #tpu.memory_space<vmem>>, %arg15: memref<256x128xf32, #tpu.memory_space<vmem>>, %arg16: memref<288x4xf32, #tpu.memory_space<vmem>>, %arg17: memref<288x4xf32, #tpu.memory_space<vmem>>) attributes {dimension_semantics = [#tpu.dimension_semantics<parallel>, #tpu.dimension_semantics<parallel>, #tpu.dimension_semantics<arbitrary>], iteration_bounds = array<i64: 2, 1, 3>, scalar_prefetch = 0 : i64, scratch_operands = 3 : i64, tpu.core_type = #tpu.core_type<tc>, window_params = [{transform_indices = @transform_0, window_bounds = array<i64: 1, 1, 16, 4>}, {transform_indices = @transform_1, window_bounds = array<i64: 1, 1, 256, 4>}, {transform_indices = @transform_2, window_bounds = array<i64: 1, 1, 16, 4>}, {transform_indices = @transform_3, window_bounds = array<i64: 1, 1, 16, 4>}, {transform_indices = @transform_4, window_bounds = array<i64: 1, 1, 256, 4>}, {transform_indices = @transform_5, window_bounds = array<i64: 1, 1, 16, 4>}, {pipeline_mode = #tpu.pipeline_mode<synchronous>, transform_indices = @transform_6, window_bounds = array<i64: 3, 4, 384>}, {pipeline_mode = #tpu.pipeline_mode<synchronous>, transform_indices = @transform_7, window_bounds = array<i64: 3, 4, 384>}, {pipeline_mode = #tpu.pipeline_mode<synchronous>, transform_indices = @transform_8, window_bounds = array<i64: 1, 128>}, {pipeline_mode = #tpu.pipeline_mode<synchronous>, transform_indices = @transform_9, window_bounds = array<i64: 288, 1>}, {pipeline_mode = #tpu.pipeline_mode<synchronous>, transform_indices = @transform_10, window_bounds = array<i64: 288, 1>}, {transform_indices = @transform_11, window_bounds = array<i64: 1, 1, 256, 128>}]} {
    %c0_i32 = arith.constant 0 : i32
    %0 = arith.cmpi eq, %arg1, %c0_i32 : i32
    %c0_i32_0 = arith.constant 0 : i32
    %c1_i32 = arith.constant 1 : i32
    %1 = arith.select %0, %c0_i32_0, %c1_i32 : i32
    %2 = arith.sitofp %1 : i32 to f32
    %c0_i32_1 = arith.constant 0 : i32
    %3 = arith.cmpi eq, %arg1, %c0_i32_1 : i32
    %c0_i32_2 = arith.constant 0 : i32
    %c1_i32_3 = arith.constant 1 : i32
    %4 = arith.select %3, %c0_i32_2, %c1_i32_3 : i32
    %5 = arith.sitofp %4 : i32 to f32
    %c0 = arith.constant 0 : index
    %c0_4 = arith.constant 0 : index
    %6 = vector.load %arg12[%c0, %c0_4] : memref<288x1xf32, #tpu.memory_space<vmem>>, vector<288x1xf32>
    %c0_5 = arith.constant 0 : index
    %c0_6 = arith.constant 0 : index
    %7 = vector.load %arg13[%c0_5, %c0_6] : memref<288x1xf32, #tpu.memory_space<vmem>>, vector<288x1xf32>
    %c0_i32_7 = arith.constant 0 : i32
    %8 = arith.cmpi eq, %arg2, %c0_i32_7 : i32
    %9 = arith.extui %8 : i1 to i32
    %c0_i32_8 = arith.constant 0 : i32
    %10 = arith.cmpi ne, %9, %c0_i32_8 : i32
    scf.if %10 {
      %c0_43 = arith.constant 0 : index
      %c0_44 = arith.constant 0 : index
      %c0_45 = arith.constant 0 : index
      %c0_46 = arith.constant 0 : index
      %52 = vector.load %arg3[%c0_43, %c0_44, %c0_45, %c0_46] : memref<1x1x16x4xf32, #tpu.memory_space<vmem>>, vector<1x1x16x4xf32>
      %53 = vector.shape_cast %52 : vector<1x1x16x4xf32> to vector<16x4xf32>
      %54 = vector.broadcast %2 : f32 to vector<16x4xf32>
      %55 = arith.mulf %53, %54 : vector<16x4xf32>
      %c0_47 = arith.constant 0 : index
      %c0_48 = arith.constant 0 : index
      %c0_49 = arith.constant 0 : index
      %c0_50 = arith.constant 0 : index
      %56 = vector.load %arg4[%c0_47, %c0_48, %c0_49, %c0_50] : memref<1x1x256x4xf32, #tpu.memory_space<vmem>>, vector<1x1x256x4xf32>
      %57 = vector.shape_cast %56 : vector<1x1x256x4xf32> to vector<256x4xf32>
      %c0_51 = arith.constant 0 : index
      %c0_52 = arith.constant 0 : index
      %c0_53 = arith.constant 0 : index
      %c0_54 = arith.constant 0 : index
      %58 = vector.load %arg5[%c0_51, %c0_52, %c0_53, %c0_54] : memref<1x1x16x4xf32, #tpu.memory_space<vmem>>, vector<1x1x16x4xf32>
      %59 = vector.shape_cast %58 : vector<1x1x16x4xf32> to vector<16x4xf32>
      %60 = vector.broadcast %5 : f32 to vector<16x4xf32>
      %61 = arith.mulf %59, %60 : vector<16x4xf32>
      %c0_55 = arith.constant 0 : index
      %c0_56 = arith.constant 0 : index
      %62 = vector.load %arg16[%c0_55, %c0_56] : memref<288x4xf32, #tpu.memory_space<vmem>>, vector<16x4xf32>
      tpu.vector_store %arg16[%c0_55, %c0_56], %55 {strides = array<i32>} : memref<288x4xf32, #tpu.memory_space<vmem>>, vector<16x4xf32>,
      %c16_57 = arith.constant 16 : index
      %c0_58 = arith.constant 0 : index
      %63 = vector.load %arg16[%c16_57, %c0_58] : memref<288x4xf32, #tpu.memory_space<vmem>>, vector<256x4xf32>
      tpu.vector_store %arg16[%c16_57, %c0_58], %57 {strides = array<i32>} : memref<288x4xf32, #tpu.memory_space<vmem>>, vector<256x4xf32>,
      %c272_59 = arith.constant 272 : index
      %c0_60 = arith.constant 0 : index
      %64 = vector.load %arg16[%c272_59, %c0_60] : memref<288x4xf32, #tpu.memory_space<vmem>>, vector<16x4xf32>
      tpu.vector_store %arg16[%c272_59, %c0_60], %61 {strides = array<i32>} : memref<288x4xf32, #tpu.memory_space<vmem>>, vector<16x4xf32>,
      %c0_61 = arith.constant 0 : index
      %c0_62 = arith.constant 0 : index
      %65 = vector.load %arg16[%c0_61, %c0_62] : memref<288x4xf32, #tpu.memory_space<vmem>>, vector<288x4xf32>
      %c1_i32_63 = arith.constant 1 : i32
      %66 = tpu.dynamic_rotate %65 by %c1_i32_63 dim 0 : vector<288x4xf32>, i32 -> vector<288x4xf32>
      %67 = vector.broadcast %6 : vector<288x1xf32> to vector<288x4xf32>
      %68 = arith.mulf %66, %67 : vector<288x4xf32>
      %c287_i32_64 = arith.constant 287 : i32
      %69 = tpu.dynamic_rotate %65 by %c287_i32_64 dim 0 : vector<288x4xf32>, i32 -> vector<288x4xf32>
      %70 = vector.broadcast %7 : vector<288x1xf32> to vector<288x4xf32>
      %71 = arith.mulf %69, %70 : vector<288x4xf32>
      %c0_65 = arith.constant 0 : index
      %c0_66 = arith.constant 0 : index
      %c0_67 = arith.constant 0 : index
      %72 = vector.load %arg9[%c0_65, %c0_66, %c0_67] : memref<3x4x384xf32, #tpu.memory_space<vmem>>, vector<1x4x384xf32>
      %73 = vector.shape_cast %72 : vector<1x4x384xf32> to vector<4x384xf32>
      %cst_68 = arith.constant dense<0.000000e+00> : vector<288x384xf32>
      %74 = tpu.matmul %68, %73, %cst_68 {dimension_numbers = #tpu.dot_dimension_numbers<[1], [0], [0], [1], [0, 0, 1, 1], [], []>} : vector<288x4xf32>, vector<4x384xf32>, vector<288x384xf32> -> vector<288x384xf32>
      %c1_69 = arith.constant 1 : index
      %c0_70 = arith.constant 0 : index
      %c0_71 = arith.constant 0 : index
      %75 = vector.load %arg9[%c1_69, %c0_70, %c0_71] : memref<3x4x384xf32, #tpu.memory_space<vmem>>, vector<1x4x384xf32>
      %76 = vector.shape_cast %75 : vector<1x4x384xf32> to vector<4x384xf32>
      %cst_72 = arith.constant dense<0.000000e+00> : vector<288x384xf32>
      %77 = tpu.matmul %65, %76, %cst_72 {dimension_numbers = #tpu.dot_dimension_numbers<[1], [0], [0], [1], [0, 0, 1, 1], [], []>} : vector<288x4xf32>, vector<4x384xf32>, vector<288x384xf32> -> vector<288x384xf32>
      %78 = arith.addf %74, %77 : vector<288x384xf32>
      %c2_73 = arith.constant 2 : index
      %c0_74 = arith.constant 0 : index
      %c0_75 = arith.constant 0 : index
      %79 = vector.load %arg9[%c2_73, %c0_74, %c0_75] : memref<3x4x384xf32, #tpu.memory_space<vmem>>, vector<1x4x384xf32>
      %80 = vector.shape_cast %79 : vector<1x4x384xf32> to vector<4x384xf32>
      %cst_76 = arith.constant dense<0.000000e+00> : vector<288x384xf32>
      %81 = tpu.matmul %71, %80, %cst_76 {dimension_numbers = #tpu.dot_dimension_numbers<[1], [0], [0], [1], [0, 0, 1, 1], [], []>} : vector<288x4xf32>, vector<4x384xf32>, vector<288x384xf32> -> vector<288x384xf32>
      %82 = arith.addf %78, %81 : vector<288x384xf32>
      %83 = vector.extract_strided_slice %82 {offsets = [0, 0], sizes = [256, 128], strides = [1, 1]} : vector<288x384xf32> to vector<256x128xf32>
      %84 = vector.extract_strided_slice %82 {offsets = [16, 128], sizes = [256, 128], strides = [1, 1]} : vector<288x384xf32> to vector<256x128xf32>
      %85 = arith.addf %83, %84 : vector<256x128xf32>
      %86 = vector.extract_strided_slice %82 {offsets = [32, 256], sizes = [256, 128], strides = [1, 1]} : vector<288x384xf32> to vector<256x128xf32>
      %87 = arith.addf %85, %86 : vector<256x128xf32>
      %c0_77 = arith.constant 0 : index
      %c0_78 = arith.constant 0 : index
      %88 = vector.load %arg11[%c0_77, %c0_78] : memref<1x128xf32, #tpu.memory_space<vmem>>, vector<1x128xf32>
      %89 = vector.broadcast %88 : vector<1x128xf32> to vector<256x128xf32>
      %90 = arith.addf %87, %89 : vector<256x128xf32>
      %c0_79 = arith.constant 0 : index
      %c0_80 = arith.constant 0 : index
      %91 = vector.load %arg15[%c0_79, %c0_80] : memref<256x128xf32, #tpu.memory_space<vmem>>, vector<256x128xf32>
      tpu.vector_store %arg15[%c0_79, %c0_80], %90 {strides = array<i32>} : memref<256x128xf32, #tpu.memory_space<vmem>>, vector<256x128xf32>,
    } else {
    }
    %c0_9 = arith.constant 0 : index
    %c0_10 = arith.constant 0 : index
    %11 = vector.load %arg15[%c0_9, %c0_10] : memref<256x128xf32, #tpu.memory_space<vmem>>, vector<256x128xf32>
    %c0_11 = arith.constant 0 : index
    %c0_12 = arith.constant 0 : index
    %c0_13 = arith.constant 0 : index
    %c0_14 = arith.constant 0 : index
    %12 = vector.load %arg6[%c0_11, %c0_12, %c0_13, %c0_14] : memref<1x1x16x4xf32, #tpu.memory_space<vmem>>, vector<1x1x16x4xf32>
    %13 = vector.shape_cast %12 : vector<1x1x16x4xf32> to vector<16x4xf32>
    %14 = vector.broadcast %2 : f32 to vector<16x4xf32>
    %15 = arith.mulf %13, %14 : vector<16x4xf32>
    %c0_15 = arith.constant 0 : index
    %c0_16 = arith.constant 0 : index
    %c0_17 = arith.constant 0 : index
    %c0_18 = arith.constant 0 : index
    %16 = vector.load %arg7[%c0_15, %c0_16, %c0_17, %c0_18] : memref<1x1x256x4xf32, #tpu.memory_space<vmem>>, vector<1x1x256x4xf32>
    %17 = vector.shape_cast %16 : vector<1x1x256x4xf32> to vector<256x4xf32>
    %c0_19 = arith.constant 0 : index
    %c0_20 = arith.constant 0 : index
    %c0_21 = arith.constant 0 : index
    %c0_22 = arith.constant 0 : index
    %18 = vector.load %arg8[%c0_19, %c0_20, %c0_21, %c0_22] : memref<1x1x16x4xf32, #tpu.memory_space<vmem>>, vector<1x1x16x4xf32>
    %19 = vector.shape_cast %18 : vector<1x1x16x4xf32> to vector<16x4xf32>
    %20 = vector.broadcast %5 : f32 to vector<16x4xf32>
    %21 = arith.mulf %19, %20 : vector<16x4xf32>
    %c0_23 = arith.constant 0 : index
    %c0_24 = arith.constant 0 : index
    %22 = vector.load %arg17[%c0_23, %c0_24] : memref<288x4xf32, #tpu.memory_space<vmem>>, vector<16x4xf32>
    tpu.vector_store %arg17[%c0_23, %c0_24], %15 {strides = array<i32>} : memref<288x4xf32, #tpu.memory_space<vmem>>, vector<16x4xf32>,
    %c16 = arith.constant 16 : index
    %c0_25 = arith.constant 0 : index
    %23 = vector.load %arg17[%c16, %c0_25] : memref<288x4xf32, #tpu.memory_space<vmem>>, vector<256x4xf32>
    tpu.vector_store %arg17[%c16, %c0_25], %17 {strides = array<i32>} : memref<288x4xf32, #tpu.memory_space<vmem>>, vector<256x4xf32>,
    %c272 = arith.constant 272 : index
    %c0_26 = arith.constant 0 : index
    %24 = vector.load %arg17[%c272, %c0_26] : memref<288x4xf32, #tpu.memory_space<vmem>>, vector<16x4xf32>
    tpu.vector_store %arg17[%c272, %c0_26], %21 {strides = array<i32>} : memref<288x4xf32, #tpu.memory_space<vmem>>, vector<16x4xf32>,
    %c0_27 = arith.constant 0 : index
    %c0_28 = arith.constant 0 : index
    %25 = vector.load %arg17[%c0_27, %c0_28] : memref<288x4xf32, #tpu.memory_space<vmem>>, vector<288x4xf32>
    %c1_i32_29 = arith.constant 1 : i32
    %26 = tpu.dynamic_rotate %25 by %c1_i32_29 dim 0 : vector<288x4xf32>, i32 -> vector<288x4xf32>
    %27 = vector.broadcast %6 : vector<288x1xf32> to vector<288x4xf32>
    %28 = arith.mulf %26, %27 : vector<288x4xf32>
    %c287_i32 = arith.constant 287 : i32
    %29 = tpu.dynamic_rotate %25 by %c287_i32 dim 0 : vector<288x4xf32>, i32 -> vector<288x4xf32>
    %30 = vector.broadcast %7 : vector<288x1xf32> to vector<288x4xf32>
    %31 = arith.mulf %29, %30 : vector<288x4xf32>
    %c0_30 = arith.constant 0 : index
    %c0_31 = arith.constant 0 : index
    %c0_32 = arith.constant 0 : index
    %32 = vector.load %arg10[%c0_30, %c0_31, %c0_32] : memref<3x4x384xf32, #tpu.memory_space<vmem>>, vector<1x4x384xf32>
    %33 = vector.shape_cast %32 : vector<1x4x384xf32> to vector<4x384xf32>
    %cst = arith.constant dense<0.000000e+00> : vector<288x384xf32>
    %34 = tpu.matmul %28, %33, %cst {dimension_numbers = #tpu.dot_dimension_numbers<[1], [0], [0], [1], [0, 0, 1, 1], [], []>} : vector<288x4xf32>, vector<4x384xf32>, vector<288x384xf32> -> vector<288x384xf32>
    %c1 = arith.constant 1 : index
    %c0_33 = arith.constant 0 : index
    %c0_34 = arith.constant 0 : index
    %35 = vector.load %arg10[%c1, %c0_33, %c0_34] : memref<3x4x384xf32, #tpu.memory_space<vmem>>, vector<1x4x384xf32>
    %36 = vector.shape_cast %35 : vector<1x4x384xf32> to vector<4x384xf32>
    %cst_35 = arith.constant dense<0.000000e+00> : vector<288x384xf32>
    %37 = tpu.matmul %25, %36, %cst_35 {dimension_numbers = #tpu.dot_dimension_numbers<[1], [0], [0], [1], [0, 0, 1, 1], [], []>} : vector<288x4xf32>, vector<4x384xf32>, vector<288x384xf32> -> vector<288x384xf32>
    %38 = arith.addf %34, %37 : vector<288x384xf32>
    %c2 = arith.constant 2 : index
    %c0_36 = arith.constant 0 : index
    %c0_37 = arith.constant 0 : index
    %39 = vector.load %arg10[%c2, %c0_36, %c0_37] : memref<3x4x384xf32, #tpu.memory_space<vmem>>, vector<1x4x384xf32>
    %40 = vector.shape_cast %39 : vector<1x4x384xf32> to vector<4x384xf32>
    %cst_38 = arith.constant dense<0.000000e+00> : vector<288x384xf32>
    %41 = tpu.matmul %31, %40, %cst_38 {dimension_numbers = #tpu.dot_dimension_numbers<[1], [0], [0], [1], [0, 0, 1, 1], [], []>} : vector<288x4xf32>, vector<4x384xf32>, vector<288x384xf32> -> vector<288x384xf32>
    %42 = arith.addf %38, %41 : vector<288x384xf32>
    %43 = vector.extract_strided_slice %42 {offsets = [0, 0], sizes = [256, 128], strides = [1, 1]} : vector<288x384xf32> to vector<256x128xf32>
    %44 = vector.extract_strided_slice %42 {offsets = [16, 128], sizes = [256, 128], strides = [1, 1]} : vector<288x384xf32> to vector<256x128xf32>
    %45 = arith.addf %43, %44 : vector<256x128xf32>
    %46 = vector.extract_strided_slice %42 {offsets = [32, 256], sizes = [256, 128], strides = [1, 1]} : vector<288x384xf32> to vector<256x128xf32>
    %47 = arith.addf %45, %46 : vector<256x128xf32>
    %48 = arith.addf %11, %47 : vector<256x128xf32>
    %c0_39 = arith.constant 0 : index
    %c0_40 = arith.constant 0 : index
    %c0_41 = arith.constant 0 : index
    %c0_42 = arith.constant 0 : index
    %49 = vector.load %arg14[%c0_39, %c0_40, %c0_41, %c0_42] : memref<1x1x256x128xf32, #tpu.memory_space<vmem>>, vector<1x1x256x128xf32>
    %50 = vector.shape_cast %49 : vector<1x1x256x128xf32> to vector<256x128xf32>
    %51 = vector.shape_cast %48 : vector<256x128xf32> to vector<1x1x256x128xf32>
    tpu.vector_store %arg14[%c0_39, %c0_40, %c0_41, %c0_42], %51 {strides = array<i32>} : memref<1x1x256x128xf32, #tpu.memory_space<vmem>>, vector<1x1x256x128xf32>,
    return
  }
  func.func @transform_0(%arg0: i32, %arg1: i32, %arg2: i32) -> (i32, i32, i32, i32) {
    %c16_i32 = arith.constant 16 : i32
    %0 = arith.muli %arg1, %c16_i32 : i32
    %c1_i32 = arith.constant 1 : i32
    %1 = arith.subi %0, %c1_i32 : i32
    %c0_i32 = arith.constant 0 : i32
    %2 = arith.maxsi %1, %c0_i32 : i32
    %c0_i32_0 = arith.constant 0 : i32
    %c0_i32_1 = arith.constant 0 : i32
    %c0_i32_2 = arith.constant 0 : i32
    return %c0_i32_0, %arg0, %2, %c0_i32_1 : i32, i32, i32, i32
  }
  func.func @transform_1(%arg0: i32, %arg1: i32, %arg2: i32) -> (i32, i32, i32, i32) {
    %c0_i32 = arith.constant 0 : i32
    %c0_i32_0 = arith.constant 0 : i32
    %c0_i32_1 = arith.constant 0 : i32
    return %c0_i32, %arg0, %arg1, %c0_i32_0 : i32, i32, i32, i32
  }
  func.func @transform_2(%arg0: i32, %arg1: i32, %arg2: i32) -> (i32, i32, i32, i32) {
    %c1_i32 = arith.constant 1 : i32
    %0 = arith.addi %arg1, %c1_i32 : i32
    %c16_i32 = arith.constant 16 : i32
    %1 = arith.muli %0, %c16_i32 : i32
    %c15_i32 = arith.constant 15 : i32
    %2 = arith.minsi %1, %c15_i32 : i32
    %c0_i32 = arith.constant 0 : i32
    %c0_i32_0 = arith.constant 0 : i32
    %c0_i32_1 = arith.constant 0 : i32
    return %c0_i32, %arg0, %2, %c0_i32_0 : i32, i32, i32, i32
  }
  func.func @transform_3(%arg0: i32, %arg1: i32, %arg2: i32) -> (i32, i32, i32, i32) {
    %c16_i32 = arith.constant 16 : i32
    %0 = arith.muli %arg1, %c16_i32 : i32
    %c1_i32 = arith.constant 1 : i32
    %1 = arith.subi %0, %c1_i32 : i32
    %c0_i32 = arith.constant 0 : i32
    %2 = arith.maxsi %1, %c0_i32 : i32
    %c0_i32_0 = arith.constant 0 : i32
    %c0_i32_1 = arith.constant 0 : i32
    return %arg2, %arg0, %2, %c0_i32_0 : i32, i32, i32, i32
  }
  func.func @transform_4(%arg0: i32, %arg1: i32, %arg2: i32) -> (i32, i32, i32, i32) {
    %c0_i32 = arith.constant 0 : i32
    %c0_i32_0 = arith.constant 0 : i32
    return %arg2, %arg0, %arg1, %c0_i32 : i32, i32, i32, i32
  }
  func.func @transform_5(%arg0: i32, %arg1: i32, %arg2: i32) -> (i32, i32, i32, i32) {
    %c1_i32 = arith.constant 1 : i32
    %0 = arith.addi %arg1, %c1_i32 : i32
    %c16_i32 = arith.constant 16 : i32
    %1 = arith.muli %0, %c16_i32 : i32
    %c15_i32 = arith.constant 15 : i32
    %2 = arith.minsi %1, %c15_i32 : i32
    %c0_i32 = arith.constant 0 : i32
    %c0_i32_0 = arith.constant 0 : i32
    return %arg2, %arg0, %2, %c0_i32 : i32, i32, i32, i32
  }
  func.func @transform_6(%arg0: i32, %arg1: i32, %arg2: i32) -> (i32, i32, i32) {
    %c0_i32 = arith.constant 0 : i32
    %c0_i32_0 = arith.constant 0 : i32
    %c0_i32_1 = arith.constant 0 : i32
    %c0_i32_2 = arith.constant 0 : i32
    return %c0_i32, %c0_i32_0, %c0_i32_1 : i32, i32, i32
  }
  func.func @transform_7(%arg0: i32, %arg1: i32, %arg2: i32) -> (i32, i32, i32) {
    %c0_i32 = arith.constant 0 : i32
    %c0_i32_0 = arith.constant 0 : i32
    %c0_i32_1 = arith.constant 0 : i32
    %c0_i32_2 = arith.constant 0 : i32
    return %c0_i32, %c0_i32_0, %c0_i32_1 : i32, i32, i32
  }
  func.func @transform_8(%arg0: i32, %arg1: i32, %arg2: i32) -> (i32, i32) {
    %c0_i32 = arith.constant 0 : i32
    %c0_i32_0 = arith.constant 0 : i32
    %c0_i32_1 = arith.constant 0 : i32
    return %c0_i32, %c0_i32_0 : i32, i32
  }
  func.func @transform_9(%arg0: i32, %arg1: i32, %arg2: i32) -> (i32, i32) {
    %c0_i32 = arith.constant 0 : i32
    %c0_i32_0 = arith.constant 0 : i32
    %c0_i32_1 = arith.constant 0 : i32
    return %c0_i32, %c0_i32_0 : i32, i32
  }
  func.func @transform_10(%arg0: i32, %arg1: i32, %arg2: i32) -> (i32, i32) {
    %c0_i32 = arith.constant 0 : i32
    %c0_i32_0 = arith.constant 0 : i32
    %c0_i32_1 = arith.constant 0 : i32
    return %c0_i32, %c0_i32_0 : i32, i32
  }
  func.func @transform_11(%arg0: i32, %arg1: i32, %arg2: i32) -> (i32, i32, i32, i32) {
    %c0_i32 = arith.constant 0 : i32
    %c0_i32_0 = arith.constant 0 : i32
    return %arg2, %arg0, %arg1, %c0_i32 : i32, i32, i32, i32
  }
}

</mosaic_0001>

<llo_original>
// kernel: tpu_custom_call.1
$region0: #{tpu_custom_call.1}
  #allocation0 [shape = 'u32[]', space=smem, size = 0x4, offset = 0x4, fixed_abs, tag = 'smem constant byte address 0x4 - core index']
  #allocation1 [shape = 'u32[144,128]{1,0:T(1,128)}', space=vmem, size = 0x12000, scoped, tag = 'internal scratch']
  #allocation2 [shape = 'f32[256,128]{1,0:T(8,128)}', space=vmem, size = 0x20000, scoped, tag = 'scratch operand']
  #allocation3 [shape = 'f32[288,4]{1,0:T(8,128)}', space=vmem, size = 0x24000, scoped, tag = 'scratch operand']
  #allocation4 [shape = 'f32[288,4]{1,0:T(8,128)}', space=vmem, size = 0x24000, scoped, tag = 'scratch operand']
  %s0 = inlined_call_operand.vmem [shape: f32[3,2,256,4], index: 0, kind: input, shape index: {}]
  %s1 = inlined_call_operand.vmem [shape: f32[3,2,256,4], index: 1, kind: input, shape index: {}]
  %s2 = inlined_call_operand.vmem [shape: f32[3,2,256,4], index: 2, kind: input, shape index: {}]
  %s3 = inlined_call_operand.vmem [shape: f32[3,2,256,4], index: 3, kind: input, shape index: {}]
  %s4 = inlined_call_operand.vmem [shape: f32[3,2,256,4], index: 4, kind: input, shape index: {}]
  %s5 = inlined_call_operand.vmem [shape: f32[3,2,256,4], index: 5, kind: input, shape index: {}]
  %s6 = inlined_call_operand.vmem [shape: f32[3,4,384], index: 6, kind: input, shape index: {}]
  %s7 = inlined_call_operand.vmem [shape: f32[3,4,384], index: 7, kind: input, shape index: {}]
  %s8 = inlined_call_operand.vmem [shape: f32[1,128], index: 8, kind: input, shape index: {}]
  %s9 = inlined_call_operand.vmem [shape: f32[288,1], index: 9, kind: input, shape index: {}]
  %s10 = inlined_call_operand.vmem [shape: f32[288,1], index: 10, kind: input, shape index: {}]
  %s11 = inlined_call_operand.hbm [shape: f32[3,2,256,128], index: 11, kind: output, shape index: {}]
  %s12 = sld [smem:[#allocation0]]
  $region81: #{tpu_custom_call.1} parent=0
    _
  %s14 = ssub.s32 1, %s12
  %s15 = scalar_select 0, %s14, %s12
  $region1: #{tpu_custom_call.1} parent=0
    #allocation5 [shape = 'u8[262144]{0}', space=vmem, size = 0x40000, scoped, tag = 'output window, operand 0']
    #allocation6 [shape = 's32[2]{0}', space=sflag, size = 0x8, scoped, tag = 'scoped memory for tpu_custom_call.1']
    %16 = vsyncpa [#allocation6], 0
    %s17 = scalar_lea.sflag [#allocation6], 1
    %18 = vsyncpa %s17, 0
    loop: start=0, step=1, limit=8
    $region2: #{tpu_custom_call.1} parent=1 // loop_pre_header
      _
    $region3: #{tpu_custom_call.1} parent=1 // loop_header
      %s20 = sphi 0, %s24
      %p21 = scmp.ge.s32.totalorder %s20, 8
      %s27 = sphi 0, %s46
      %s28 = sphi 0, %s42
      %s29 = sphi 0, %s38
      %s30 = sphi 0, %s27
      %s31 = sphi 0, %s28
      %s32 = sphi 0, %s29
      %s33 = sphi 0, %s30
      %s34 = sphi 0, %s31
      %s35 = sphi 0, %s32
      %s59 = sphi 0, %s61
      %s62 = sphi 0, %s59
      %s63 = sphi 0, %s62
      %s79 = sphi 0, %s63
      %s87 = sphi 0, %s89
      %s90 = sphi 0, %s87
      %s91 = sphi 0, %s90
      %s107 = sphi 0, %s91
      %s123 = sphi 0, %s125
      %s126 = sphi 0, %s123
      %s127 = sphi 0, %s126
      %s143 = sphi 0, %s127
      %s161 = sphi 0, %s163
      %s164 = sphi 0, %s161
      %s165 = sphi 0, %s164
      %s181 = sphi 0, %s165
      %s191 = sphi 0, %s193
      %s194 = sphi 0, %s191
      %s195 = sphi 0, %s194
      %s211 = sphi 0, %s195
      %s229 = sphi 0, %s231
      %s232 = sphi 0, %s229
      %s233 = sphi 0, %s232
      %s249 = sphi 0, %s233
      %s253 = sphi 0, %s253
      %s255 = sphi 0, %s253
      %s256 = sphi 0, %s255
      %s270 = sphi 0, %s256
      %s274 = sphi 0, %s274
      %s276 = sphi 0, %s274
      %s277 = sphi 0, %s276
      %s291 = sphi 0, %s277
      %s295 = sphi 0, %s295
      %s297 = sphi 0, %s295
      %s298 = sphi 0, %s297
      %s312 = sphi 0, %s298
      %s316 = sphi 0, %s316
      %s318 = sphi 0, %s316
      %s319 = sphi 0, %s318
      %s333 = sphi 0, %s319
      %s337 = sphi 0, %s337
      %s339 = sphi 0, %s337
      %s340 = sphi 0, %s339
      %s354 = sphi 0, %s340
      %s364 = sphi 0, %s366
      %s367 = sphi 0, %s364
      %s368 = sphi 0, %s367
      %s384 = sphi 0, %s368
    $region4: #{tpu_custom_call.1} parent=1 // loop_header_branch
      %23 = sbr.rel (%p21) target = $region8
    $region5: #{tpu_custom_call.1} parent=1 // loop_body
      %s25 = ssub.s32 %s20, 1
      %s26 = ssub.s32 %s20, 2
      %s36 = sadd.s32 1, %s29
      %p37 = scmp.ge.s32.totalorder %s36, 3
      %s38 = scalar_select %p37, 0, %s36
      %s39 = sadd.s32 1, %s28
      %s40 = scalar_select %p37, %s39, %s28
      %p41 = scmp.ge.s32.totalorder %s40, 1
      %s42 = scalar_select %p41, 0, %s40
      %s43 = sadd.s32 1, %s27
      %s44 = scalar_select %p41, %s43, %s27
      %p45 = scmp.ge.s32.totalorder %s44, 2
      %s46 = scalar_select %p45, 0, %s44
      %s47 = smul.u32 %s28, 16
      %s48 = ssub.s32 %s47, 1
      %p49 = scmp.gt.s32.totalorder %s48, 0
      %s50 = scalar_select %p49, %s48, 0
      %s51 = smul.u32 %s42, 16
      %s52 = ssub.s32 %s51, 1
      %p53 = scmp.gt.s32.totalorder %s52, 0
      %s54 = scalar_select %p53, %s52, 0
      %s55 = ssub.s32 %s27, %s46
      %s56 = ssub.s32 %s50, %s54
      %s57 = sor.u32 %s55, %s56
      %p58 = scmp.eq.s32.totalorder %s57, 0
      %s60 = sadd.s32 %s59, 1
      %s61 = scalar_select %p58, %s59, %s60
      %p64 = pneg %p58
      %p65 = scmp.eq.s32.totalorder %s20, 5
      %p66 = por %p64, %p65
      %p67 = scmp.ne.s32.totalorder %s59, %s62
      %p68 = scmp.eq.s32.totalorder %s20, 0
      %p69 = por %p67, %p68
      %p70 = scmp.ne.s32.totalorder %s59, %s62
      %p71 = scmp.eq.s32.totalorder %s25, 5
      %p72 = por %p70, %p71
      %p73 = scmp.ne.s32.totalorder %s62, %s63
      %p74 = scmp.eq.s32.totalorder %s25, 0
      %p75 = por %p73, %p74
      %p76 = scmp.ne.s32.totalorder %s62, %s63
      %p77 = scmp.eq.s32.totalorder %s26, 5
      %p78 = por %p76, %p77
      %p80 = scmp.ne.s32.totalorder %s63, %s79
      %p81 = scmp.eq.s32.totalorder %s26, 0
      %p82 = por %p80, %p81
      %s83 = ssub.s32 %s27, %s46
      %s84 = ssub.s32 %s28, %s42
      %s85 = sor.u32 %s83, %s84
      %p86 = scmp.eq.s32.totalorder %s85, 0
      %s88 = sadd.s32 %s87, 1
      %s89 = scalar_select %p86, %s87, %s88
      %p92 = pneg %p86
      %p93 = scmp.eq.s32.totalorder %s20, 5
      %p94 = por %p92, %p93
      %p95 = scmp.ne.s32.totalorder %s87, %s90
      %p96 = scmp.eq.s32.totalorder %s20, 0
      %p97 = por %p95, %p96
      %p98 = scmp.ne.s32.totalorder %s87, %s90
      %p99 = scmp.eq.s32.totalorder %s25, 5
      %p100 = por %p98, %p99
      %p101 = scmp.ne.s32.totalorder %s90, %s91
      %p102 = scmp.eq.s32.totalorder %s25, 0
      %p103 = por %p101, %p102
      %p104 = scmp.ne.s32.totalorder %s90, %s91
      %p105 = scmp.eq.s32.totalorder %s26, 5
      %p106 = por %p104, %p105
      %p108 = scmp.ne.s32.totalorder %s91, %s107
      %p109 = scmp.eq.s32.totalorder %s26, 0
      %p110 = por %p108, %p109
      %s111 = sadd.s32 %s28, 1
      %s112 = smul.u32 %s111, 16
      %p113 = scmp.lt.s32.totalorder %s112, 15
      %s114 = scalar_select %p113, %s112, 15
      %s115 = sadd.s32 %s42, 1
      %s116 = smul.u32 %s115, 16
      %p117 = scmp.lt.s32.totalorder %s116, 15
      %s118 = scalar_select %p117, %s116, 15
      %s119 = ssub.s32 %s27, %s46
      %s120 = ssub.s32 %s114, %s118
      %s121 = sor.u32 %s119, %s120
      %p122 = scmp.eq.s32.totalorder %s121, 0
      %s124 = sadd.s32 %s123, 1
      %s125 = scalar_select %p122, %s123, %s124
      %p128 = pneg %p122
      %p129 = scmp.eq.s32.totalorder %s20, 5
      %p130 = por %p128, %p129
      %p131 = scmp.ne.s32.totalorder %s123, %s126
      %p132 = scmp.eq.s32.totalorder %s20, 0
      %p133 = por %p131, %p132
      %p134 = scmp.ne.s32.totalorder %s123, %s126
      %p135 = scmp.eq.s32.totalorder %s25, 5
      %p136 = por %p134, %p135
      %p137 = scmp.ne.s32.totalorder %s126, %s127
      %p138 = scmp.eq.s32.totalorder %s25, 0
      %p139 = por %p137, %p138
      %p140 = scmp.ne.s32.totalorder %s126, %s127
      %p141 = scmp.eq.s32.totalorder %s26, 5
      %p142 = por %p140, %p141
      %p144 = scmp.ne.s32.totalorder %s127, %s143
      %p145 = scmp.eq.s32.totalorder %s26, 0
      %p146 = por %p144, %p145
      %s147 = smul.u32 %s28, 16
      %s148 = ssub.s32 %s147, 1
      %p149 = scmp.gt.s32.totalorder %s148, 0
      %s150 = scalar_select %p149, %s148, 0
      %s151 = smul.u32 %s42, 16
      %s152 = ssub.s32 %s151, 1
      %p153 = scmp.gt.s32.totalorder %s152, 0
      %s154 = scalar_select %p153, %s152, 0
      %s155 = ssub.s32 %s29, %s38
      %s156 = ssub.s32 %s27, %s46
      %s157 = sor.u32 %s155, %s156
      %s158 = ssub.s32 %s150, %s154
      %s159 = sor.u32 %s157, %s158
      %p160 = scmp.eq.s32.totalorder %s159, 0
      %s162 = sadd.s32 %s161, 1
      %s163 = scalar_select %p160, %s161, %s162
      %p166 = pneg %p160
      %p167 = scmp.eq.s32.totalorder %s20, 5
      %p168 = por %p166, %p167
      %p169 = scmp.ne.s32.totalorder %s161, %s164
      %p170 = scmp.eq.s32.totalorder %s20, 0
      %p171 = por %p169, %p170
      %p172 = scmp.ne.s32.totalorder %s161, %s164
      %p173 = scmp.eq.s32.totalorder %s25, 5
      %p174 = por %p172, %p173
      %p175 = scmp.ne.s32.totalorder %s164, %s165
      %p176 = scmp.eq.s32.totalorder %s25, 0
      %p177 = por %p175, %p176
      %p178 = scmp.ne.s32.totalorder %s164, %s165
      %p179 = scmp.eq.s32.totalorder %s26, 5
      %p180 = por %p178, %p179
      %p182 = scmp.ne.s32.totalorder %s165, %s181
      %p183 = scmp.eq.s32.totalorder %s26, 0
      %p184 = por %p182, %p183
      %s185 = ssub.s32 %s29, %s38
      %s186 = ssub.s32 %s27, %s46
      %s187 = sor.u32 %s185, %s186
      %s188 = ssub.s32 %s28, %s42
      %s189 = sor.u32 %s187, %s188
      %p190 = scmp.eq.s32.totalorder %s189, 0
      %s192 = sadd.s32 %s191, 1
      %s193 = scalar_select %p190, %s191, %s192
      %p196 = pneg %p190
      %p197 = scmp.eq.s32.totalorder %s20, 5
      %p198 = por %p196, %p197
      %p199 = scmp.ne.s32.totalorder %s191, %s194
      %p200 = scmp.eq.s32.totalorder %s20, 0
      %p201 = por %p199, %p200
      %p202 = scmp.ne.s32.totalorder %s191, %s194
      %p203 = scmp.eq.s32.totalorder %s25, 5
      %p204 = por %p202, %p203
      %p205 = scmp.ne.s32.totalorder %s194, %s195
      %p206 = scmp.eq.s32.totalorder %s25, 0
      %p207 = por %p205, %p206
      %p208 = scmp.ne.s32.totalorder %s194, %s195
      %p209 = scmp.eq.s32.totalorder %s26, 5
      %p210 = por %p208, %p209
      %p212 = scmp.ne.s32.totalorder %s195, %s211
      %p213 = scmp.eq.s32.totalorder %s26, 0
      %p214 = por %p212, %p213
      %s215 = sadd.s32 %s28, 1
      %s216 = smul.u32 %s215, 16
      %p217 = scmp.lt.s32.totalorder %s216, 15
      %s218 = scalar_select %p217, %s216, 15
      %s219 = sadd.s32 %s42, 1
      %s220 = smul.u32 %s219, 16
      %p221 = scmp.lt.s32.totalorder %s220, 15
      %s222 = scalar_select %p221, %s220, 15
      %s223 = ssub.s32 %s29, %s38
      %s224 = ssub.s32 %s27, %s46
      %s225 = sor.u32 %s223, %s224
      %s226 = ssub.s32 %s218, %s222
      %s227 = sor.u32 %s225, %s226
      %p228 = scmp.eq.s32.totalorder %s227, 0
      %s230 = sadd.s32 %s229, 1
      %s231 = scalar_select %p228, %s229, %s230
      %p234 = pneg %p228
      %p235 = scmp.eq.s32.totalorder %s20, 5
      %p236 = por %p234, %p235
      %p237 = scmp.ne.s32.totalorder %s229, %s232
      %p238 = scmp.eq.s32.totalorder %s20, 0
      %p239 = por %p237, %p238
      %p240 = scmp.ne.s32.totalorder %s229, %s232
      %p241 = scmp.eq.s32.totalorder %s25, 5
      %p242 = por %p240, %p241
      %p243 = scmp.ne.s32.totalorder %s232, %s233
      %p244 = scmp.eq.s32.totalorder %s25, 0
      %p245 = por %p243, %p244
      %p246 = scmp.ne.s32.totalorder %s232, %s233
      %p247 = scmp.eq.s32.totalorder %s26, 5
      %p248 = por %p246, %p247
      %p250 = scmp.ne.s32.totalorder %s233, %s249
      %p251 = scmp.eq.s32.totalorder %s26, 0
      %p252 = por %p250, %p251
      %s254 = sadd.s32 %s253, 1
      %p257 = scmp.eq.s32.totalorder %s20, 5
      %p258 = scmp.ne.s32.totalorder %s253, %s255
      %p259 = scmp.eq.s32.totalorder %s20, 0
      %p260 = por %p258, %p259
      %p261 = scmp.ne.s32.totalorder %s253, %s255
      %p262 = scmp.eq.s32.totalorder %s25, 5
      %p263 = por %p261, %p262
      %p264 = scmp.ne.s32.totalorder %s255, %s256
      %p265 = scmp.eq.s32.totalorder %s25, 0
      %p266 = por %p264, %p265
      %p267 = scmp.ne.s32.totalorder %s255, %s256
      %p268 = scmp.eq.s32.totalorder %s26, 5
      %p269 = por %p267, %p268
      %p271 = scmp.ne.s32.totalorder %s256, %s270
      %p272 = scmp.eq.s32.totalorder %s26, 0
      %p273 = por %p271, %p272
      %s275 = sadd.s32 %s274, 1
      %p278 = scmp.eq.s32.totalorder %s20, 5
      %p279 = scmp.ne.s32.totalorder %s274, %s276
      %p280 = scmp.eq.s32.totalorder %s20, 0
      %p281 = por %p279, %p280
      %p282 = scmp.ne.s32.totalorder %s274, %s276
      %p283 = scmp.eq.s32.totalorder %s25, 5
      %p284 = por %p282, %p283
      %p285 = scmp.ne.s32.totalorder %s276, %s277
      %p286 = scmp.eq.s32.totalorder %s25, 0
      %p287 = por %p285, %p286
      %p288 = scmp.ne.s32.totalorder %s276, %s277
      %p289 = scmp.eq.s32.totalorder %s26, 5
      %p290 = por %p288, %p289
      %p292 = scmp.ne.s32.totalorder %s277, %s291
      %p293 = scmp.eq.s32.totalorder %s26, 0
      %p294 = por %p292, %p293
      %s296 = sadd.s32 %s295, 1
      %p299 = scmp.eq.s32.totalorder %s20, 5
      %p300 = scmp.ne.s32.totalorder %s295, %s297
      %p301 = scmp.eq.s32.totalorder %s20, 0
      %p302 = por %p300, %p301
      %p303 = scmp.ne.s32.totalorder %s295, %s297
      %p304 = scmp.eq.s32.totalorder %s25, 5
      %p305 = por %p303, %p304
      %p306 = scmp.ne.s32.totalorder %s297, %s298
      %p307 = scmp.eq.s32.totalorder %s25, 0
      %p308 = por %p306, %p307
      %p309 = scmp.ne.s32.totalorder %s297, %s298
      %p310 = scmp.eq.s32.totalorder %s26, 5
      %p311 = por %p309, %p310
      %p313 = scmp.ne.s32.totalorder %s298, %s312
      %p314 = scmp.eq.s32.totalorder %s26, 0
      %p315 = por %p313, %p314
      %s317 = sadd.s32 %s316, 1
      %p320 = scmp.eq.s32.totalorder %s20, 5
      %p321 = scmp.ne.s32.totalorder %s316, %s318
      %p322 = scmp.eq.s32.totalorder %s20, 0
      %p323 = por %p321, %p322
      %p324 = scmp.ne.s32.totalorder %s316, %s318
      %p325 = scmp.eq.s32.totalorder %s25, 5
      %p326 = por %p324, %p325
      %p327 = scmp.ne.s32.totalorder %s318, %s319
      %p328 = scmp.eq.s32.totalorder %s25, 0
      %p329 = por %p327, %p328
      %p330 = scmp.ne.s32.totalorder %s318, %s319
      %p331 = scmp.eq.s32.totalorder %s26, 5
      %p332 = por %p330, %p331
      %p334 = scmp.ne.s32.totalorder %s319, %s333
      %p335 = scmp.eq.s32.totalorder %s26, 0
      %p336 = por %p334, %p335
      %s338 = sadd.s32 %s337, 1
      %p341 = scmp.eq.s32.totalorder %s20, 5
      %p342 = scmp.ne.s32.totalorder %s337, %s339
      %p343 = scmp.eq.s32.totalorder %s20, 0
      %p344 = por %p342, %p343
      %p345 = scmp.ne.s32.totalorder %s337, %s339
      %p346 = scmp.eq.s32.totalorder %s25, 5
      %p347 = por %p345, %p346
      %p348 = scmp.ne.s32.totalorder %s339, %s340
      %p349 = scmp.eq.s32.totalorder %s25, 0
      %p350 = por %p348, %p349
      %p351 = scmp.ne.s32.totalorder %s339, %s340
      %p352 = scmp.eq.s32.totalorder %s26, 5
      %p353 = por %p351, %p352
      %p355 = scmp.ne.s32.totalorder %s340, %s354
      %p356 = scmp.eq.s32.totalorder %s26, 0
      %p357 = por %p355, %p356
      %s358 = ssub.s32 %s29, %s38
      %s359 = ssub.s32 %s27, %s46
      %s360 = sor.u32 %s358, %s359
      %s361 = ssub.s32 %s28, %s42
      %s362 = sor.u32 %s360, %s361
      %p363 = scmp.eq.s32.totalorder %s362, 0
      %s365 = sadd.s32 %s364, 1
      %s366 = scalar_select %p363, %s364, %s365
      %p369 = pneg %p363
      %p370 = scmp.eq.s32.totalorder %s20, 5
      %p371 = por %p369, %p370
      %p372 = scmp.ne.s32.totalorder %s364, %s367
      %p373 = scmp.eq.s32.totalorder %s20, 0
      %p374 = por %p372, %p373
      %p375 = scmp.ne.s32.totalorder %s364, %s367
      %p376 = scmp.eq.s32.totalorder %s25, 5
      %p377 = por %p375, %p376
      %p378 = scmp.ne.s32.totalorder %s367, %s368
      %p379 = scmp.eq.s32.totalorder %s25, 0
      %p380 = por %p378, %p379
      %p381 = scmp.ne.s32.totalorder %s367, %s368
      %p382 = scmp.eq.s32.totalorder %s26, 5
      %p383 = por %p381, %p382
      %p385 = scmp.ne.s32.totalorder %s368, %s384
      %p386 = scmp.eq.s32.totalorder %s26, 0
      %p387 = por %p385, %p386
      %p388 = scmp.le.s32.totalorder 1, %s20
      %p389 = scmp.lt.s32.totalorder %s20, 7
      %p390 = pnand %p388, %p389
      %p391 = pneg %p390
      // Predicated region
      $region9: #{tpu_custom_call.1} parent=5 // pred_check
        _
      $region10: #{tpu_custom_call.1} parent=5 // pred_check_branch
        %393 = sbr.rel (%p390) target = $region12
      $region11: #{tpu_custom_call.1} parent=5 // pred_region
        %s394 = ssub.s32 %s20, 1
        // Predicated region
        $region13: #{tpu_custom_call.1} parent=11 // pred_check
          %p395 = pneg %p266
        $region14: #{tpu_custom_call.1} parent=11 // pred_check_branch
          %397 = sbr.rel (%p395) target = $region16
        $region15: #{tpu_custom_call.1} parent=11 // pred_region
          _
        $region16: #{tpu_custom_call.1} parent=11 // pred_fallthru
          _
        // Predicated region
        $region17: #{tpu_custom_call.1} parent=11 // pred_check
          %p398 = pneg %p287
        $region18: #{tpu_custom_call.1} parent=11 // pred_check_branch
          %400 = sbr.rel (%p398) target = $region20
        $region19: #{tpu_custom_call.1} parent=11 // pred_region
          _
        $region20: #{tpu_custom_call.1} parent=11 // pred_fallthru
          _
        // Predicated region
        $region21: #{tpu_custom_call.1} parent=11 // pred_check
          %p401 = pneg %p308
        $region22: #{tpu_custom_call.1} parent=11 // pred_check_branch
          %403 = sbr.rel (%p401) target = $region24
        $region23: #{tpu_custom_call.1} parent=11 // pred_region
          _
        $region24: #{tpu_custom_call.1} parent=11 // pred_fallthru
          _
        // Predicated region
        $region25: #{tpu_custom_call.1} parent=11 // pred_check
          %p404 = pneg %p329
        $region26: #{tpu_custom_call.1} parent=11 // pred_check_branch
          %406 = sbr.rel (%p404) target = $region28
        $region27: #{tpu_custom_call.1} parent=11 // pred_region
          _
        $region28: #{tpu_custom_call.1} parent=11 // pred_fallthru
          _
        // Predicated region
        $region29: #{tpu_custom_call.1} parent=11 // pred_check
          %p407 = pneg %p350
        $region30: #{tpu_custom_call.1} parent=11 // pred_check_branch
          %409 = sbr.rel (%p407) target = $region32
        $region31: #{tpu_custom_call.1} parent=11 // pred_region
          _
        $region32: #{tpu_custom_call.1} parent=11 // pred_fallthru
          _
      $region12: #{tpu_custom_call.1} parent=5 // pred_fallthru
        _
      %p410 = scmp.lt.s32.totalorder %s20, 6
      // Predicated region
      $region33: #{tpu_custom_call.1} parent=5 // pred_check
        %p411 = pneg %p410
      $region34: #{tpu_custom_call.1} parent=5 // pred_check_branch
        %413 = sbr.rel (%p411) target = $region36
      $region35: #{tpu_custom_call.1} parent=5 // pred_region
        // Predicated region
        $region37: #{tpu_custom_call.1} parent=35 // pred_check
          %p414 = pneg %p69
        $region38: #{tpu_custom_call.1} parent=35 // pred_check_branch
          %416 = sbr.rel (%p414) target = $region40
        $region39: #{tpu_custom_call.1} parent=35 // pred_region
          %s417 = smul.u32 %s28, 16
          %s418 = ssub.s32 %s417, 1
          %p419 = scmp.gt.s32.totalorder %s418, 0
          %s420 = scalar_select %p419, %s418, 0
          %s421 = smul.u32 2, %s420
          %p422 = scmp.lt.s32.totalorder %s27, 1
          %s423 = scalar_select %p422, %s27, 1
          %p424 = scmp.lt.s32.totalorder %s421, 31
          %s425 = scalar_select %p424, %s421, 31
          %s426 = smul.addr %s423, 32
          %s427 = sadd.s32 %s425, %s426
          %s428 = smul.addr %s427, 8
          %s429 = scalar_lea.vmem %s0, %s428
          %s430 = smul.u32 %s28, 16
          %s431 = ssub.s32 %s430, 1
          %p432 = scmp.gt.s32.totalorder %s431, 0
          %s433 = scalar_select %p432, %s431, 0
          %s434 = smul.u32 2, %s433
        $region40: #{tpu_custom_call.1} parent=35 // pred_fallthru
          _
        // Predicated region
        $region41: #{tpu_custom_call.1} parent=35 // pred_check
          %p435 = pneg %p97
        $region42: #{tpu_custom_call.1} parent=35 // pred_check_branch
          %437 = sbr.rel (%p435) target = $region44
        $region43: #{tpu_custom_call.1} parent=35 // pred_region
          %s438 = smul.u32 32, %s28
          %p439 = scmp.lt.s32.totalorder %s27, 1
          %s440 = scalar_select %p439, %s27, 1
          %p441 = scmp.lt.s32.totalorder %s438, 31
          %s442 = scalar_select %p441, %s438, 31
          %s443 = smul.addr %s440, 32
          %s444 = sadd.s32 %s442, %s443
          %s445 = smul.addr %s444, 8
          %s446 = scalar_lea.vmem %s1, %s445
          %s447 = smul.u32 32, %s28
        $region44: #{tpu_custom_call.1} parent=35 // pred_fallthru
          _
        // Predicated region
        $region45: #{tpu_custom_call.1} parent=35 // pred_check
          %p448 = pneg %p133
        $region46: #{tpu_custom_call.1} parent=35 // pred_check_branch
          %450 = sbr.rel (%p448) target = $region48
        $region47: #{tpu_custom_call.1} parent=35 // pred_region
          %s451 = sadd.s32 %s28, 1
          %s452 = smul.u32 %s451, 16
          %p453 = scmp.lt.s32.totalorder %s452, 15
          %s454 = scalar_select %p453, %s452, 15
          %s455 = smul.u32 2, %s454
          %p456 = scmp.lt.s32.totalorder %s27, 1
          %s457 = scalar_select %p456, %s27, 1
          %p458 = scmp.lt.s32.totalorder %s455, 31
          %s459 = scalar_select %p458, %s455, 31
          %s460 = smul.addr %s457, 32
          %s461 = sadd.s32 %s459, %s460
          %s462 = smul.addr %s461, 8
          %s463 = scalar_lea.vmem %s2, %s462
          %s464 = sadd.s32 %s28, 1
          %s465 = smul.u32 %s464, 16
          %p466 = scmp.lt.s32.totalorder %s465, 15
          %s467 = scalar_select %p466, %s465, 15
          %s468 = smul.u32 2, %s467
        $region48: #{tpu_custom_call.1} parent=35 // pred_fallthru
          _
        // Predicated region
        $region49: #{tpu_custom_call.1} parent=35 // pred_check
          %p469 = pneg %p171
        $region50: #{tpu_custom_call.1} parent=35 // pred_check_branch
          %471 = sbr.rel (%p469) target = $region52
        $region51: #{tpu_custom_call.1} parent=35 // pred_region
          %s472 = smul.u32 %s28, 16
          %s473 = ssub.s32 %s472, 1
          %p474 = scmp.gt.s32.totalorder %s473, 0
          %s475 = scalar_select %p474, %s473, 0
          %s476 = smul.u32 2, %s475
          %p477 = scmp.lt.s32.totalorder %s29, 2
          %s478 = scalar_select %p477, %s29, 2
          %p479 = scmp.lt.s32.totalorder %s27, 1
          %s480 = scalar_select %p479, %s27, 1
          %p481 = scmp.lt.s32.totalorder %s476, 31
          %s482 = scalar_select %p481, %s476, 31
          %s483 = smul.addr %s480, 32
          %s484 = sadd.s32 %s482, %s483
          %s485 = smul.addr %s478, 64
          %s486 = sadd.s32 %s484, %s485
          %s487 = smul.addr %s486, 8
          %s488 = scalar_lea.vmem %s3, %s487
          %s489 = smul.u32 %s28, 16
          %s490 = ssub.s32 %s489, 1
          %p491 = scmp.gt.s32.totalorder %s490, 0
          %s492 = scalar_select %p491, %s490, 0
          %s493 = smul.u32 2, %s492
        $region52: #{tpu_custom_call.1} parent=35 // pred_fallthru
          _
        // Predicated region
        $region53: #{tpu_custom_call.1} parent=35 // pred_check
          %p494 = pneg %p201
        $region54: #{tpu_custom_call.1} parent=35 // pred_check_branch
          %496 = sbr.rel (%p494) target = $region56
        $region55: #{tpu_custom_call.1} parent=35 // pred_region
          %s497 = smul.u32 32, %s28
          %p498 = scmp.lt.s32.totalorder %s29, 2
          %s499 = scalar_select %p498, %s29, 2
          %p500 = scmp.lt.s32.totalorder %s27, 1
          %s501 = scalar_select %p500, %s27, 1
          %p502 = scmp.lt.s32.totalorder %s497, 31
          %s503 = scalar_select %p502, %s497, 31
          %s504 = smul.addr %s501, 32
          %s505 = sadd.s32 %s503, %s504
          %s506 = smul.addr %s499, 64
          %s507 = sadd.s32 %s505, %s506
          %s508 = smul.addr %s507, 8
          %s509 = scalar_lea.vmem %s4, %s508
          %s510 = smul.u32 32, %s28
        $region56: #{tpu_custom_call.1} parent=35 // pred_fallthru
          _
        // Predicated region
        $region57: #{tpu_custom_call.1} parent=35 // pred_check
          %p511 = pneg %p239
        $region58: #{tpu_custom_call.1} parent=35 // pred_check_branch
          %513 = sbr.rel (%p511) target = $region60
        $region59: #{tpu_custom_call.1} parent=35 // pred_region
          %s514 = sadd.s32 %s28, 1
          %s515 = smul.u32 %s514, 16
          %p516 = scmp.lt.s32.totalorder %s515, 15
          %s517 = scalar_select %p516, %s515, 15
          %s518 = smul.u32 2, %s517
          %p519 = scmp.lt.s32.totalorder %s29, 2
          %s520 = scalar_select %p519, %s29, 2
          %p521 = scmp.lt.s32.totalorder %s27, 1
          %s522 = scalar_select %p521, %s27, 1
          %p523 = scmp.lt.s32.totalorder %s518, 31
          %s524 = scalar_select %p523, %s518, 31
          %s525 = smul.addr %s522, 32
          %s526 = sadd.s32 %s524, %s525
          %s527 = smul.addr %s520, 64
          %s528 = sadd.s32 %s526, %s527
          %s529 = smul.addr %s528, 8
          %s530 = scalar_lea.vmem %s5, %s529
          %s531 = sadd.s32 %s28, 1
          %s532 = smul.u32 %s531, 16
          %p533 = scmp.lt.s32.totalorder %s532, 15
          %s534 = scalar_select %p533, %s532, 15
          %s535 = smul.u32 2, %s534
        $region60: #{tpu_custom_call.1} parent=35 // pred_fallthru
          _
      $region36: #{tpu_custom_call.1} parent=5 // pred_fallthru
        _
      %p536 = scmp.le.s32.totalorder 1, %s20
      %p537 = scmp.lt.s32.totalorder %s20, 7
      %p538 = pnand %p536, %p537
      %p539 = pneg %p538
      // Predicated region
      $region61: #{tpu_custom_call.1} parent=5 // pred_check
        _
      $region62: #{tpu_custom_call.1} parent=5 // pred_check_branch
        %541 = sbr.rel (%p538) target = $region64
      $region63: #{tpu_custom_call.1} parent=5 // pred_region
        %s542 = ssub.s32 %s20, 1
        %s543 = smul.u32 %s31, 16
        %s544 = ssub.s32 %s543, 1
        %p545 = scmp.gt.s32.totalorder %s544, 0
        %s546 = scalar_select %p545, %s544, 0
        %s547 = smul.u32 2, %s546
        %p548 = scmp.lt.s32.totalorder %s30, 1
        %s549 = scalar_select %p548, %s30, 1
        %p550 = scmp.lt.s32.totalorder %s547, 31
        %s551 = scalar_select %p550, %s547, 31
        %s552 = smul.addr %s549, 32
        %s553 = sadd.s32 %s551, %s552
        %s554 = smul.addr %s553, 8
        %s555 = scalar_lea.vmem %s0, %s554
        %p556 = pneg %p75
        %p557 = pneg %p72
        %s558 = smul.u32 32, %s31
        %p559 = scmp.lt.s32.totalorder %s30, 1
        %s560 = scalar_select %p559, %s30, 1
        %p561 = scmp.lt.s32.totalorder %s558, 31
        %s562 = scalar_select %p561, %s558, 31
        %s563 = smul.addr %s560, 32
        %s564 = sadd.s32 %s562, %s563
        %s565 = smul.addr %s564, 8
        %s566 = scalar_lea.vmem %s1, %s565
        %p567 = pneg %p103
        %p568 = pneg %p100
        %s569 = sadd.s32 %s31, 1
        %s570 = smul.u32 %s569, 16
        %p571 = scmp.lt.s32.totalorder %s570, 15
        %s572 = scalar_select %p571, %s570, 15
        %s573 = smul.u32 2, %s572
        %p574 = scmp.lt.s32.totalorder %s30, 1
        %s575 = scalar_select %p574, %s30, 1
        %p576 = scmp.lt.s32.totalorder %s573, 31
        %s577 = scalar_select %p576, %s573, 31
        %s578 = smul.addr %s575, 32
        %s579 = sadd.s32 %s577, %s578
        %s580 = smul.addr %s579, 8
        %s581 = scalar_lea.vmem %s2, %s580
        %p582 = pneg %p139
        %p583 = pneg %p136
        %s584 = smul.u32 %s31, 16
        %s585 = ssub.s32 %s584, 1
        %p586 = scmp.gt.s32.totalorder %s585, 0
        %s587 = scalar_select %p586, %s585, 0
        %s588 = smul.u32 2, %s587
        %p589 = scmp.lt.s32.totalorder %s32, 2
        %s590 = scalar_select %p589, %s32, 2
        %p591 = scmp.lt.s32.totalorder %s30, 1
        %s592 = scalar_select %p591, %s30, 1
        %p593 = scmp.lt.s32.totalorder %s588, 31
        %s594 = scalar_select %p593, %s588, 31
        %s595 = smul.addr %s592, 32
        %s596 = sadd.s32 %s594, %s595
        %s597 = smul.addr %s590, 64
        %s598 = sadd.s32 %s596, %s597
        %s599 = smul.addr %s598, 8
        %s600 = scalar_lea.vmem %s3, %s599
        %p601 = pneg %p177
        %p602 = pneg %p174
        %s603 = smul.u32 32, %s31
        %p604 = scmp.lt.s32.totalorder %s32, 2
        %s605 = scalar_select %p604, %s32, 2
        %p606 = scmp.lt.s32.totalorder %s30, 1
        %s607 = scalar_select %p606, %s30, 1
        %p608 = scmp.lt.s32.totalorder %s603, 31
        %s609 = scalar_select %p608, %s603, 31
        %s610 = smul.addr %s607, 32
        %s611 = sadd.s32 %s609, %s610
        %s612 = smul.addr %s605, 64
        %s613 = sadd.s32 %s611, %s612
        %s614 = smul.addr %s613, 8
        %s615 = scalar_lea.vmem %s4, %s614
        %p616 = pneg %p207
        %p617 = pneg %p204
        %s618 = sadd.s32 %s31, 1
        %s619 = smul.u32 %s618, 16
        %p620 = scmp.lt.s32.totalorder %s619, 15
        %s621 = scalar_select %p620, %s619, 15
        %s622 = smul.u32 2, %s621
        %p623 = scmp.lt.s32.totalorder %s32, 2
        %s624 = scalar_select %p623, %s32, 2
        %p625 = scmp.lt.s32.totalorder %s30, 1
        %s626 = scalar_select %p625, %s30, 1
        %p627 = scmp.lt.s32.totalorder %s622, 31
        %s628 = scalar_select %p627, %s622, 31
        %s629 = smul.addr %s626, 32
        %s630 = sadd.s32 %s628, %s629
        %s631 = smul.addr %s624, 64
        %s632 = sadd.s32 %s630, %s631
        %s633 = smul.addr %s632, 8
        %s634 = scalar_lea.vmem %s5, %s633
        %p635 = pneg %p245
        %p636 = pneg %p242
        %p637 = pneg %p266
        %p638 = pneg %p263
        %p639 = pneg %p287
        %p640 = pneg %p284
        %p641 = pneg %p308
        %p642 = pneg %p305
        %p643 = pneg %p329
        %p644 = pneg %p326
        %p645 = pneg %p350
        %p646 = pneg %p347
        %p647 = pneg %p380
        %p648 = pneg %p377
        %s649 = sand.u32 %s367, 1
        %s650 = scalar_lea.sflag [#allocation6], %s649
        %s651 = sand.u32 %s367, 1
        %s652 = smul.addr %s651, 256
        %s653 = scalar_lea.vmem [#allocation5], %s652
        %s654 = smul.u32 %s31, 16
        %s655 = ssub.s32 %s654, 1
        %p656 = scmp.gt.s32.totalorder %s655, 0
        %s657 = scalar_select %p656, %s655, 0
        %s658 = smul.u32 2, %s657
        %p659 = scmp.lt.s32.totalorder %s30, 1
        %s660 = scalar_select %p659, %s30, 1
        %p661 = scmp.lt.s32.totalorder %s658, 31
        %s662 = scalar_select %p661, %s658, 31
        %s663 = smul.addr %s660, 32
        %s664 = sadd.s32 %s662, %s663
        %s665 = smul.addr %s664, 8
        %s666 = scalar_lea.vmem %s0, %s665
        %s667 = smul.u32 %s31, 16
        %s668 = ssub.s32 %s667, 1
        %p669 = scmp.gt.s32.totalorder %s668, 0
        %s670 = scalar_select %p669, %s668, 0
        %s671 = smul.u32 2, %s670
        %s672 = smul.u32 32, %s31
        %p673 = scmp.lt.s32.totalorder %s30, 1
        %s674 = scalar_select %p673, %s30, 1
        %p675 = scmp.lt.s32.totalorder %s672, 31
        %s676 = scalar_select %p675, %s672, 31
        %s677 = smul.addr %s674, 32
        %s678 = sadd.s32 %s676, %s677
        %s679 = smul.addr %s678, 8
        %s680 = scalar_lea.vmem %s1, %s679
        %s681 = smul.u32 32, %s31
        %s682 = sadd.s32 %s31, 1
        %s683 = smul.u32 %s682, 16
        %p684 = scmp.lt.s32.totalorder %s683, 15
        %s685 = scalar_select %p684, %s683, 15
        %s686 = smul.u32 2, %s685
        %p687 = scmp.lt.s32.totalorder %s30, 1
        %s688 = scalar_select %p687, %s30, 1
        %p689 = scmp.lt.s32.totalorder %s686, 31
        %s690 = scalar_select %p689, %s686, 31
        %s691 = smul.addr %s688, 32
        %s692 = sadd.s32 %s690, %s691
        %s693 = smul.addr %s692, 8
        %s694 = scalar_lea.vmem %s2, %s693
        %s695 = sadd.s32 %s31, 1
        %s696 = smul.u32 %s695, 16
        %p697 = scmp.lt.s32.totalorder %s696, 15
        %s698 = scalar_select %p697, %s696, 15
        %s699 = smul.u32 2, %s698
        %s700 = smul.u32 %s31, 16
        %s701 = ssub.s32 %s700, 1
        %p702 = scmp.gt.s32.totalorder %s701, 0
        %s703 = scalar_select %p702, %s701, 0
        %s704 = smul.u32 2, %s703
        %p705 = scmp.lt.s32.totalorder %s32, 2
        %s706 = scalar_select %p705, %s32, 2
        %p707 = scmp.lt.s32.totalorder %s30, 1
        %s708 = scalar_select %p707, %s30, 1
        %p709 = scmp.lt.s32.totalorder %s704, 31
        %s710 = scalar_select %p709, %s704, 31
        %s711 = smul.addr %s708, 32
        %s712 = sadd.s32 %s710, %s711
        %s713 = smul.addr %s706, 64
        %s714 = sadd.s32 %s712, %s713
        %s715 = smul.addr %s714, 8
        %s716 = scalar_lea.vmem %s3, %s715
        %s717 = smul.u32 %s31, 16
        %s718 = ssub.s32 %s717, 1
        %p719 = scmp.gt.s32.totalorder %s718, 0
        %s720 = scalar_select %p719, %s718, 0
        %s721 = smul.u32 2, %s720
        %s722 = smul.u32 32, %s31
        %p723 = scmp.lt.s32.totalorder %s32, 2
        %s724 = scalar_select %p723, %s32, 2
        %p725 = scmp.lt.s32.totalorder %s30, 1
        %s726 = scalar_select %p725, %s30, 1
        %p727 = scmp.lt.s32.totalorder %s722, 31
        %s728 = scalar_select %p727, %s722, 31
        %s729 = smul.addr %s726, 32
        %s730 = sadd.s32 %s728, %s729
        %s731 = smul.addr %s724, 64
        %s732 = sadd.s32 %s730, %s731
        %s733 = smul.addr %s732, 8
        %s734 = scalar_lea.vmem %s4, %s733
        %s735 = smul.u32 32, %s31
        %s736 = sadd.s32 %s31, 1
        %s737 = smul.u32 %s736, 16
        %p738 = scmp.lt.s32.totalorder %s737, 15
        %s739 = scalar_select %p738, %s737, 15
        %s740 = smul.u32 2, %s739
        %p741 = scmp.lt.s32.totalorder %s32, 2
        %s742 = scalar_select %p741, %s32, 2
        %p743 = scmp.lt.s32.totalorder %s30, 1
        %s744 = scalar_select %p743, %s30, 1
        %p745 = scmp.lt.s32.totalorder %s740, 31
        %s746 = scalar_select %p745, %s740, 31
        %s747 = smul.addr %s744, 32
        %s748 = sadd.s32 %s746, %s747
        %s749 = smul.addr %s742, 64
        %s750 = sadd.s32 %s748, %s749
        %s751 = smul.addr %s750, 8
        %s752 = scalar_lea.vmem %s5, %s751
        %s753 = sadd.s32 %s31, 1
        %s754 = smul.u32 %s753, 16
        %p755 = scmp.lt.s32.totalorder %s754, 15
        %s756 = scalar_select %p755, %s754, 15
        %s757 = smul.u32 2, %s756
        %s758 = smul.u32 32, %s31
        %p759 = scmp.ne.s32.totalorder %s31, 0
        %s760 = scalar_select %p759, 1, 0
        %s761 = scvt.s32.f32 %s760
        %v762 = vld [vmem:[%s9] sm:$0xff]
        %v763 = vld [vmem:[%s9 + $0x8] sm:$0xff]
        %v764 = vld [vmem:[%s9 + $0x10] sm:$0xff]
        %v765 = vld [vmem:[%s9 + $0x18] sm:$0xff]
        %v766 = vld [vmem:[%s9 + $0x20] sm:$0xff]
        %v767 = vld [vmem:[%s9 + $0x28] sm:$0xff]
        %v768 = vld [vmem:[%s9 + $0x30] sm:$0xff]
        %v769 = vld [vmem:[%s9 + $0x38] sm:$0xff]
        %v770 = vld [vmem:[%s9 + $0x40] sm:$0xff]
        %v771 = vld [vmem:[%s9 + $0x48] sm:$0xff]
        %v772 = vld [vmem:[%s9 + $0x50] sm:$0xff]
        %v773 = vld [vmem:[%s9 + $0x58] sm:$0xff]
        %v774 = vld [vmem:[%s9 + $0x60] sm:$0xff]
        %v775 = vld [vmem:[%s9 + $0x68] sm:$0xff]
        %v776 = vld [vmem:[%s9 + $0x70] sm:$0xff]
        %v777 = vld [vmem:[%s9 + $0x78] sm:$0xff]
        %v778 = vld [vmem:[%s9 + $0x80] sm:$0xff]
        %v779 = vld [vmem:[%s9 + $0x88] sm:$0xff]
        %v780 = vld [vmem:[%s9 + $0x90] sm:$0xff]
        %v781 = vld [vmem:[%s9 + $0x98] sm:$0xff]
        %v782 = vld [vmem:[%s9 + $0xa0] sm:$0xff]
        %v783 = vld [vmem:[%s9 + $0xa8] sm:$0xff]
        %v784 = vld [vmem:[%s9 + $0xb0] sm:$0xff]
        %v785 = vld [vmem:[%s9 + $0xb8] sm:$0xff]
        %v786 = vld [vmem:[%s9 + $0xc0] sm:$0xff]
        %v787 = vld [vmem:[%s9 + $0xc8] sm:$0xff]
        %v788 = vld [vmem:[%s9 + $0xd0] sm:$0xff]
        %v789 = vld [vmem:[%s9 + $0xd8] sm:$0xff]
        %v790 = vld [vmem:[%s9 + $0xe0] sm:$0xff]
        %v791 = vld [vmem:[%s9 + $0xe8] sm:$0xff]
        %v792 = vld [vmem:[%s9 + $0xf0] sm:$0xff]
        %v793 = vld [vmem:[%s9 + $0xf8] sm:$0xff]
        %v794 = vld [vmem:[%s9 + $0x100] sm:$0xff]
        %v795 = vld [vmem:[%s9 + $0x108] sm:$0xff]
        %v796 = vld [vmem:[%s9 + $0x110] sm:$0xff]
        %v797 = vld [vmem:[%s9 + $0x118] sm:$0xff]
        %v798 = vld [vmem:[%s10] sm:$0xff]
        %v799 = vld [vmem:[%s10 + $0x8] sm:$0xff]
        %v800 = vld [vmem:[%s10 + $0x10] sm:$0xff]
        %v801 = vld [vmem:[%s10 + $0x18] sm:$0xff]
        %v802 = vld [vmem:[%s10 + $0x20] sm:$0xff]
        %v803 = vld [vmem:[%s10 + $0x28] sm:$0xff]
        %v804 = vld [vmem:[%s10 + $0x30] sm:$0xff]
        %v805 = vld [vmem:[%s10 + $0x38] sm:$0xff]
        %v806 = vld [vmem:[%s10 + $0x40] sm:$0xff]
        %v807 = vld [vmem:[%s10 + $0x48] sm:$0xff]
        %v808 = vld [vmem:[%s10 + $0x50] sm:$0xff]
        %v809 = vld [vmem:[%s10 + $0x58] sm:$0xff]
        %v810 = vld [vmem:[%s10 + $0x60] sm:$0xff]
        %v811 = vld [vmem:[%s10 + $0x68] sm:$0xff]
        %v812 = vld [vmem:[%s10 + $0x70] sm:$0xff]
        %v813 = vld [vmem:[%s10 + $0x78] sm:$0xff]
        %v814 = vld [vmem:[%s10 + $0x80] sm:$0xff]
        %v815 = vld [vmem:[%s10 + $0x88] sm:$0xff]
        %v816 = vld [vmem:[%s10 + $0x90] sm:$0xff]
        %v817 = vld [vmem:[%s10 + $0x98] sm:$0xff]
        %v818 = vld [vmem:[%s10 + $0xa0] sm:$0xff]
        %v819 = vld [vmem:[%s10 + $0xa8] sm:$0xff]
        %v820 = vld [vmem:[%s10 + $0xb0] sm:$0xff]
        %v821 = vld [vmem:[%s10 + $0xb8] sm:$0xff]
        %v822 = vld [vmem:[%s10 + $0xc0] sm:$0xff]
        %v823 = vld [vmem:[%s10 + $0xc8] sm:$0xff]
        %v824 = vld [vmem:[%s10 + $0xd0] sm:$0xff]
        %v825 = vld [vmem:[%s10 + $0xd8] sm:$0xff]
        %v826 = vld [vmem:[%s10 + $0xe0] sm:$0xff]
        %v827 = vld [vmem:[%s10 + $0xe8] sm:$0xff]
        %v828 = vld [vmem:[%s10 + $0xf0] sm:$0xff]
        %v829 = vld [vmem:[%s10 + $0xf8] sm:$0xff]
        %v830 = vld [vmem:[%s10 + $0x100] sm:$0xff]
        %v831 = vld [vmem:[%s10 + $0x108] sm:$0xff]
        %v832 = vld [vmem:[%s10 + $0x110] sm:$0xff]
        %v833 = vld [vmem:[%s10 + $0x118] sm:$0xff]
        %p834 = scmp.eq.s32.totalorder %s32, 0
        // Predicated region
        $region65: #{tpu_custom_call.1} parent=63 // pred_check
          %p835 = pneg %p834
        $region66: #{tpu_custom_call.1} parent=63 // pred_check_branch
          %837 = sbr.rel (%p835) target = $region68
        $region67: #{tpu_custom_call.1} parent=63 // pred_region
          %v838 = vld [vmem:[%s666] sm:$0xff]
          %v839 = vld [vmem:[%s666 + $0x8] sm:$0xff]
          %v840 = vstv %s761
          %v841 = vmul.f32 %v838, %v840
          %v842 = vmul.f32 %v839, %v840
          %v843 = vld [vmem:[%s680] sm:$0xff]
          %v844 = vld [vmem:[%s680 + $0x8] sm:$0xff]
          %v845 = vld [vmem:[%s680 + $0x10] sm:$0xff]
          %v846 = vld [vmem:[%s680 + $0x18] sm:$0xff]
          %v847 = vld [vmem:[%s680 + $0x20] sm:$0xff]
          %v848 = vld [vmem:[%s680 + $0x28] sm:$0xff]
          %v849 = vld [vmem:[%s680 + $0x30] sm:$0xff]
          %v850 = vld [vmem:[%s680 + $0x38] sm:$0xff]
          %v851 = vld [vmem:[%s680 + $0x40] sm:$0xff]
          %v852 = vld [vmem:[%s680 + $0x48] sm:$0xff]
          %v853 = vld [vmem:[%s680 + $0x50] sm:$0xff]
          %v854 = vld [vmem:[%s680 + $0x58] sm:$0xff]
          %v855 = vld [vmem:[%s680 + $0x60] sm:$0xff]
          %v856 = vld [vmem:[%s680 + $0x68] sm:$0xff]
          %v857 = vld [vmem:[%s680 + $0x70] sm:$0xff]
          %v858 = vld [vmem:[%s680 + $0x78] sm:$0xff]
          %v859 = vld [vmem:[%s680 + $0x80] sm:$0xff]
          %v860 = vld [vmem:[%s680 + $0x88] sm:$0xff]
          %v861 = vld [vmem:[%s680 + $0x90] sm:$0xff]
          %v862 = vld [vmem:[%s680 + $0x98] sm:$0xff]
          %v863 = vld [vmem:[%s680 + $0xa0] sm:$0xff]
          %v864 = vld [vmem:[%s680 + $0xa8] sm:$0xff]
          %v865 = vld [vmem:[%s680 + $0xb0] sm:$0xff]
          %v866 = vld [vmem:[%s680 + $0xb8] sm:$0xff]
          %v867 = vld [vmem:[%s680 + $0xc0] sm:$0xff]
          %v868 = vld [vmem:[%s680 + $0xc8] sm:$0xff]
          %v869 = vld [vmem:[%s680 + $0xd0] sm:$0xff]
          %v870 = vld [vmem:[%s680 + $0xd8] sm:$0xff]
          %v871 = vld [vmem:[%s680 + $0xe0] sm:$0xff]
          %v872 = vld [vmem:[%s680 + $0xe8] sm:$0xff]
          %v873 = vld [vmem:[%s680 + $0xf0] sm:$0xff]
          %v874 = vld [vmem:[%s680 + $0xf8] sm:$0xff]
          %v875 = vld [vmem:[%s694] sm:$0xff]
          %v876 = vld [vmem:[%s694 + $0x8] sm:$0xff]
          %v877 = vmul.f32 %v875, %v840
          %v878 = vmul.f32 %v876, %v840
          %vm879 = vcmask 31744
          %880 = vst.msk [vmem:[#allocation3] sm:$0xff] %vm879, %v841
          %881 = vst.msk [vmem:[#allocation3 + $0x8] sm:$0xff] %vm879, %v842
          %882 = vst.msk [vmem:[#allocation3 + $0x10] sm:$0xff] %vm879, %v843
          %883 = vst.msk [vmem:[#allocation3 + $0x18] sm:$0xff] %vm879, %v844
          %884 = vst.msk [vmem:[#allocation3 + $0x20] sm:$0xff] %vm879, %v845
          %885 = vst.msk [vmem:[#allocation3 + $0x28] sm:$0xff] %vm879, %v846
          %886 = vst.msk [vmem:[#allocation3 + $0x30] sm:$0xff] %vm879, %v847
          %887 = vst.msk [vmem:[#allocation3 + $0x38] sm:$0xff] %vm879, %v848
          %888 = vst.msk [vmem:[#allocation3 + $0x40] sm:$0xff] %vm879, %v849
          %889 = vst.msk [vmem:[#allocation3 + $0x48] sm:$0xff] %vm879, %v850
          %890 = vst.msk [vmem:[#allocation3 + $0x50] sm:$0xff] %vm879, %v851
          %891 = vst.msk [vmem:[#allocation3 + $0x58] sm:$0xff] %vm879, %v852
          %892 = vst.msk [vmem:[#allocation3 + $0x60] sm:$0xff] %vm879, %v853
          %893 = vst.msk [vmem:[#allocation3 + $0x68] sm:$0xff] %vm879, %v854
          %894 = vst.msk [vmem:[#allocation3 + $0x70] sm:$0xff] %vm879, %v855
          %895 = vst.msk [vmem:[#allocation3 + $0x78] sm:$0xff] %vm879, %v856
          %896 = vst.msk [vmem:[#allocation3 + $0x80] sm:$0xff] %vm879, %v857
          %897 = vst.msk [vmem:[#allocation3 + $0x88] sm:$0xff] %vm879, %v858
          %898 = vst.msk [vmem:[#allocation3 + $0x90] sm:$0xff] %vm879, %v859
          %899 = vst.msk [vmem:[#allocation3 + $0x98] sm:$0xff] %vm879, %v860
          %900 = vst.msk [vmem:[#allocation3 + $0xa0] sm:$0xff] %vm879, %v861
          %901 = vst.msk [vmem:[#allocation3 + $0xa8] sm:$0xff] %vm879, %v862
          %902 = vst.msk [vmem:[#allocation3 + $0xb0] sm:$0xff] %vm879, %v863
          %903 = vst.msk [vmem:[#allocation3 + $0xb8] sm:$0xff] %vm879, %v864
          %904 = vst.msk [vmem:[#allocation3 + $0xc0] sm:$0xff] %vm879, %v865
          %905 = vst.msk [vmem:[#allocation3 + $0xc8] sm:$0xff] %vm879, %v866
          %906 = vst.msk [vmem:[#allocation3 + $0xd0] sm:$0xff] %vm879, %v867
          %907 = vst.msk [vmem:[#allocation3 + $0xd8] sm:$0xff] %vm879, %v868
          %908 = vst.msk [vmem:[#allocation3 + $0xe0] sm:$0xff] %vm879, %v869
          %909 = vst.msk [vmem:[#allocation3 + $0xe8] sm:$0xff] %vm879, %v870
          %910 = vst.msk [vmem:[#allocation3 + $0xf0] sm:$0xff] %vm879, %v871
          %911 = vst.msk [vmem:[#allocation3 + $0xf8] sm:$0xff] %vm879, %v872
          %912 = vst.msk [vmem:[#allocation3 + $0x100] sm:$0xff] %vm879, %v873
          %913 = vst.msk [vmem:[#allocation3 + $0x108] sm:$0xff] %vm879, %v874
          %914 = vst.msk [vmem:[#allocation3 + $0x110] sm:$0xff] %vm879, %v877
          %915 = vst.msk [vmem:[#allocation3 + $0x118] sm:$0xff] %vm879, %v878
          %v916 = vld [vmem:[#allocation3] sm:$0xff]
          %v917 = vld [vmem:[#allocation3 + $0x8] sm:$0xff]
          %v918 = vld [vmem:[#allocation3 + $0x10] sm:$0xff]
          %v919 = vld [vmem:[#allocation3 + $0x18] sm:$0xff]
          %v920 = vld [vmem:[#allocation3 + $0x20] sm:$0xff]
          %v921 = vld [vmem:[#allocation3 + $0x28] sm:$0xff]
          %v922 = vld [vmem:[#allocation3 + $0x30] sm:$0xff]
          %v923 = vld [vmem:[#allocation3 + $0x38] sm:$0xff]
          %v924 = vld [vmem:[#allocation3 + $0x40] sm:$0xff]
          %v925 = vld [vmem:[#allocation3 + $0x48] sm:$0xff]
          %v926 = vld [vmem:[#allocation3 + $0x50] sm:$0xff]
          %v927 = vld [vmem:[#allocation3 + $0x58] sm:$0xff]
          %v928 = vld [vmem:[#allocation3 + $0x60] sm:$0xff]
          %v929 = vld [vmem:[#allocation3 + $0x68] sm:$0xff]
          %v930 = vld [vmem:[#allocation3 + $0x70] sm:$0xff]
          %v931 = vld [vmem:[#allocation3 + $0x78] sm:$0xff]
          %v932 = vld [vmem:[#allocation3 + $0x80] sm:$0xff]
          %v933 = vld [vmem:[#allocation3 + $0x88] sm:$0xff]
          %v934 = vld [vmem:[#allocation3 + $0x90] sm:$0xff]
          %v935 = vld [vmem:[#allocation3 + $0x98] sm:$0xff]
          %v936 = vld [vmem:[#allocation3 + $0xa0] sm:$0xff]
          %v937 = vld [vmem:[#allocation3 + $0xa8] sm:$0xff]
          %v938 = vld [vmem:[#allocation3 + $0xb0] sm:$0xff]
          %v939 = vld [vmem:[#allocation3 + $0xb8] sm:$0xff]
          %v940 = vld [vmem:[#allocation3 + $0xc0] sm:$0xff]
          %v941 = vld [vmem:[#allocation3 + $0xc8] sm:$0xff]
          %v942 = vld [vmem:[#allocation3 + $0xd0] sm:$0xff]
          %v943 = vld [vmem:[#allocation3 + $0xd8] sm:$0xff]
          %v944 = vld [vmem:[#allocation3 + $0xe0] sm:$0xff]
          %v945 = vld [vmem:[#allocation3 + $0xe8] sm:$0xff]
          %v946 = vld [vmem:[#allocation3 + $0xf0] sm:$0xff]
          %v947 = vld [vmem:[#allocation3 + $0xf8] sm:$0xff]
          %v948 = vld [vmem:[#allocation3 + $0x100] sm:$0xff]
          %v949 = vld [vmem:[#allocation3 + $0x108] sm:$0xff]
          %v950 = vld [vmem:[#allocation3 + $0x110] sm:$0xff]
          %v951 = vld [vmem:[#allocation3 + $0x118] sm:$0xff]
          %v952 = vrot.slane %v916, 7
          %v953 = vrot.slane %v917, 7
          %v954 = vrot.slane %v918, 7
          %v955 = vrot.slane %v919, 7
          %v956 = vrot.slane %v920, 7
          %v957 = vrot.slane %v921, 7
          %v958 = vrot.slane %v922, 7
          %v959 = vrot.slane %v923, 7
          %v960 = vrot.slane %v924, 7
          %v961 = vrot.slane %v925, 7
          %v962 = vrot.slane %v926, 7
          %v963 = vrot.slane %v927, 7
          %v964 = vrot.slane %v928, 7
          %v965 = vrot.slane %v929, 7
          %v966 = vrot.slane %v930, 7
          %v967 = vrot.slane %v931, 7
          %v968 = vrot.slane %v932, 7
          %v969 = vrot.slane %v933, 7
          %v970 = vrot.slane %v934, 7
          %v971 = vrot.slane %v935, 7
          %v972 = vrot.slane %v936, 7
          %v973 = vrot.slane %v937, 7
          %v974 = vrot.slane %v938, 7
          %v975 = vrot.slane %v939, 7
          %v976 = vrot.slane %v940, 7
          %v977 = vrot.slane %v941, 7
          %v978 = vrot.slane %v942, 7
          %v979 = vrot.slane %v943, 7
          %v980 = vrot.slane %v944, 7
          %v981 = vrot.slane %v945, 7
          %v982 = vrot.slane %v946, 7
          %v983 = vrot.slane %v947, 7
          %v984 = vrot.slane %v948, 7
          %v985 = vrot.slane %v949, 7
          %v986 = vrot.slane %v950, 7
          %v987 = vrot.slane %v951, 7
          %v988 = vlaneseq
          %v989 = vshrl.u32 %v988, 7
          %vm990 = vcmp.lt.s32.totalorder %v989, 1
          %v991 = vsel %vm990, %v986, %v987
          %v992 = vsel %vm990, %v985, %v986
          %v993 = vsel %vm990, %v984, %v985
          %v994 = vsel %vm990, %v983, %v984
          %v995 = vsel %vm990, %v982, %v983
          %v996 = vsel %vm990, %v981, %v982
          %v997 = vsel %vm990, %v980, %v981
          %v998 = vsel %vm990, %v979, %v980
          %v999 = vsel %vm990, %v978, %v979
          %v1000 = vsel %vm990, %v977, %v978
          %v1001 = vsel %vm990, %v976, %v977
          %v1002 = vsel %vm990, %v975, %v976
          %v1003 = vsel %vm990, %v974, %v975
          %v1004 = vsel %vm990, %v973, %v974
          %v1005 = vsel %vm990, %v972, %v973
          %v1006 = vsel %vm990, %v971, %v972
          %v1007 = vsel %vm990, %v970, %v971
          %v1008 = vsel %vm990, %v969, %v970
          %v1009 = vsel %vm990, %v968, %v969
          %v1010 = vsel %vm990, %v967, %v968
          %v1011 = vsel %vm990, %v966, %v967
          %v1012 = vsel %vm990, %v965, %v966
          %v1013 = vsel %vm990, %v964, %v965
          %v1014 = vsel %vm990, %v963, %v964
          %v1015 = vsel %vm990, %v962, %v963
          %v1016 = vsel %vm990, %v961, %v962
          %v1017 = vsel %vm990, %v960, %v961
          %v1018 = vsel %vm990, %v959, %v960
          %v1019 = vsel %vm990, %v958, %v959
          %v1020 = vsel %vm990, %v957, %v958
          %v1021 = vsel %vm990, %v956, %v957
          %v1022 = vsel %vm990, %v955, %v956
          %v1023 = vsel %vm990, %v954, %v955
          %v1024 = vsel %vm990, %v953, %v954
          %v1025 = vsel %vm990, %v952, %v953
          %v1026 = vsel %vm990, %v987, %v952
          %1028 = vset.pattern.permute.xlu0 0
          %1029 = vperm.xlu0 %1028, %v762
          %v1030 = vpop.permute.xlu0 %1029
          %1033 = vset.pattern.permute.xlu0 0
          %1034 = vperm.xlu0 %1033, %v763
          %v1035 = vpop.permute.xlu0 %1034
          %1038 = vset.pattern.permute.xlu0 0
          %1039 = vperm.xlu0 %1038, %v764
          %v1040 = vpop.permute.xlu0 %1039
          %1043 = vset.pattern.permute.xlu0 0
          %1044 = vperm.xlu0 %1043, %v765
          %v1045 = vpop.permute.xlu0 %1044
          %1048 = vset.pattern.permute.xlu0 0
          %1049 = vperm.xlu0 %1048, %v766
          %v1050 = vpop.permute.xlu0 %1049
          %1053 = vset.pattern.permute.xlu0 0
          %1054 = vperm.xlu0 %1053, %v767
          %v1055 = vpop.permute.xlu0 %1054
          %1058 = vset.pattern.permute.xlu0 0
          %1059 = vperm.xlu0 %1058, %v768
          %v1060 = vpop.permute.xlu0 %1059
          %1063 = vset.pattern.permute.xlu0 0
          %1064 = vperm.xlu0 %1063, %v769
          %v1065 = vpop.permute.xlu0 %1064
          %1068 = vset.pattern.permute.xlu0 0
          %1069 = vperm.xlu0 %1068, %v770
          %v1070 = vpop.permute.xlu0 %1069
          %1073 = vset.pattern.permute.xlu0 0
          %1074 = vperm.xlu0 %1073, %v771
          %v1075 = vpop.permute.xlu0 %1074
          %1078 = vset.pattern.permute.xlu0 0
          %1079 = vperm.xlu0 %1078, %v772
          %v1080 = vpop.permute.xlu0 %1079
          %1083 = vset.pattern.permute.xlu0 0
          %1084 = vperm.xlu0 %1083, %v773
          %v1085 = vpop.permute.xlu0 %1084
          %1088 = vset.pattern.permute.xlu0 0
          %1089 = vperm.xlu0 %1088, %v774
          %v1090 = vpop.permute.xlu0 %1089
          %1093 = vset.pattern.permute.xlu0 0
          %1094 = vperm.xlu0 %1093, %v775
          %v1095 = vpop.permute.xlu0 %1094
          %1098 = vset.pattern.permute.xlu0 0
          %1099 = vperm.xlu0 %1098, %v776
          %v1100 = vpop.permute.xlu0 %1099
          %1103 = vset.pattern.permute.xlu0 0
          %1104 = vperm.xlu0 %1103, %v777
          %v1105 = vpop.permute.xlu0 %1104
          %1108 = vset.pattern.permute.xlu0 0
          %1109 = vperm.xlu0 %1108, %v778
          %v1110 = vpop.permute.xlu0 %1109
          %1113 = vset.pattern.permute.xlu0 0
          %1114 = vperm.xlu0 %1113, %v779
          %v1115 = vpop.permute.xlu0 %1114
          %1118 = vset.pattern.permute.xlu0 0
          %1119 = vperm.xlu0 %1118, %v780
          %v1120 = vpop.permute.xlu0 %1119
          %1123 = vset.pattern.permute.xlu0 0
          %1124 = vperm.xlu0 %1123, %v781
          %v1125 = vpop.permute.xlu0 %1124
          %1128 = vset.pattern.permute.xlu0 0
          %1129 = vperm.xlu0 %1128, %v782
          %v1130 = vpop.permute.xlu0 %1129
          %1133 = vset.pattern.permute.xlu0 0
          %1134 = vperm.xlu0 %1133, %v783
          %v1135 = vpop.permute.xlu0 %1134
          %1138 = vset.pattern.permute.xlu0 0
          %1139 = vperm.xlu0 %1138, %v784
          %v1140 = vpop.permute.xlu0 %1139
          %1143 = vset.pattern.permute.xlu0 0
          %1144 = vperm.xlu0 %1143, %v785
          %v1145 = vpop.permute.xlu0 %1144
          %1148 = vset.pattern.permute.xlu0 0
          %1149 = vperm.xlu0 %1148, %v786
          %v1150 = vpop.permute.xlu0 %1149
          %1153 = vset.pattern.permute.xlu0 0
          %1154 = vperm.xlu0 %1153, %v787
          %v1155 = vpop.permute.xlu0 %1154
          %1158 = vset.pattern.permute.xlu0 0
          %1159 = vperm.xlu0 %1158, %v788
          %v1160 = vpop.permute.xlu0 %1159
          %1163 = vset.pattern.permute.xlu0 0
          %1164 = vperm.xlu0 %1163, %v789
          %v1165 = vpop.permute.xlu0 %1164
          %1168 = vset.pattern.permute.xlu0 0
          %1169 = vperm.xlu0 %1168, %v790
          %v1170 = vpop.permute.xlu0 %1169
          %1173 = vset.pattern.permute.xlu0 0
          %1174 = vperm.xlu0 %1173, %v791
          %v1175 = vpop.permute.xlu0 %1174
          %1178 = vset.pattern.permute.xlu0 0
          %1179 = vperm.xlu0 %1178, %v792
          %v1180 = vpop.permute.xlu0 %1179
          %1183 = vset.pattern.permute.xlu0 0
          %1184 = vperm.xlu0 %1183, %v793
          %v1185 = vpop.permute.xlu0 %1184
          %1188 = vset.pattern.permute.xlu0 0
          %1189 = vperm.xlu0 %1188, %v794
          %v1190 = vpop.permute.xlu0 %1189
          %1193 = vset.pattern.permute.xlu0 0
          %1194 = vperm.xlu0 %1193, %v795
          %v1195 = vpop.permute.xlu0 %1194
          %1198 = vset.pattern.permute.xlu0 0
          %1199 = vperm.xlu0 %1198, %v796
          %v1200 = vpop.permute.xlu0 %1199
          %1203 = vset.pattern.permute.xlu0 0
          %1204 = vperm.xlu0 %1203, %v797
          %v1205 = vpop.permute.xlu0 %1204
          %v1207 = vmul.f32 %v1026, %v1030
          %v1208 = vmul.f32 %v1025, %v1035
          %v1209 = vmul.f32 %v1024, %v1040
          %v1210 = vmul.f32 %v1023, %v1045
          %v1211 = vmul.f32 %v1022, %v1050
          %v1212 = vmul.f32 %v1021, %v1055
          %v1213 = vmul.f32 %v1020, %v1060
          %v1214 = vmul.f32 %v1019, %v1065
          %v1215 = vmul.f32 %v1018, %v1070
          %v1216 = vmul.f32 %v1017, %v1075
          %v1217 = vmul.f32 %v1016, %v1080
          %v1218 = vmul.f32 %v1015, %v1085
          %v1219 = vmul.f32 %v1014, %v1090
          %v1220 = vmul.f32 %v1013, %v1095
          %v1221 = vmul.f32 %v1012, %v1100
          %v1222 = vmul.f32 %v1011, %v1105
          %v1223 = vmul.f32 %v1010, %v1110
          %v1224 = vmul.f32 %v1009, %v1115
          %v1225 = vmul.f32 %v1008, %v1120
          %v1226 = vmul.f32 %v1007, %v1125
          %v1227 = vmul.f32 %v1006, %v1130
          %v1228 = vmul.f32 %v1005, %v1135
          %v1229 = vmul.f32 %v1004, %v1140
          %v1230 = vmul.f32 %v1003, %v1145
          %v1231 = vmul.f32 %v1002, %v1150
          %v1232 = vmul.f32 %v1001, %v1155
          %v1233 = vmul.f32 %v1000, %v1160
          %v1234 = vmul.f32 %v999, %v1165
          %v1235 = vmul.f32 %v998, %v1170
          %v1236 = vmul.f32 %v997, %v1175
          %v1237 = vmul.f32 %v996, %v1180
          %v1238 = vmul.f32 %v995, %v1185
          %v1239 = vmul.f32 %v994, %v1190
          %v1240 = vmul.f32 %v993, %v1195
          %v1241 = vmul.f32 %v992, %v1200
          %v1242 = vmul.f32 %v991, %v1205
          %v1243 = vrot.slane %v916, 1
          %v1244 = vrot.slane %v917, 1
          %v1245 = vrot.slane %v918, 1
          %v1246 = vrot.slane %v919, 1
          %v1247 = vrot.slane %v920, 1
          %v1248 = vrot.slane %v921, 1
          %v1249 = vrot.slane %v922, 1
          %v1250 = vrot.slane %v923, 1
          %v1251 = vrot.slane %v924, 1
          %v1252 = vrot.slane %v925, 1
          %v1253 = vrot.slane %v926, 1
          %v1254 = vrot.slane %v927, 1
          %v1255 = vrot.slane %v928, 1
          %v1256 = vrot.slane %v929, 1
          %v1257 = vrot.slane %v930, 1
          %v1258 = vrot.slane %v931, 1
          %v1259 = vrot.slane %v932, 1
          %v1260 = vrot.slane %v933, 1
          %v1261 = vrot.slane %v934, 1
          %v1262 = vrot.slane %v935, 1
          %v1263 = vrot.slane %v936, 1
          %v1264 = vrot.slane %v937, 1
          %v1265 = vrot.slane %v938, 1
          %v1266 = vrot.slane %v939, 1
          %v1267 = vrot.slane %v940, 1
          %v1268 = vrot.slane %v941, 1
          %v1269 = vrot.slane %v942, 1
          %v1270 = vrot.slane %v943, 1
          %v1271 = vrot.slane %v944, 1
          %v1272 = vrot.slane %v945, 1
          %v1273 = vrot.slane %v946, 1
          %v1274 = vrot.slane %v947, 1
          %v1275 = vrot.slane %v948, 1
          %v1276 = vrot.slane %v949, 1
          %v1277 = vrot.slane %v950, 1
          %v1278 = vrot.slane %v951, 1
          %vm1279 = vcmp.lt.s32.totalorder %v989, 7
          %v1280 = vsel %vm1279, %v1277, %v1278
          %v1281 = vsel %vm1279, %v1276, %v1277
          %v1282 = vsel %vm1279, %v1275, %v1276
          %v1283 = vsel %vm1279, %v1274, %v1275
          %v1284 = vsel %vm1279, %v1273, %v1274
          %v1285 = vsel %vm1279, %v1272, %v1273
          %v1286 = vsel %vm1279, %v1271, %v1272
          %v1287 = vsel %vm1279, %v1270, %v1271
          %v1288 = vsel %vm1279, %v1269, %v1270
          %v1289 = vsel %vm1279, %v1268, %v1269
          %v1290 = vsel %vm1279, %v1267, %v1268
          %v1291 = vsel %vm1279, %v1266, %v1267
          %v1292 = vsel %vm1279, %v1265, %v1266
          %v1293 = vsel %vm1279, %v1264, %v1265
          %v1294 = vsel %vm1279, %v1263, %v1264
          %v1295 = vsel %vm1279, %v1262, %v1263
          %v1296 = vsel %vm1279, %v1261, %v1262
          %v1297 = vsel %vm1279, %v1260, %v1261
          %v1298 = vsel %vm1279, %v1259, %v1260
          %v1299 = vsel %vm1279, %v1258, %v1259
          %v1300 = vsel %vm1279, %v1257, %v1258
          %v1301 = vsel %vm1279, %v1256, %v1257
          %v1302 = vsel %vm1279, %v1255, %v1256
          %v1303 = vsel %vm1279, %v1254, %v1255
          %v1304 = vsel %vm1279, %v1253, %v1254
          %v1305 = vsel %vm1279, %v1252, %v1253
          %v1306 = vsel %vm1279, %v1251, %v1252
          %v1307 = vsel %vm1279, %v1250, %v1251
          %v1308 = vsel %vm1279, %v1249, %v1250
          %v1309 = vsel %vm1279, %v1248, %v1249
          %v1310 = vsel %vm1279, %v1247, %v1248
          %v1311 = vsel %vm1279, %v1246, %v1247
          %v1312 = vsel %vm1279, %v1245, %v1246
          %v1313 = vsel %vm1279, %v1244, %v1245
          %v1314 = vsel %vm1279, %v1243, %v1244
          %v1315 = vsel %vm1279, %v1278, %v1243
          %1317 = vset.pattern.permute.xlu0 0
          %1318 = vperm.xlu0 %1317, %v798
          %v1319 = vpop.permute.xlu0 %1318
          %1322 = vset.pattern.permute.xlu0 0
          %1323 = vperm.xlu0 %1322, %v799
          %v1324 = vpop.permute.xlu0 %1323
          %1327 = vset.pattern.permute.xlu0 0
          %1328 = vperm.xlu0 %1327, %v800
          %v1329 = vpop.permute.xlu0 %1328
          %1332 = vset.pattern.permute.xlu0 0
          %1333 = vperm.xlu0 %1332, %v801
          %v1334 = vpop.permute.xlu0 %1333
          %1337 = vset.pattern.permute.xlu0 0
          %1338 = vperm.xlu0 %1337, %v802
          %v1339 = vpop.permute.xlu0 %1338
          %1342 = vset.pattern.permute.xlu0 0
          %1343 = vperm.xlu0 %1342, %v803
          %v1344 = vpop.permute.xlu0 %1343
          %1347 = vset.pattern.permute.xlu0 0
          %1348 = vperm.xlu0 %1347, %v804
          %v1349 = vpop.permute.xlu0 %1348
          %1352 = vset.pattern.permute.xlu0 0
          %1353 = vperm.xlu0 %1352, %v805
          %v1354 = vpop.permute.xlu0 %1353
          %1357 = vset.pattern.permute.xlu0 0
          %1358 = vperm.xlu0 %1357, %v806
          %v1359 = vpop.permute.xlu0 %1358
          %1362 = vset.pattern.permute.xlu0 0
          %1363 = vperm.xlu0 %1362, %v807
          %v1364 = vpop.permute.xlu0 %1363
          %1367 = vset.pattern.permute.xlu0 0
          %1368 = vperm.xlu0 %1367, %v808
          %v1369 = vpop.permute.xlu0 %1368
          %1372 = vset.pattern.permute.xlu0 0
          %1373 = vperm.xlu0 %1372, %v809
          %v1374 = vpop.permute.xlu0 %1373
          %1377 = vset.pattern.permute.xlu0 0
          %1378 = vperm.xlu0 %1377, %v810
          %v1379 = vpop.permute.xlu0 %1378
          %1382 = vset.pattern.permute.xlu0 0
          %1383 = vperm.xlu0 %1382, %v811
          %v1384 = vpop.permute.xlu0 %1383
          %1387 = vset.pattern.permute.xlu0 0
          %1388 = vperm.xlu0 %1387, %v812
          %v1389 = vpop.permute.xlu0 %1388
          %1392 = vset.pattern.permute.xlu0 0
          %1393 = vperm.xlu0 %1392, %v813
          %v1394 = vpop.permute.xlu0 %1393
          %1397 = vset.pattern.permute.xlu0 0
          %1398 = vperm.xlu0 %1397, %v814
          %v1399 = vpop.permute.xlu0 %1398
          %1402 = vset.pattern.permute.xlu0 0
          %1403 = vperm.xlu0 %1402, %v815
          %v1404 = vpop.permute.xlu0 %1403
          %1407 = vset.pattern.permute.xlu0 0
          %1408 = vperm.xlu0 %1407, %v816
          %v1409 = vpop.permute.xlu0 %1408
          %1412 = vset.pattern.permute.xlu0 0
          %1413 = vperm.xlu0 %1412, %v817
          %v1414 = vpop.permute.xlu0 %1413
          %1417 = vset.pattern.permute.xlu0 0
          %1418 = vperm.xlu0 %1417, %v818
          %v1419 = vpop.permute.xlu0 %1418
          %1422 = vset.pattern.permute.xlu0 0
          %1423 = vperm.xlu0 %1422, %v819
          %v1424 = vpop.permute.xlu0 %1423
          %1427 = vset.pattern.permute.xlu0 0
          %1428 = vperm.xlu0 %1427, %v820
          %v1429 = vpop.permute.xlu0 %1428
          %1432 = vset.pattern.permute.xlu0 0
          %1433 = vperm.xlu0 %1432, %v821
          %v1434 = vpop.permute.xlu0 %1433
          %1437 = vset.pattern.permute.xlu0 0
          %1438 = vperm.xlu0 %1437, %v822
          %v1439 = vpop.permute.xlu0 %1438
          %1442 = vset.pattern.permute.xlu0 0
          %1443 = vperm.xlu0 %1442, %v823
          %v1444 = vpop.permute.xlu0 %1443
          %1447 = vset.pattern.permute.xlu0 0
          %1448 = vperm.xlu0 %1447, %v824
          %v1449 = vpop.permute.xlu0 %1448
          %1452 = vset.pattern.permute.xlu0 0
          %1453 = vperm.xlu0 %1452, %v825
          %v1454 = vpop.permute.xlu0 %1453
          %1457 = vset.pattern.permute.xlu0 0
          %1458 = vperm.xlu0 %1457, %v826
          %v1459 = vpop.permute.xlu0 %1458
          %1462 = vset.pattern.permute.xlu0 0
          %1463 = vperm.xlu0 %1462, %v827
          %v1464 = vpop.permute.xlu0 %1463
          %1467 = vset.pattern.permute.xlu0 0
          %1468 = vperm.xlu0 %1467, %v828
          %v1469 = vpop.permute.xlu0 %1468
          %1472 = vset.pattern.permute.xlu0 0
          %1473 = vperm.xlu0 %1472, %v829
          %v1474 = vpop.permute.xlu0 %1473
          %1477 = vset.pattern.permute.xlu0 0
          %1478 = vperm.xlu0 %1477, %v830
          %v1479 = vpop.permute.xlu0 %1478
          %1482 = vset.pattern.permute.xlu0 0
          %1483 = vperm.xlu0 %1482, %v831
          %v1484 = vpop.permute.xlu0 %1483
          %1487 = vset.pattern.permute.xlu0 0
          %1488 = vperm.xlu0 %1487, %v832
          %v1489 = vpop.permute.xlu0 %1488
          %1492 = vset.pattern.permute.xlu0 0
          %1493 = vperm.xlu0 %1492, %v833
          %v1494 = vpop.permute.xlu0 %1493
          %v1496 = vmul.f32 %v1314, %v1319
          %v1497 = vmul.f32 %v1313, %v1324
          %v1498 = vmul.f32 %v1312, %v1329
          %v1499 = vmul.f32 %v1311, %v1334
          %v1500 = vmul.f32 %v1310, %v1339
          %v1501 = vmul.f32 %v1309, %v1344
          %v1502 = vmul.f32 %v1308, %v1349
          %v1503 = vmul.f32 %v1307, %v1354
          %v1504 = vmul.f32 %v1306, %v1359
          %v1505 = vmul.f32 %v1305, %v1364
          %v1506 = vmul.f32 %v1304, %v1369
          %v1507 = vmul.f32 %v1303, %v1374
          %v1508 = vmul.f32 %v1302, %v1379
          %v1509 = vmul.f32 %v1301, %v1384
          %v1510 = vmul.f32 %v1300, %v1389
          %v1511 = vmul.f32 %v1299, %v1394
          %v1512 = vmul.f32 %v1298, %v1399
          %v1513 = vmul.f32 %v1297, %v1404
          %v1514 = vmul.f32 %v1296, %v1409
          %v1515 = vmul.f32 %v1295, %v1414
          %v1516 = vmul.f32 %v1294, %v1419
          %v1517 = vmul.f32 %v1293, %v1424
          %v1518 = vmul.f32 %v1292, %v1429
          %v1519 = vmul.f32 %v1291, %v1434
          %v1520 = vmul.f32 %v1290, %v1439
          %v1521 = vmul.f32 %v1289, %v1444
          %v1522 = vmul.f32 %v1288, %v1449
          %v1523 = vmul.f32 %v1287, %v1454
          %v1524 = vmul.f32 %v1286, %v1459
          %v1525 = vmul.f32 %v1285, %v1464
          %v1526 = vmul.f32 %v1284, %v1469
          %v1527 = vmul.f32 %v1283, %v1474
          %v1528 = vmul.f32 %v1282, %v1479
          %v1529 = vmul.f32 %v1281, %v1484
          %v1530 = vmul.f32 %v1280, %v1489
          %v1531 = vmul.f32 %v1315, %v1494
          %v1532 = vld [vmem:[%s6] sm:$0xff]
          %v1533 = vld [vmem:[%s6 + $0x8] sm:$0xf]
          %s1534 = scalar_lea.vmem %s6, 12
          %v1535 = vld [vmem:[%s1534] sm:$0xff]
          %v1536 = vld [vmem:[%s1534 + $0x8] sm:$0xf]
          %v1539 = vcombine.high %v1535, %v1535
          %v1541 = vsel %vm879, %v916, 0
          %v1544 = vsel %vm879, %v917, 0
          %v1547 = vsel %vm879, %v918, 0
          %v1550 = vsel %vm879, %v919, 0
          %v1553 = vsel %vm879, %v920, 0
          %v1556 = vsel %vm879, %v921, 0
          %v1559 = vsel %vm879, %v922, 0
          %v1562 = vsel %vm879, %v923, 0
          %v1565 = vsel %vm879, %v924, 0
          %v1568 = vsel %vm879, %v925, 0
          %v1571 = vsel %vm879, %v926, 0
          %v1574 = vsel %vm879, %v927, 0
          %v1577 = vsel %vm879, %v928, 0
          %v1580 = vsel %vm879, %v929, 0
          %v1583 = vsel %vm879, %v930, 0
          %v1586 = vsel %vm879, %v931, 0
          %v1589 = vsel %vm879, %v932, 0
          %v1592 = vsel %vm879, %v933, 0
          %v1595 = vsel %vm879, %v934, 0
          %v1598 = vsel %vm879, %v935, 0
          %v1601 = vsel %vm879, %v936, 0
          %v1604 = vsel %vm879, %v937, 0
          %v1607 = vsel %vm879, %v938, 0
          %v1610 = vsel %vm879, %v939, 0
          %v1613 = vsel %vm879, %v940, 0
          %v1616 = vsel %vm879, %v941, 0
          %v1619 = vsel %vm879, %v942, 0
          %v1622 = vsel %vm879, %v943, 0
          %v1625 = vsel %vm879, %v944, 0
          %v1628 = vsel %vm879, %v945, 0
          %v1631 = vsel %vm879, %v946, 0
          %v1634 = vsel %vm879, %v947, 0
          %v1637 = vsel %vm879, %v948, 0
          %v1640 = vsel %vm879, %v949, 0
          %v1643 = vsel %vm879, %v950, 0
          %v1646 = vsel %vm879, %v951, 0
          %vm1648 = vcmask 1043456
          %v1649 = vsel %vm1648, %v1535, 0
          %v1651 = vsel %vm1648, %v1539, 0
          %v1653 = vsel %vm1648, %v1536, 0
          %1655 = vmatprep.subr.mxu0 0.0
          %1656 = vmatpush1.msra.mxu0 0.0
          %1657 = vmatprep.subr.mxu0 0.0
          %1658 = vmatpush1.msra.mxu0 0.0
          %1659 = vmatprep.subr.mxu0 0.0
          %1660 = vmatpush1.msra.mxu0 0.0
          %1661 = vmatprep.subr.mxu0 0.0
          %1662 = vmatpush1.msra.mxu0 0.0
          %1663 = vmatprep.subr.mxu0 0.0
          %1664 = vmatpush1.msra.mxu0 0.0
          %1665 = vmatprep.subr.mxu0 0.0
          %1666 = vmatpush1.msra.mxu0 0.0
          %1667 = vmatprep.subr.mxu0 0.0
          %1668 = vmatpush1.msra.mxu0 0.0
          %1669 = vmatprep.subr.mxu0 0.0
          %1670 = vmatpush1.msra.mxu0 0.0
          %1671 = vmatprep.subr.mxu0 0.0
          %1672 = vmatpush1.msra.mxu0 0.0
          %1673 = vmatprep.subr.mxu0 0.0
          %1674 = vmatpush1.msra.mxu0 0.0
          %1675 = vmatprep.subr.mxu0 0.0
          %1676 = vmatpush1.msra.mxu0 0.0
          %1677 = vmatprep.subr.mxu0 0.0
          %1678 = vmatpush1.msra.mxu0 0.0
          %1679 = vmatprep.subr.mxu0 0.0
          %1680 = vmatpush1.msra.mxu0 0.0
          %1681 = vmatprep.subr.mxu0 0.0
          %1682 = vmatpush1.msra.mxu0 0.0
          %1683 = vmatprep.subr.mxu0 0.0
          %1684 = vmatpush1.msra.mxu0 0.0
          %1685 = vmatprep.subr.mxu0 %v1651
          %1686 = vmatpush1.msra.mxu0 %v1649
          %1687 = vmatprep.subr.mxu0 0.0
          %1688 = vmatpush2.msra.mxu0 0.0
          %1689 = vmatprep.subr.mxu0 0.0
          %1690 = vmatpush2.msra.mxu0 0.0
          %1691 = vmatprep.subr.mxu0 0.0
          %1692 = vmatpush2.msra.mxu0 0.0
          %1693 = vmatprep.subr.mxu0 0.0
          %1694 = vmatpush2.msra.mxu0 0.0
          %1695 = vmatprep.subr.mxu0 0.0
          %1696 = vmatpush2.msra.mxu0 0.0
          %1697 = vmatprep.subr.mxu0 0.0
          %1698 = vmatpush2.msra.mxu0 0.0
          %1699 = vmatprep.subr.mxu0 0.0
          %1700 = vmatpush2.msra.mxu0 0.0
          %1701 = vmatprep.subr.mxu0 0.0
          %1702 = vmatpush2.msra.mxu0 0.0
          %1703 = vmatprep.subr.mxu0 0.0
          %1704 = vmatpush2.msra.mxu0 0.0
          %1705 = vmatprep.subr.mxu0 0.0
          %1706 = vmatpush2.msra.mxu0 0.0
          %1707 = vmatprep.subr.mxu0 0.0
          %1708 = vmatpush2.msra.mxu0 0.0
          %1709 = vmatprep.subr.mxu0 0.0
          %1710 = vmatpush2.msra.mxu0 0.0
          %1711 = vmatprep.subr.mxu0 0.0
          %1712 = vmatpush2.msra.mxu0 0.0
          %1713 = vmatprep.subr.mxu0 0.0
          %1714 = vmatpush2.msra.mxu0 0.0
          %1715 = vmatprep.subr.mxu0 0.0
          %1716 = vmatpush2.msra.mxu0 0.0
          %1717 = vmatprep.subr.mxu0 0.0
          %1718 = vmatpush2.msra.mxu0 0.0
          %1719 = vmatprep.mubr.f32.mxu0 0.0
          %1720 = vmatmul.mubr.f32.gmra.mxu0 %v1541
          %v1721 = vpop.f32.mrf.mxu0
          %v1722 = vadd.f32 0.0, %v1721
          %v1723 = vpop.f32.mrf.mxu0
          %1724 = vmatprep.mubr.f32.mxu0 0.0
          %1725 = vmatmul.mubr.f32.gmra.mxu0 %v1544
          %v1726 = vpop.f32.mrf.mxu0
          %v1727 = vadd.f32 0.0, %v1726
          %v1728 = vpop.f32.mrf.mxu0
          %1729 = vmatprep.mubr.f32.mxu0 0.0
          %1730 = vmatmul.mubr.f32.gmra.mxu0 %v1547
          %v1731 = vpop.f32.mrf.mxu0
          %v1732 = vadd.f32 0.0, %v1731
          %v1733 = vpop.f32.mrf.mxu0
          %v1734 = vadd.f32 0.0, %v1733
          %1735 = vmatprep.mubr.f32.mxu0 0.0
          %1736 = vmatmul.mubr.f32.gmra.mxu0 %v1550
          %v1737 = vpop.f32.mrf.mxu0
          %v1738 = vadd.f32 0.0, %v1737
          %v1739 = vpop.f32.mrf.mxu0
          %v1740 = vadd.f32 0.0, %v1739
          %1741 = vmatprep.mubr.f32.mxu0 0.0
          %1742 = vmatmul.mubr.f32.gmra.mxu0 %v1553
          %v1743 = vpop.f32.mrf.mxu0
          %v1744 = vadd.f32 0.0, %v1743
          %v1745 = vpop.f32.mrf.mxu0
          %v1746 = vadd.f32 0.0, %v1745
          %1747 = vmatprep.mubr.f32.mxu0 0.0
          %1748 = vmatmul.mubr.f32.gmra.mxu0 %v1556
          %v1749 = vpop.f32.mrf.mxu0
          %v1750 = vadd.f32 0.0, %v1749
          %v1751 = vpop.f32.mrf.mxu0
          %v1752 = vadd.f32 0.0, %v1751
          %1753 = vmatprep.mubr.f32.mxu0 0.0
          %1754 = vmatmul.mubr.f32.gmra.mxu0 %v1559
          %v1755 = vpop.f32.mrf.mxu0
          %v1756 = vadd.f32 0.0, %v1755
          %v1757 = vpop.f32.mrf.mxu0
          %v1758 = vadd.f32 0.0, %v1757
          %1759 = vmatprep.mubr.f32.mxu0 0.0
          %1760 = vmatmul.mubr.f32.gmra.mxu0 %v1562
          %v1761 = vpop.f32.mrf.mxu0
          %v1762 = vadd.f32 0.0, %v1761
          %v1763 = vpop.f32.mrf.mxu0
          %v1764 = vadd.f32 0.0, %v1763
          %1765 = vmatprep.mubr.f32.mxu0 0.0
          %1766 = vmatmul.mubr.f32.gmra.mxu0 %v1565
          %v1767 = vpop.f32.mrf.mxu0
          %v1768 = vadd.f32 0.0, %v1767
          %v1769 = vpop.f32.mrf.mxu0
          %v1770 = vadd.f32 0.0, %v1769
          %1771 = vmatprep.mubr.f32.mxu0 0.0
          %1772 = vmatmul.mubr.f32.gmra.mxu0 %v1568
          %v1773 = vpop.f32.mrf.mxu0
          %v1774 = vadd.f32 0.0, %v1773
          %v1775 = vpop.f32.mrf.mxu0
          %v1776 = vadd.f32 0.0, %v1775
          %1777 = vmatprep.mubr.f32.mxu0 0.0
          %1778 = vmatmul.mubr.f32.gmra.mxu0 %v1571
          %v1779 = vpop.f32.mrf.mxu0
          %v1780 = vadd.f32 0.0, %v1779
          %v1781 = vpop.f32.mrf.mxu0
          %v1782 = vadd.f32 0.0, %v1781
          %1783 = vmatprep.mubr.f32.mxu0 0.0
          %1784 = vmatmul.mubr.f32.gmra.mxu0 %v1574
          %v1785 = vpop.f32.mrf.mxu0
          %v1786 = vadd.f32 0.0, %v1785
          %v1787 = vpop.f32.mrf.mxu0
          %v1788 = vadd.f32 0.0, %v1787
          %1789 = vmatprep.mubr.f32.mxu0 0.0
          %1790 = vmatmul.mubr.f32.gmra.mxu0 %v1577
          %v1791 = vpop.f32.mrf.mxu0
          %v1792 = vadd.f32 0.0, %v1791
          %v1793 = vpop.f32.mrf.mxu0
          %v1794 = vadd.f32 0.0, %v1793
          %1795 = vmatprep.mubr.f32.mxu0 0.0
          %1796 = vmatmul.mubr.f32.gmra.mxu0 %v1580
          %v1797 = vpop.f32.mrf.mxu0
          %v1798 = vadd.f32 0.0, %v1797
          %v1799 = vpop.f32.mrf.mxu0
          %v1800 = vadd.f32 0.0, %v1799
          %1801 = vmatprep.mubr.f32.mxu0 0.0
          %1802 = vmatmul.mubr.f32.gmra.mxu0 %v1583
          %v1803 = vpop.f32.mrf.mxu0
          %v1804 = vadd.f32 0.0, %v1803
          %v1805 = vpop.f32.mrf.mxu0
          %v1806 = vadd.f32 0.0, %v1805
          %1807 = vmatprep.mubr.f32.mxu0 0.0
          %1808 = vmatmul.mubr.f32.gmra.mxu0 %v1586
          %v1809 = vpop.f32.mrf.mxu0
          %v1810 = vadd.f32 0.0, %v1809
          %v1811 = vpop.f32.mrf.mxu0
          %v1812 = vadd.f32 0.0, %v1811
          %1813 = vmatprep.mubr.f32.mxu0 0.0
          %1814 = vmatmul.mubr.f32.gmra.mxu0 %v1589
          %v1815 = vpop.f32.mrf.mxu0
          %v1816 = vadd.f32 0.0, %v1815
          %v1817 = vpop.f32.mrf.mxu0
          %v1818 = vadd.f32 0.0, %v1817
          %1819 = vmatprep.mubr.f32.mxu0 0.0
          %1820 = vmatmul.mubr.f32.gmra.mxu0 %v1592
          %v1821 = vpop.f32.mrf.mxu0
          %v1822 = vadd.f32 0.0, %v1821
          %v1823 = vpop.f32.mrf.mxu0
          %v1824 = vadd.f32 0.0, %v1823
          %1825 = vmatprep.mubr.f32.mxu0 0.0
          %1826 = vmatmul.mubr.f32.gmra.mxu0 %v1595
          %v1827 = vpop.f32.mrf.mxu0
          %v1828 = vadd.f32 0.0, %v1827
          %v1829 = vpop.f32.mrf.mxu0
          %v1830 = vadd.f32 0.0, %v1829
          %1831 = vmatprep.mubr.f32.mxu0 0.0
          %1832 = vmatmul.mubr.f32.gmra.mxu0 %v1598
          %v1833 = vpop.f32.mrf.mxu0
          %v1834 = vadd.f32 0.0, %v1833
          %v1835 = vpop.f32.mrf.mxu0
          %v1836 = vadd.f32 0.0, %v1835
          %1837 = vmatprep.mubr.f32.mxu0 0.0
          %1838 = vmatmul.mubr.f32.gmra.mxu0 %v1601
          %v1839 = vpop.f32.mrf.mxu0
          %v1840 = vadd.f32 0.0, %v1839
          %v1841 = vpop.f32.mrf.mxu0
          %v1842 = vadd.f32 0.0, %v1841
          %1843 = vmatprep.mubr.f32.mxu0 0.0
          %1844 = vmatmul.mubr.f32.gmra.mxu0 %v1604
          %v1845 = vpop.f32.mrf.mxu0
          %v1846 = vadd.f32 0.0, %v1845
          %v1847 = vpop.f32.mrf.mxu0
          %v1848 = vadd.f32 0.0, %v1847
          %1849 = vmatprep.mubr.f32.mxu0 0.0
          %1850 = vmatmul.mubr.f32.gmra.mxu0 %v1607
          %v1851 = vpop.f32.mrf.mxu0
          %v1852 = vadd.f32 0.0, %v1851
          %v1853 = vpop.f32.mrf.mxu0
          %v1854 = vadd.f32 0.0, %v1853
          %1855 = vmatprep.mubr.f32.mxu0 0.0
          %1856 = vmatmul.mubr.f32.gmra.mxu0 %v1610
          %v1857 = vpop.f32.mrf.mxu0
          %v1858 = vadd.f32 0.0, %v1857
          %v1859 = vpop.f32.mrf.mxu0
          %v1860 = vadd.f32 0.0, %v1859
          %1861 = vmatprep.mubr.f32.mxu0 0.0
          %1862 = vmatmul.mubr.f32.gmra.mxu0 %v1613
          %v1863 = vpop.f32.mrf.mxu0
          %v1864 = vadd.f32 0.0, %v1863
          %v1865 = vpop.f32.mrf.mxu0
          %v1866 = vadd.f32 0.0, %v1865
          %1867 = vmatprep.mubr.f32.mxu0 0.0
          %1868 = vmatmul.mubr.f32.gmra.mxu0 %v1616
          %v1869 = vpop.f32.mrf.mxu0
          %v1870 = vadd.f32 0.0, %v1869
          %v1871 = vpop.f32.mrf.mxu0
          %v1872 = vadd.f32 0.0, %v1871
          %1873 = vmatprep.mubr.f32.mxu0 0.0
          %1874 = vmatmul.mubr.f32.gmra.mxu0 %v1619
          %v1875 = vpop.f32.mrf.mxu0
          %v1876 = vadd.f32 0.0, %v1875
          %v1877 = vpop.f32.mrf.mxu0
          %v1878 = vadd.f32 0.0, %v1877
          %1879 = vmatprep.mubr.f32.mxu0 0.0
          %1880 = vmatmul.mubr.f32.gmra.mxu0 %v1622
          %v1881 = vpop.f32.mrf.mxu0
          %v1882 = vadd.f32 0.0, %v1881
          %v1883 = vpop.f32.mrf.mxu0
          %v1884 = vadd.f32 0.0, %v1883
          %1885 = vmatprep.mubr.f32.mxu0 0.0
          %1886 = vmatmul.mubr.f32.gmra.mxu0 %v1625
          %v1887 = vpop.f32.mrf.mxu0
          %v1888 = vadd.f32 0.0, %v1887
          %v1889 = vpop.f32.mrf.mxu0
          %v1890 = vadd.f32 0.0, %v1889
          %1891 = vmatprep.mubr.f32.mxu0 0.0
          %1892 = vmatmul.mubr.f32.gmra.mxu0 %v1628
          %v1893 = vpop.f32.mrf.mxu0
          %v1894 = vadd.f32 0.0, %v1893
          %v1895 = vpop.f32.mrf.mxu0
          %v1896 = vadd.f32 0.0, %v1895
          %1897 = vmatprep.mubr.f32.mxu0 0.0
          %1898 = vmatmul.mubr.f32.gmra.mxu0 %v1631
          %v1899 = vpop.f32.mrf.mxu0
          %v1900 = vadd.f32 0.0, %v1899
          %v1901 = vpop.f32.mrf.mxu0
          %v1902 = vadd.f32 0.0, %v1901
          %1903 = vmatprep.mubr.f32.mxu0 0.0
          %1904 = vmatmul.mubr.f32.gmra.mxu0 %v1634
          %v1905 = vpop.f32.mrf.mxu0
          %v1906 = vadd.f32 0.0, %v1905
          %v1907 = vpop.f32.mrf.mxu0
          %v1908 = vadd.f32 0.0, %v1907
          %1909 = vmatprep.mubr.f32.mxu0 0.0
          %1910 = vmatmul.mubr.f32.gmra.mxu0 %v1637
          %v1911 = vpop.f32.mrf.mxu0
          %v1912 = vpop.f32.mrf.mxu0
          %v1913 = vadd.f32 0.0, %v1912
          %1914 = vmatprep.mubr.f32.mxu0 0.0
          %1915 = vmatmul.mubr.f32.gmra.mxu0 %v1640
          %v1916 = vpop.f32.mrf.mxu0
          %v1917 = vpop.f32.mrf.mxu0
          %v1918 = vadd.f32 0.0, %v1917
          %1919 = vmatprep.mubr.f32.mxu0 0.0
          %1920 = vmatmul.mubr.f32.gmra.mxu0 %v1643
          %v1921 = vpop.f32.mrf.mxu0
          %v1922 = vpop.f32.mrf.mxu0
          %1923 = vmatprep.mubr.f32.mxu0 0.0
          %1924 = vmatmul.mubr.f32.gmra.mxu0 %v1646
          %v1925 = vpop.f32.mrf.mxu0
          %v1926 = vpop.f32.mrf.mxu0
          %1927 = vdwg.mxu0
          %1928 = vmatprep.subr.mxu0 0.0
          %1929 = vmatpush1.msra.mxu0 0.0
          %1930 = vmatprep.subr.mxu0 0.0
          %1931 = vmatpush1.msra.mxu0 0.0
          %1932 = vmatprep.subr.mxu0 0.0
          %1933 = vmatpush1.msra.mxu0 0.0
          %1934 = vmatprep.subr.mxu0 0.0
          %1935 = vmatpush1.msra.mxu0 0.0
          %1936 = vmatprep.subr.mxu0 0.0
          %1937 = vmatpush1.msra.mxu0 0.0
          %1938 = vmatprep.subr.mxu0 0.0
          %1939 = vmatpush1.msra.mxu0 0.0
          %1940 = vmatprep.subr.mxu0 0.0
          %1941 = vmatpush1.msra.mxu0 0.0
          %1942 = vmatprep.subr.mxu0 0.0
          %1943 = vmatpush1.msra.mxu0 0.0
          %1944 = vmatprep.subr.mxu0 0.0
          %1945 = vmatpush1.msra.mxu0 0.0
          %1946 = vmatprep.subr.mxu0 0.0
          %1947 = vmatpush1.msra.mxu0 0.0
          %1948 = vmatprep.subr.mxu0 0.0
          %1949 = vmatpush1.msra.mxu0 0.0
          %1950 = vmatprep.subr.mxu0 0.0
          %1951 = vmatpush1.msra.mxu0 0.0
          %1952 = vmatprep.subr.mxu0 0.0
          %1953 = vmatpush1.msra.mxu0 0.0
          %1954 = vmatprep.subr.mxu0 0.0
          %1955 = vmatpush1.msra.mxu0 0.0
          %1956 = vmatprep.subr.mxu0 0.0
          %1957 = vmatpush1.msra.mxu0 0.0
          %1958 = vmatprep.subr.mxu0 0.0
          %1959 = vmatpush1.msra.mxu0 %v1653
          %1960 = vmatprep.subr.mxu0 0.0
          %1961 = vmatpush2.msra.mxu0 0.0
          %1962 = vmatprep.subr.mxu0 0.0
          %1963 = vmatpush2.msra.mxu0 0.0
          %1964 = vmatprep.subr.mxu0 0.0
          %1965 = vmatpush2.msra.mxu0 0.0
          %1966 = vmatprep.subr.mxu0 0.0
          %1967 = vmatpush2.msra.mxu0 0.0
          %1968 = vmatprep.subr.mxu0 0.0
          %1969 = vmatpush2.msra.mxu0 0.0
          %1970 = vmatprep.subr.mxu0 0.0
          %1971 = vmatpush2.msra.mxu0 0.0
          %1972 = vmatprep.subr.mxu0 0.0
          %1973 = vmatpush2.msra.mxu0 0.0
          %1974 = vmatprep.subr.mxu0 0.0
          %1975 = vmatpush2.msra.mxu0 0.0
          %1976 = vmatprep.subr.mxu0 0.0
          %1977 = vmatpush2.msra.mxu0 0.0
          %1978 = vmatprep.subr.mxu0 0.0
          %1979 = vmatpush2.msra.mxu0 0.0
          %1980 = vmatprep.subr.mxu0 0.0
          %1981 = vmatpush2.msra.mxu0 0.0
          %1982 = vmatprep.subr.mxu0 0.0
          %1983 = vmatpush2.msra.mxu0 0.0
          %1984 = vmatprep.subr.mxu0 0.0
          %1985 = vmatpush2.msra.mxu0 0.0
          %1986 = vmatprep.subr.mxu0 0.0
          %1987 = vmatpush2.msra.mxu0 0.0
          %1988 = vmatprep.subr.mxu0 0.0
          %1989 = vmatpush2.msra.mxu0 0.0
          %1990 = vmatprep.subr.mxu0 0.0
          %1991 = vmatpush2.msra.mxu0 0.0
          %1992 = vmatprep.mubr.f32.mxu0 0.0
          %1993 = vmatmul.mubr.f32.gmra.mxu0 %v1541
          %v1994 = vpop.f32.mrf.mxu0
          %v1995 = vpop.f32.mrf.mxu0
          %1996 = vmatprep.mubr.f32.mxu0 0.0
          %1997 = vmatmul.mubr.f32.gmra.mxu0 %v1544
          %v1998 = vpop.f32.mrf.mxu0
          %v1999 = vpop.f32.mrf.mxu0
          %2000 = vmatprep.mubr.f32.mxu0 0.0
          %2001 = vmatmul.mubr.f32.gmra.mxu0 %v1547
          %v2002 = vpop.f32.mrf.mxu0
          %v2003 = vpop.f32.mrf.mxu0
          %2004 = vmatprep.mubr.f32.mxu0 0.0
          %2005 = vmatmul.mubr.f32.gmra.mxu0 %v1550
          %v2006 = vpop.f32.mrf.mxu0
          %v2007 = vpop.f32.mrf.mxu0
          %2008 = vmatprep.mubr.f32.mxu0 0.0
          %2009 = vmatmul.mubr.f32.gmra.mxu0 %v1553
          %v2010 = vpop.f32.mrf.mxu0
          %v2011 = vadd.f32 0.0, %v2010
          %v2012 = vpop.f32.mrf.mxu0
          %2013 = vmatprep.mubr.f32.mxu0 0.0
          %2014 = vmatmul.mubr.f32.gmra.mxu0 %v1556
          %v2015 = vpop.f32.mrf.mxu0
          %v2016 = vadd.f32 0.0, %v2015
          %v2017 = vpop.f32.mrf.mxu0
          %2018 = vmatprep.mubr.f32.mxu0 0.0
          %2019 = vmatmul.mubr.f32.gmra.mxu0 %v1559
          %v2020 = vpop.f32.mrf.mxu0
          %v2021 = vadd.f32 0.0, %v2020
          %v2022 = vpop.f32.mrf.mxu0
          %2023 = vmatprep.mubr.f32.mxu0 0.0
          %2024 = vmatmul.mubr.f32.gmra.mxu0 %v1562
          %v2025 = vpop.f32.mrf.mxu0
          %v2026 = vadd.f32 0.0, %v2025
          %v2027 = vpop.f32.mrf.mxu0
          %2028 = vmatprep.mubr.f32.mxu0 0.0
          %2029 = vmatmul.mubr.f32.gmra.mxu0 %v1565
          %v2030 = vpop.f32.mrf.mxu0
          %v2031 = vadd.f32 0.0, %v2030
          %v2032 = vpop.f32.mrf.mxu0
          %2033 = vmatprep.mubr.f32.mxu0 0.0
          %2034 = vmatmul.mubr.f32.gmra.mxu0 %v1568
          %v2035 = vpop.f32.mrf.mxu0
          %v2036 = vadd.f32 0.0, %v2035
          %v2037 = vpop.f32.mrf.mxu0
          %2038 = vmatprep.mubr.f32.mxu0 0.0
          %2039 = vmatmul.mubr.f32.gmra.mxu0 %v1571
          %v2040 = vpop.f32.mrf.mxu0
          %v2041 = vadd.f32 0.0, %v2040
          %v2042 = vpop.f32.mrf.mxu0
          %2043 = vmatprep.mubr.f32.mxu0 0.0
          %2044 = vmatmul.mubr.f32.gmra.mxu0 %v1574
          %v2045 = vpop.f32.mrf.mxu0
          %v2046 = vadd.f32 0.0, %v2045
          %v2047 = vpop.f32.mrf.mxu0
          %2048 = vmatprep.mubr.f32.mxu0 0.0
          %2049 = vmatmul.mubr.f32.gmra.mxu0 %v1577
          %v2050 = vpop.f32.mrf.mxu0
          %v2051 = vadd.f32 0.0, %v2050
          %v2052 = vpop.f32.mrf.mxu0
          %2053 = vmatprep.mubr.f32.mxu0 0.0
          %2054 = vmatmul.mubr.f32.gmra.mxu0 %v1580
          %v2055 = vpop.f32.mrf.mxu0
          %v2056 = vadd.f32 0.0, %v2055
          %v2057 = vpop.f32.mrf.mxu0
          %2058 = vmatprep.mubr.f32.mxu0 0.0
          %2059 = vmatmul.mubr.f32.gmra.mxu0 %v1583
          %v2060 = vpop.f32.mrf.mxu0
          %v2061 = vadd.f32 0.0, %v2060
          %v2062 = vpop.f32.mrf.mxu0
          %2063 = vmatprep.mubr.f32.mxu0 0.0
          %2064 = vmatmul.mubr.f32.gmra.mxu0 %v1586
          %v2065 = vpop.f32.mrf.mxu0
          %v2066 = vadd.f32 0.0, %v2065
          %v2067 = vpop.f32.mrf.mxu0
          %2068 = vmatprep.mubr.f32.mxu0 0.0
          %2069 = vmatmul.mubr.f32.gmra.mxu0 %v1589
          %v2070 = vpop.f32.mrf.mxu0
          %v2071 = vadd.f32 0.0, %v2070
          %v2072 = vpop.f32.mrf.mxu0
          %2073 = vmatprep.mubr.f32.mxu0 0.0
          %2074 = vmatmul.mubr.f32.gmra.mxu0 %v1592
          %v2075 = vpop.f32.mrf.mxu0
          %v2076 = vadd.f32 0.0, %v2075
          %v2077 = vpop.f32.mrf.mxu0
          %2078 = vmatprep.mubr.f32.mxu0 0.0
          %2079 = vmatmul.mubr.f32.gmra.mxu0 %v1595
          %v2080 = vpop.f32.mrf.mxu0
          %v2081 = vadd.f32 0.0, %v2080
          %v2082 = vpop.f32.mrf.mxu0
          %2083 = vmatprep.mubr.f32.mxu0 0.0
          %2084 = vmatmul.mubr.f32.gmra.mxu0 %v1598
          %v2085 = vpop.f32.mrf.mxu0
          %v2086 = vadd.f32 0.0, %v2085
          %v2087 = vpop.f32.mrf.mxu0
          %2088 = vmatprep.mubr.f32.mxu0 0.0
          %2089 = vmatmul.mubr.f32.gmra.mxu0 %v1601
          %v2090 = vpop.f32.mrf.mxu0
          %v2091 = vadd.f32 0.0, %v2090
          %v2092 = vpop.f32.mrf.mxu0
          %2093 = vmatprep.mubr.f32.mxu0 0.0
          %2094 = vmatmul.mubr.f32.gmra.mxu0 %v1604
          %v2095 = vpop.f32.mrf.mxu0
          %v2096 = vadd.f32 0.0, %v2095
          %v2097 = vpop.f32.mrf.mxu0
          %2098 = vmatprep.mubr.f32.mxu0 0.0
          %2099 = vmatmul.mubr.f32.gmra.mxu0 %v1607
          %v2100 = vpop.f32.mrf.mxu0
          %v2101 = vadd.f32 0.0, %v2100
          %v2102 = vpop.f32.mrf.mxu0
          %2103 = vmatprep.mubr.f32.mxu0 0.0
          %2104 = vmatmul.mubr.f32.gmra.mxu0 %v1610
          %v2105 = vpop.f32.mrf.mxu0
          %v2106 = vadd.f32 0.0, %v2105
          %v2107 = vpop.f32.mrf.mxu0
          %2108 = vmatprep.mubr.f32.mxu0 0.0
          %2109 = vmatmul.mubr.f32.gmra.mxu0 %v1613
          %v2110 = vpop.f32.mrf.mxu0
          %v2111 = vadd.f32 0.0, %v2110
          %v2112 = vpop.f32.mrf.mxu0
          %2113 = vmatprep.mubr.f32.mxu0 0.0
          %2114 = vmatmul.mubr.f32.gmra.mxu0 %v1616
          %v2115 = vpop.f32.mrf.mxu0
          %v2116 = vadd.f32 0.0, %v2115
          %v2117 = vpop.f32.mrf.mxu0
          %2118 = vmatprep.mubr.f32.mxu0 0.0
          %2119 = vmatmul.mubr.f32.gmra.mxu0 %v1619
          %v2120 = vpop.f32.mrf.mxu0
          %v2121 = vadd.f32 0.0, %v2120
          %v2122 = vpop.f32.mrf.mxu0
          %2123 = vmatprep.mubr.f32.mxu0 0.0
          %2124 = vmatmul.mubr.f32.gmra.mxu0 %v1622
          %v2125 = vpop.f32.mrf.mxu0
          %v2126 = vadd.f32 0.0, %v2125
          %v2127 = vpop.f32.mrf.mxu0
          %2128 = vmatprep.mubr.f32.mxu0 0.0
          %2129 = vmatmul.mubr.f32.gmra.mxu0 %v1625
          %v2130 = vpop.f32.mrf.mxu0
          %v2131 = vadd.f32 0.0, %v2130
          %v2132 = vpop.f32.mrf.mxu0
          %2133 = vmatprep.mubr.f32.mxu0 0.0
          %2134 = vmatmul.mubr.f32.gmra.mxu0 %v1628
          %v2135 = vpop.f32.mrf.mxu0
          %v2136 = vadd.f32 0.0, %v2135
          %v2137 = vpop.f32.mrf.mxu0
          %2138 = vmatprep.mubr.f32.mxu0 0.0
          %2139 = vmatmul.mubr.f32.gmra.mxu0 %v1631
          %v2140 = vpop.f32.mrf.mxu0
          %v2141 = vadd.f32 0.0, %v2140
          %v2142 = vpop.f32.mrf.mxu0
          %2143 = vmatprep.mubr.f32.mxu0 0.0
          %2144 = vmatmul.mubr.f32.gmra.mxu0 %v1634
          %v2145 = vpop.f32.mrf.mxu0
          %v2146 = vadd.f32 0.0, %v2145
          %v2147 = vpop.f32.mrf.mxu0
          %2148 = vmatprep.mubr.f32.mxu0 0.0
          %2149 = vmatmul.mubr.f32.gmra.mxu0 %v1637
          %v2150 = vpop.f32.mrf.mxu0
          %v2151 = vadd.f32 0.0, %v2150
          %v2152 = vpop.f32.mrf.mxu0
          %2153 = vmatprep.mubr.f32.mxu0 0.0
          %2154 = vmatmul.mubr.f32.gmra.mxu0 %v1640
          %v2155 = vpop.f32.mrf.mxu0
          %v2156 = vadd.f32 0.0, %v2155
          %v2157 = vpop.f32.mrf.mxu0
          %2158 = vmatprep.mubr.f32.mxu0 0.0
          %2159 = vmatmul.mubr.f32.gmra.mxu0 %v1643
          %v2160 = vpop.f32.mrf.mxu0
          %v2161 = vadd.f32 0.0, %v2160
          %v2162 = vpop.f32.mrf.mxu0
          %2163 = vmatprep.mubr.f32.mxu0 0.0
          %2164 = vmatmul.mubr.f32.gmra.mxu0 %v1646
          %v2165 = vpop.f32.mrf.mxu0
          %v2166 = vadd.f32 0.0, %v2165
          %v2167 = vpop.f32.mrf.mxu0
          %2168 = vdwg.mxu0
          %v2171 = vcombine.high %v1532, %v1532
          %v2173 = vsel %vm879, %v1207, 0
          %v2176 = vsel %vm879, %v1208, 0
          %v2179 = vsel %vm879, %v1209, 0
          %v2182 = vsel %vm879, %v1210, 0
          %v2185 = vsel %vm879, %v1211, 0
          %v2188 = vsel %vm879, %v1212, 0
          %v2191 = vsel %vm879, %v1213, 0
          %v2194 = vsel %vm879, %v1214, 0
          %v2197 = vsel %vm879, %v1215, 0
          %v2200 = vsel %vm879, %v1216, 0
          %v2203 = vsel %vm879, %v1217, 0
          %v2206 = vsel %vm879, %v1218, 0
          %v2209 = vsel %vm879, %v1219, 0
          %v2212 = vsel %vm879, %v1220, 0
          %v2215 = vsel %vm879, %v1221, 0
          %v2218 = vsel %vm879, %v1222, 0
          %v2221 = vsel %vm879, %v1223, 0
          %v2224 = vsel %vm879, %v1224, 0
          %v2227 = vsel %vm879, %v1225, 0
          %v2230 = vsel %vm879, %v1226, 0
          %v2233 = vsel %vm879, %v1227, 0
          %v2236 = vsel %vm879, %v1228, 0
          %v2239 = vsel %vm879, %v1229, 0
          %v2242 = vsel %vm879, %v1230, 0
          %v2245 = vsel %vm879, %v1231, 0
          %v2248 = vsel %vm879, %v1232, 0
          %v2251 = vsel %vm879, %v1233, 0
          %v2254 = vsel %vm879, %v1234, 0
          %v2257 = vsel %vm879, %v1235, 0
          %v2260 = vsel %vm879, %v1236, 0
          %v2263 = vsel %vm879, %v1237, 0
          %v2266 = vsel %vm879, %v1238, 0
          %v2269 = vsel %vm879, %v1239, 0
          %v2272 = vsel %vm879, %v1240, 0
          %v2275 = vsel %vm879, %v1241, 0
          %v2278 = vsel %vm879, %v1242, 0
          %v2280 = vsel %vm1648, %v1532, 0
          %v2282 = vsel %vm1648, %v2171, 0
          %v2284 = vsel %vm1648, %v1533, 0
          %2286 = vmatprep.subr.mxu0 0.0
          %2287 = vmatpush1.msra.mxu0 0.0
          %2288 = vmatprep.subr.mxu0 0.0
          %2289 = vmatpush1.msra.mxu0 0.0
          %2290 = vmatprep.subr.mxu0 0.0
          %2291 = vmatpush1.msra.mxu0 0.0
          %2292 = vmatprep.subr.mxu0 0.0
          %2293 = vmatpush1.msra.mxu0 0.0
          %2294 = vmatprep.subr.mxu0 0.0
          %2295 = vmatpush1.msra.mxu0 0.0
          %2296 = vmatprep.subr.mxu0 0.0
          %2297 = vmatpush1.msra.mxu0 0.0
          %2298 = vmatprep.subr.mxu0 0.0
          %2299 = vmatpush1.msra.mxu0 0.0
          %2300 = vmatprep.subr.mxu0 0.0
          %2301 = vmatpush1.msra.mxu0 0.0
          %2302 = vmatprep.subr.mxu0 0.0
          %2303 = vmatpush1.msra.mxu0 0.0
          %2304 = vmatprep.subr.mxu0 0.0
          %2305 = vmatpush1.msra.mxu0 0.0
          %2306 = vmatprep.subr.mxu0 0.0
          %2307 = vmatpush1.msra.mxu0 0.0
          %2308 = vmatprep.subr.mxu0 0.0
          %2309 = vmatpush1.msra.mxu0 0.0
          %2310 = vmatprep.subr.mxu0 0.0
          %2311 = vmatpush1.msra.mxu0 0.0
          %2312 = vmatprep.subr.mxu0 0.0
          %2313 = vmatpush1.msra.mxu0 0.0
          %2314 = vmatprep.subr.mxu0 0.0
          %2315 = vmatpush1.msra.mxu0 0.0
          %2316 = vmatprep.subr.mxu0 %v2282
          %2317 = vmatpush1.msra.mxu0 %v2280
          %2318 = vmatprep.subr.mxu0 0.0
          %2319 = vmatpush2.msra.mxu0 0.0
          %2320 = vmatprep.subr.mxu0 0.0
          %2321 = vmatpush2.msra.mxu0 0.0
          %2322 = vmatprep.subr.mxu0 0.0
          %2323 = vmatpush2.msra.mxu0 0.0
          %2324 = vmatprep.subr.mxu0 0.0
          %2325 = vmatpush2.msra.mxu0 0.0
          %2326 = vmatprep.subr.mxu0 0.0
          %2327 = vmatpush2.msra.mxu0 0.0
          %2328 = vmatprep.subr.mxu0 0.0
          %2329 = vmatpush2.msra.mxu0 0.0
          %2330 = vmatprep.subr.mxu0 0.0
          %2331 = vmatpush2.msra.mxu0 0.0
          %2332 = vmatprep.subr.mxu0 0.0
          %2333 = vmatpush2.msra.mxu0 0.0
          %2334 = vmatprep.subr.mxu0 0.0
          %2335 = vmatpush2.msra.mxu0 0.0
          %2336 = vmatprep.subr.mxu0 0.0
          %2337 = vmatpush2.msra.mxu0 0.0
          %2338 = vmatprep.subr.mxu0 0.0
          %2339 = vmatpush2.msra.mxu0 0.0
          %2340 = vmatprep.subr.mxu0 0.0
          %2341 = vmatpush2.msra.mxu0 0.0
          %2342 = vmatprep.subr.mxu0 0.0
          %2343 = vmatpush2.msra.mxu0 0.0
          %2344 = vmatprep.subr.mxu0 0.0
          %2345 = vmatpush2.msra.mxu0 0.0
          %2346 = vmatprep.subr.mxu0 0.0
          %2347 = vmatpush2.msra.mxu0 0.0
          %2348 = vmatprep.subr.mxu0 0.0
          %2349 = vmatpush2.msra.mxu0 0.0
          %2350 = vmatprep.mubr.f32.mxu0 0.0
          %2351 = vmatmul.mubr.f32.gmra.mxu0 %v2173
          %v2352 = vpop.f32.mrf.mxu0
          %v2353 = vadd.f32 %v1722, %v2352
          %v2354 = vpop.f32.mrf.mxu0
          %2355 = vmatprep.mubr.f32.mxu0 0.0
          %2356 = vmatmul.mubr.f32.gmra.mxu0 %v2176
          %v2357 = vpop.f32.mrf.mxu0
          %v2358 = vadd.f32 %v1727, %v2357
          %v2359 = vpop.f32.mrf.mxu0
          %2360 = vmatprep.mubr.f32.mxu0 0.0
          %2361 = vmatmul.mubr.f32.gmra.mxu0 %v2179
          %v2362 = vpop.f32.mrf.mxu0
          %v2363 = vadd.f32 %v1732, %v2362
          %v2364 = vpop.f32.mrf.mxu0
          %v2365 = vadd.f32 %v1734, %v2364
          %2366 = vmatprep.mubr.f32.mxu0 0.0
          %2367 = vmatmul.mubr.f32.gmra.mxu0 %v2182
          %v2368 = vpop.f32.mrf.mxu0
          %v2369 = vadd.f32 %v1738, %v2368
          %v2370 = vpop.f32.mrf.mxu0
          %v2371 = vadd.f32 %v1740, %v2370
          %2372 = vmatprep.mubr.f32.mxu0 0.0
          %2373 = vmatmul.mubr.f32.gmra.mxu0 %v2185
          %v2374 = vpop.f32.mrf.mxu0
          %v2375 = vadd.f32 %v1744, %v2374
          %v2376 = vpop.f32.mrf.mxu0
          %v2377 = vadd.f32 %v1746, %v2376
          %2378 = vmatprep.mubr.f32.mxu0 0.0
          %2379 = vmatmul.mubr.f32.gmra.mxu0 %v2188
          %v2380 = vpop.f32.mrf.mxu0
          %v2381 = vadd.f32 %v1750, %v2380
          %v2382 = vpop.f32.mrf.mxu0
          %v2383 = vadd.f32 %v1752, %v2382
          %2384 = vmatprep.mubr.f32.mxu0 0.0
          %2385 = vmatmul.mubr.f32.gmra.mxu0 %v2191
          %v2386 = vpop.f32.mrf.mxu0
          %v2387 = vadd.f32 %v1756, %v2386
          %v2388 = vpop.f32.mrf.mxu0
          %v2389 = vadd.f32 %v1758, %v2388
          %2390 = vmatprep.mubr.f32.mxu0 0.0
          %2391 = vmatmul.mubr.f32.gmra.mxu0 %v2194
          %v2392 = vpop.f32.mrf.mxu0
          %v2393 = vadd.f32 %v1762, %v2392
          %v2394 = vpop.f32.mrf.mxu0
          %v2395 = vadd.f32 %v1764, %v2394
          %2396 = vmatprep.mubr.f32.mxu0 0.0
          %2397 = vmatmul.mubr.f32.gmra.mxu0 %v2197
          %v2398 = vpop.f32.mrf.mxu0
          %v2399 = vadd.f32 %v1768, %v2398
          %v2400 = vpop.f32.mrf.mxu0
          %v2401 = vadd.f32 %v1770, %v2400
          %2402 = vmatprep.mubr.f32.mxu0 0.0
          %2403 = vmatmul.mubr.f32.gmra.mxu0 %v2200
          %v2404 = vpop.f32.mrf.mxu0
          %v2405 = vadd.f32 %v1774, %v2404
          %v2406 = vpop.f32.mrf.mxu0
          %v2407 = vadd.f32 %v1776, %v2406
          %2408 = vmatprep.mubr.f32.mxu0 0.0
          %2409 = vmatmul.mubr.f32.gmra.mxu0 %v2203
          %v2410 = vpop.f32.mrf.mxu0
          %v2411 = vadd.f32 %v1780, %v2410
          %v2412 = vpop.f32.mrf.mxu0
          %v2413 = vadd.f32 %v1782, %v2412
          %2414 = vmatprep.mubr.f32.mxu0 0.0
          %2415 = vmatmul.mubr.f32.gmra.mxu0 %v2206
          %v2416 = vpop.f32.mrf.mxu0
          %v2417 = vadd.f32 %v1786, %v2416
          %v2418 = vpop.f32.mrf.mxu0
          %v2419 = vadd.f32 %v1788, %v2418
          %2420 = vmatprep.mubr.f32.mxu0 0.0
          %2421 = vmatmul.mubr.f32.gmra.mxu0 %v2209
          %v2422 = vpop.f32.mrf.mxu0
          %v2423 = vadd.f32 %v1792, %v2422
          %v2424 = vpop.f32.mrf.mxu0
          %v2425 = vadd.f32 %v1794, %v2424
          %2426 = vmatprep.mubr.f32.mxu0 0.0
          %2427 = vmatmul.mubr.f32.gmra.mxu0 %v2212
          %v2428 = vpop.f32.mrf.mxu0
          %v2429 = vadd.f32 %v1798, %v2428
          %v2430 = vpop.f32.mrf.mxu0
          %v2431 = vadd.f32 %v1800, %v2430
          %2432 = vmatprep.mubr.f32.mxu0 0.0
          %2433 = vmatmul.mubr.f32.gmra.mxu0 %v2215
          %v2434 = vpop.f32.mrf.mxu0
          %v2435 = vadd.f32 %v1804, %v2434
          %v2436 = vpop.f32.mrf.mxu0
          %v2437 = vadd.f32 %v1806, %v2436
          %2438 = vmatprep.mubr.f32.mxu0 0.0
          %2439 = vmatmul.mubr.f32.gmra.mxu0 %v2218
          %v2440 = vpop.f32.mrf.mxu0
          %v2441 = vadd.f32 %v1810, %v2440
          %v2442 = vpop.f32.mrf.mxu0
          %v2443 = vadd.f32 %v1812, %v2442
          %2444 = vmatprep.mubr.f32.mxu0 0.0
          %2445 = vmatmul.mubr.f32.gmra.mxu0 %v2221
          %v2446 = vpop.f32.mrf.mxu0
          %v2447 = vadd.f32 %v1816, %v2446
          %v2448 = vpop.f32.mrf.mxu0
          %v2449 = vadd.f32 %v1818, %v2448
          %2450 = vmatprep.mubr.f32.mxu0 0.0
          %2451 = vmatmul.mubr.f32.gmra.mxu0 %v2224
          %v2452 = vpop.f32.mrf.mxu0
          %v2453 = vadd.f32 %v1822, %v2452
          %v2454 = vpop.f32.mrf.mxu0
          %v2455 = vadd.f32 %v1824, %v2454
          %2456 = vmatprep.mubr.f32.mxu0 0.0
          %2457 = vmatmul.mubr.f32.gmra.mxu0 %v2227
          %v2458 = vpop.f32.mrf.mxu0
          %v2459 = vadd.f32 %v1828, %v2458
          %v2460 = vpop.f32.mrf.mxu0
          %v2461 = vadd.f32 %v1830, %v2460
          %2462 = vmatprep.mubr.f32.mxu0 0.0
          %2463 = vmatmul.mubr.f32.gmra.mxu0 %v2230
          %v2464 = vpop.f32.mrf.mxu0
          %v2465 = vadd.f32 %v1834, %v2464
          %v2466 = vpop.f32.mrf.mxu0
          %v2467 = vadd.f32 %v1836, %v2466
          %2468 = vmatprep.mubr.f32.mxu0 0.0
          %2469 = vmatmul.mubr.f32.gmra.mxu0 %v2233
          %v2470 = vpop.f32.mrf.mxu0
          %v2471 = vadd.f32 %v1840, %v2470
          %v2472 = vpop.f32.mrf.mxu0
          %v2473 = vadd.f32 %v1842, %v2472
          %2474 = vmatprep.mubr.f32.mxu0 0.0
          %2475 = vmatmul.mubr.f32.gmra.mxu0 %v2236
          %v2476 = vpop.f32.mrf.mxu0
          %v2477 = vadd.f32 %v1846, %v2476
          %v2478 = vpop.f32.mrf.mxu0
          %v2479 = vadd.f32 %v1848, %v2478
          %2480 = vmatprep.mubr.f32.mxu0 0.0
          %2481 = vmatmul.mubr.f32.gmra.mxu0 %v2239
          %v2482 = vpop.f32.mrf.mxu0
          %v2483 = vadd.f32 %v1852, %v2482
          %v2484 = vpop.f32.mrf.mxu0
          %v2485 = vadd.f32 %v1854, %v2484
          %2486 = vmatprep.mubr.f32.mxu0 0.0
          %2487 = vmatmul.mubr.f32.gmra.mxu0 %v2242
          %v2488 = vpop.f32.mrf.mxu0
          %v2489 = vadd.f32 %v1858, %v2488
          %v2490 = vpop.f32.mrf.mxu0
          %v2491 = vadd.f32 %v1860, %v2490
          %2492 = vmatprep.mubr.f32.mxu0 0.0
          %2493 = vmatmul.mubr.f32.gmra.mxu0 %v2245
          %v2494 = vpop.f32.mrf.mxu0
          %v2495 = vadd.f32 %v1864, %v2494
          %v2496 = vpop.f32.mrf.mxu0
          %v2497 = vadd.f32 %v1866, %v2496
          %2498 = vmatprep.mubr.f32.mxu0 0.0
          %2499 = vmatmul.mubr.f32.gmra.mxu0 %v2248
          %v2500 = vpop.f32.mrf.mxu0
          %v2501 = vadd.f32 %v1870, %v2500
          %v2502 = vpop.f32.mrf.mxu0
          %v2503 = vadd.f32 %v1872, %v2502
          %2504 = vmatprep.mubr.f32.mxu0 0.0
          %2505 = vmatmul.mubr.f32.gmra.mxu0 %v2251
          %v2506 = vpop.f32.mrf.mxu0
          %v2507 = vadd.f32 %v1876, %v2506
          %v2508 = vpop.f32.mrf.mxu0
          %v2509 = vadd.f32 %v1878, %v2508
          %2510 = vmatprep.mubr.f32.mxu0 0.0
          %2511 = vmatmul.mubr.f32.gmra.mxu0 %v2254
          %v2512 = vpop.f32.mrf.mxu0
          %v2513 = vadd.f32 %v1882, %v2512
          %v2514 = vpop.f32.mrf.mxu0
          %v2515 = vadd.f32 %v1884, %v2514
          %2516 = vmatprep.mubr.f32.mxu0 0.0
          %2517 = vmatmul.mubr.f32.gmra.mxu0 %v2257
          %v2518 = vpop.f32.mrf.mxu0
          %v2519 = vadd.f32 %v1888, %v2518
          %v2520 = vpop.f32.mrf.mxu0
          %v2521 = vadd.f32 %v1890, %v2520
          %2522 = vmatprep.mubr.f32.mxu0 0.0
          %2523 = vmatmul.mubr.f32.gmra.mxu0 %v2260
          %v2524 = vpop.f32.mrf.mxu0
          %v2525 = vadd.f32 %v1894, %v2524
          %v2526 = vpop.f32.mrf.mxu0
          %v2527 = vadd.f32 %v1896, %v2526
          %2528 = vmatprep.mubr.f32.mxu0 0.0
          %2529 = vmatmul.mubr.f32.gmra.mxu0 %v2263
          %v2530 = vpop.f32.mrf.mxu0
          %v2531 = vadd.f32 %v1900, %v2530
          %v2532 = vpop.f32.mrf.mxu0
          %v2533 = vadd.f32 %v1902, %v2532
          %2534 = vmatprep.mubr.f32.mxu0 0.0
          %2535 = vmatmul.mubr.f32.gmra.mxu0 %v2266
          %v2536 = vpop.f32.mrf.mxu0
          %v2537 = vadd.f32 %v1906, %v2536
          %v2538 = vpop.f32.mrf.mxu0
          %v2539 = vadd.f32 %v1908, %v2538
          %2540 = vmatprep.mubr.f32.mxu0 0.0
          %2541 = vmatmul.mubr.f32.gmra.mxu0 %v2269
          %v2542 = vpop.f32.mrf.mxu0
          %v2543 = vpop.f32.mrf.mxu0
          %v2544 = vadd.f32 %v1913, %v2543
          %2545 = vmatprep.mubr.f32.mxu0 0.0
          %2546 = vmatmul.mubr.f32.gmra.mxu0 %v2272
          %v2547 = vpop.f32.mrf.mxu0
          %v2548 = vpop.f32.mrf.mxu0
          %v2549 = vadd.f32 %v1918, %v2548
          %2550 = vmatprep.mubr.f32.mxu0 0.0
          %2551 = vmatmul.mubr.f32.gmra.mxu0 %v2275
          %v2552 = vpop.f32.mrf.mxu0
          %v2553 = vpop.f32.mrf.mxu0
          %2554 = vmatprep.mubr.f32.mxu0 0.0
          %2555 = vmatmul.mubr.f32.gmra.mxu0 %v2278
          %v2556 = vpop.f32.mrf.mxu0
          %v2557 = vpop.f32.mrf.mxu0
          %2558 = vdwg.mxu0
          %2559 = vmatprep.subr.mxu0 0.0
          %2560 = vmatpush1.msra.mxu0 0.0
          %2561 = vmatprep.subr.mxu0 0.0
          %2562 = vmatpush1.msra.mxu0 0.0
          %2563 = vmatprep.subr.mxu0 0.0
          %2564 = vmatpush1.msra.mxu0 0.0
          %2565 = vmatprep.subr.mxu0 0.0
          %2566 = vmatpush1.msra.mxu0 0.0
          %2567 = vmatprep.subr.mxu0 0.0
          %2568 = vmatpush1.msra.mxu0 0.0
          %2569 = vmatprep.subr.mxu0 0.0
          %2570 = vmatpush1.msra.mxu0 0.0
          %2571 = vmatprep.subr.mxu0 0.0
          %2572 = vmatpush1.msra.mxu0 0.0
          %2573 = vmatprep.subr.mxu0 0.0
          %2574 = vmatpush1.msra.mxu0 0.0
          %2575 = vmatprep.subr.mxu0 0.0
          %2576 = vmatpush1.msra.mxu0 0.0
          %2577 = vmatprep.subr.mxu0 0.0
          %2578 = vmatpush1.msra.mxu0 0.0
          %2579 = vmatprep.subr.mxu0 0.0
          %2580 = vmatpush1.msra.mxu0 0.0
          %2581 = vmatprep.subr.mxu0 0.0
          %2582 = vmatpush1.msra.mxu0 0.0
          %2583 = vmatprep.subr.mxu0 0.0
          %2584 = vmatpush1.msra.mxu0 0.0
          %2585 = vmatprep.subr.mxu0 0.0
          %2586 = vmatpush1.msra.mxu0 0.0
          %2587 = vmatprep.subr.mxu0 0.0
          %2588 = vmatpush1.msra.mxu0 0.0
          %2589 = vmatprep.subr.mxu0 0.0
          %2590 = vmatpush1.msra.mxu0 %v2284
          %2591 = vmatprep.subr.mxu0 0.0
          %2592 = vmatpush2.msra.mxu0 0.0
          %2593 = vmatprep.subr.mxu0 0.0
          %2594 = vmatpush2.msra.mxu0 0.0
          %2595 = vmatprep.subr.mxu0 0.0
          %2596 = vmatpush2.msra.mxu0 0.0
          %2597 = vmatprep.subr.mxu0 0.0
          %2598 = vmatpush2.msra.mxu0 0.0
          %2599 = vmatprep.subr.mxu0 0.0
          %2600 = vmatpush2.msra.mxu0 0.0
          %2601 = vmatprep.subr.mxu0 0.0
          %2602 = vmatpush2.msra.mxu0 0.0
          %2603 = vmatprep.subr.mxu0 0.0
          %2604 = vmatpush2.msra.mxu0 0.0
          %2605 = vmatprep.subr.mxu0 0.0
          %2606 = vmatpush2.msra.mxu0 0.0
          %2607 = vmatprep.subr.mxu0 0.0
          %2608 = vmatpush2.msra.mxu0 0.0
          %2609 = vmatprep.subr.mxu0 0.0
          %2610 = vmatpush2.msra.mxu0 0.0
          %2611 = vmatprep.subr.mxu0 0.0
          %2612 = vmatpush2.msra.mxu0 0.0
          %2613 = vmatprep.subr.mxu0 0.0
          %2614 = vmatpush2.msra.mxu0 0.0
          %2615 = vmatprep.subr.mxu0 0.0
          %2616 = vmatpush2.msra.mxu0 0.0
          %2617 = vmatprep.subr.mxu0 0.0
          %2618 = vmatpush2.msra.mxu0 0.0
          %2619 = vmatprep.subr.mxu0 0.0
          %2620 = vmatpush2.msra.mxu0 0.0
          %2621 = vmatprep.subr.mxu0 0.0
          %2622 = vmatpush2.msra.mxu0 0.0
          %2623 = vmatprep.mubr.f32.mxu0 0.0
          %2624 = vmatmul.mubr.f32.gmra.mxu0 %v2173
          %v2625 = vpop.f32.mrf.mxu0
          %v2626 = vpop.f32.mrf.mxu0
          %2627 = vmatprep.mubr.f32.mxu0 0.0
          %2628 = vmatmul.mubr.f32.gmra.mxu0 %v2176
          %v2629 = vpop.f32.mrf.mxu0
          %v2630 = vpop.f32.mrf.mxu0
          %2631 = vmatprep.mubr.f32.mxu0 0.0
          %2632 = vmatmul.mubr.f32.gmra.mxu0 %v2179
          %v2633 = vpop.f32.mrf.mxu0
          %v2634 = vpop.f32.mrf.mxu0
          %2635 = vmatprep.mubr.f32.mxu0 0.0
          %2636 = vmatmul.mubr.f32.gmra.mxu0 %v2182
          %v2637 = vpop.f32.mrf.mxu0
          %v2638 = vpop.f32.mrf.mxu0
          %2639 = vmatprep.mubr.f32.mxu0 0.0
          %2640 = vmatmul.mubr.f32.gmra.mxu0 %v2185
          %v2641 = vpop.f32.mrf.mxu0
          %v2642 = vadd.f32 %v2011, %v2641
          %v2643 = vpop.f32.mrf.mxu0
          %2644 = vmatprep.mubr.f32.mxu0 0.0
          %2645 = vmatmul.mubr.f32.gmra.mxu0 %v2188
          %v2646 = vpop.f32.mrf.mxu0
          %v2647 = vadd.f32 %v2016, %v2646
          %v2648 = vpop.f32.mrf.mxu0
          %2649 = vmatprep.mubr.f32.mxu0 0.0
          %2650 = vmatmul.mubr.f32.gmra.mxu0 %v2191
          %v2651 = vpop.f32.mrf.mxu0
          %v2652 = vadd.f32 %v2021, %v2651
          %v2653 = vpop.f32.mrf.mxu0
          %2654 = vmatprep.mubr.f32.mxu0 0.0
          %2655 = vmatmul.mubr.f32.gmra.mxu0 %v2194
          %v2656 = vpop.f32.mrf.mxu0
          %v2657 = vadd.f32 %v2026, %v2656
          %v2658 = vpop.f32.mrf.mxu0
          %2659 = vmatprep.mubr.f32.mxu0 0.0
          %2660 = vmatmul.mubr.f32.gmra.mxu0 %v2197
          %v2661 = vpop.f32.mrf.mxu0
          %v2662 = vadd.f32 %v2031, %v2661
          %v2663 = vpop.f32.mrf.mxu0
          %2664 = vmatprep.mubr.f32.mxu0 0.0
          %2665 = vmatmul.mubr.f32.gmra.mxu0 %v2200
          %v2666 = vpop.f32.mrf.mxu0
          %v2667 = vadd.f32 %v2036, %v2666
          %v2668 = vpop.f32.mrf.mxu0
          %2669 = vmatprep.mubr.f32.mxu0 0.0
          %2670 = vmatmul.mubr.f32.gmra.mxu0 %v2203
          %v2671 = vpop.f32.mrf.mxu0
          %v2672 = vadd.f32 %v2041, %v2671
          %v2673 = vpop.f32.mrf.mxu0
          %2674 = vmatprep.mubr.f32.mxu0 0.0
          %2675 = vmatmul.mubr.f32.gmra.mxu0 %v2206
          %v2676 = vpop.f32.mrf.mxu0
          %v2677 = vadd.f32 %v2046, %v2676
          %v2678 = vpop.f32.mrf.mxu0
          %2679 = vmatprep.mubr.f32.mxu0 0.0
          %2680 = vmatmul.mubr.f32.gmra.mxu0 %v2209
          %v2681 = vpop.f32.mrf.mxu0
          %v2682 = vadd.f32 %v2051, %v2681
          %v2683 = vpop.f32.mrf.mxu0
          %2684 = vmatprep.mubr.f32.mxu0 0.0
          %2685 = vmatmul.mubr.f32.gmra.mxu0 %v2212
          %v2686 = vpop.f32.mrf.mxu0
          %v2687 = vadd.f32 %v2056, %v2686
          %v2688 = vpop.f32.mrf.mxu0
          %2689 = vmatprep.mubr.f32.mxu0 0.0
          %2690 = vmatmul.mubr.f32.gmra.mxu0 %v2215
          %v2691 = vpop.f32.mrf.mxu0
          %v2692 = vadd.f32 %v2061, %v2691
          %v2693 = vpop.f32.mrf.mxu0
          %2694 = vmatprep.mubr.f32.mxu0 0.0
          %2695 = vmatmul.mubr.f32.gmra.mxu0 %v2218
          %v2696 = vpop.f32.mrf.mxu0
          %v2697 = vadd.f32 %v2066, %v2696
          %v2698 = vpop.f32.mrf.mxu0
          %2699 = vmatprep.mubr.f32.mxu0 0.0
          %2700 = vmatmul.mubr.f32.gmra.mxu0 %v2221
          %v2701 = vpop.f32.mrf.mxu0
          %v2702 = vadd.f32 %v2071, %v2701
          %v2703 = vpop.f32.mrf.mxu0
          %2704 = vmatprep.mubr.f32.mxu0 0.0
          %2705 = vmatmul.mubr.f32.gmra.mxu0 %v2224
          %v2706 = vpop.f32.mrf.mxu0
          %v2707 = vadd.f32 %v2076, %v2706
          %v2708 = vpop.f32.mrf.mxu0
          %2709 = vmatprep.mubr.f32.mxu0 0.0
          %2710 = vmatmul.mubr.f32.gmra.mxu0 %v2227
          %v2711 = vpop.f32.mrf.mxu0
          %v2712 = vadd.f32 %v2081, %v2711
          %v2713 = vpop.f32.mrf.mxu0
          %2714 = vmatprep.mubr.f32.mxu0 0.0
          %2715 = vmatmul.mubr.f32.gmra.mxu0 %v2230
          %v2716 = vpop.f32.mrf.mxu0
          %v2717 = vadd.f32 %v2086, %v2716
          %v2718 = vpop.f32.mrf.mxu0
          %2719 = vmatprep.mubr.f32.mxu0 0.0
          %2720 = vmatmul.mubr.f32.gmra.mxu0 %v2233
          %v2721 = vpop.f32.mrf.mxu0
          %v2722 = vadd.f32 %v2091, %v2721
          %v2723 = vpop.f32.mrf.mxu0
          %2724 = vmatprep.mubr.f32.mxu0 0.0
          %2725 = vmatmul.mubr.f32.gmra.mxu0 %v2236
          %v2726 = vpop.f32.mrf.mxu0
          %v2727 = vadd.f32 %v2096, %v2726
          %v2728 = vpop.f32.mrf.mxu0
          %2729 = vmatprep.mubr.f32.mxu0 0.0
          %2730 = vmatmul.mubr.f32.gmra.mxu0 %v2239
          %v2731 = vpop.f32.mrf.mxu0
          %v2732 = vadd.f32 %v2101, %v2731
          %v2733 = vpop.f32.mrf.mxu0
          %2734 = vmatprep.mubr.f32.mxu0 0.0
          %2735 = vmatmul.mubr.f32.gmra.mxu0 %v2242
          %v2736 = vpop.f32.mrf.mxu0
          %v2737 = vadd.f32 %v2106, %v2736
          %v2738 = vpop.f32.mrf.mxu0
          %2739 = vmatprep.mubr.f32.mxu0 0.0
          %2740 = vmatmul.mubr.f32.gmra.mxu0 %v2245
          %v2741 = vpop.f32.mrf.mxu0
          %v2742 = vadd.f32 %v2111, %v2741
          %v2743 = vpop.f32.mrf.mxu0
          %2744 = vmatprep.mubr.f32.mxu0 0.0
          %2745 = vmatmul.mubr.f32.gmra.mxu0 %v2248
          %v2746 = vpop.f32.mrf.mxu0
          %v2747 = vadd.f32 %v2116, %v2746
          %v2748 = vpop.f32.mrf.mxu0
          %2749 = vmatprep.mubr.f32.mxu0 0.0
          %2750 = vmatmul.mubr.f32.gmra.mxu0 %v2251
          %v2751 = vpop.f32.mrf.mxu0
          %v2752 = vadd.f32 %v2121, %v2751
          %v2753 = vpop.f32.mrf.mxu0
          %2754 = vmatprep.mubr.f32.mxu0 0.0
          %2755 = vmatmul.mubr.f32.gmra.mxu0 %v2254
          %v2756 = vpop.f32.mrf.mxu0
          %v2757 = vadd.f32 %v2126, %v2756
          %v2758 = vpop.f32.mrf.mxu0
          %2759 = vmatprep.mubr.f32.mxu0 0.0
          %2760 = vmatmul.mubr.f32.gmra.mxu0 %v2257
          %v2761 = vpop.f32.mrf.mxu0
          %v2762 = vadd.f32 %v2131, %v2761
          %v2763 = vpop.f32.mrf.mxu0
          %2764 = vmatprep.mubr.f32.mxu0 0.0
          %2765 = vmatmul.mubr.f32.gmra.mxu0 %v2260
          %v2766 = vpop.f32.mrf.mxu0
          %v2767 = vadd.f32 %v2136, %v2766
          %v2768 = vpop.f32.mrf.mxu0
          %2769 = vmatprep.mubr.f32.mxu0 0.0
          %2770 = vmatmul.mubr.f32.gmra.mxu0 %v2263
          %v2771 = vpop.f32.mrf.mxu0
          %v2772 = vadd.f32 %v2141, %v2771
          %v2773 = vpop.f32.mrf.mxu0
          %2774 = vmatprep.mubr.f32.mxu0 0.0
          %2775 = vmatmul.mubr.f32.gmra.mxu0 %v2266
          %v2776 = vpop.f32.mrf.mxu0
          %v2777 = vadd.f32 %v2146, %v2776
          %v2778 = vpop.f32.mrf.mxu0
          %2779 = vmatprep.mubr.f32.mxu0 0.0
          %2780 = vmatmul.mubr.f32.gmra.mxu0 %v2269
          %v2781 = vpop.f32.mrf.mxu0
          %v2782 = vadd.f32 %v2151, %v2781
          %v2783 = vpop.f32.mrf.mxu0
          %2784 = vmatprep.mubr.f32.mxu0 0.0
          %2785 = vmatmul.mubr.f32.gmra.mxu0 %v2272
          %v2786 = vpop.f32.mrf.mxu0
          %v2787 = vadd.f32 %v2156, %v2786
          %v2788 = vpop.f32.mrf.mxu0
          %2789 = vmatprep.mubr.f32.mxu0 0.0
          %2790 = vmatmul.mubr.f32.gmra.mxu0 %v2275
          %v2791 = vpop.f32.mrf.mxu0
          %v2792 = vadd.f32 %v2161, %v2791
          %v2793 = vpop.f32.mrf.mxu0
          %2794 = vmatprep.mubr.f32.mxu0 0.0
          %2795 = vmatmul.mubr.f32.gmra.mxu0 %v2278
          %v2796 = vpop.f32.mrf.mxu0
          %v2797 = vadd.f32 %v2166, %v2796
          %v2798 = vpop.f32.mrf.mxu0
          %2799 = vdwg.mxu0
          %s2800 = scalar_lea.vmem %s6, 24
          %v2801 = vld [vmem:[%s2800] sm:$0xff]
          %v2802 = vld [vmem:[%s2800 + $0x8] sm:$0xf]
          %v2805 = vcombine.high %v2801, %v2801
          %v2807 = vsel %vm879, %v1496, 0
          %v2810 = vsel %vm879, %v1497, 0
          %v2813 = vsel %vm879, %v1498, 0
          %v2816 = vsel %vm879, %v1499, 0
          %v2819 = vsel %vm879, %v1500, 0
          %v2822 = vsel %vm879, %v1501, 0
          %v2825 = vsel %vm879, %v1502, 0
          %v2828 = vsel %vm879, %v1503, 0
          %v2831 = vsel %vm879, %v1504, 0
          %v2834 = vsel %vm879, %v1505, 0
          %v2837 = vsel %vm879, %v1506, 0
          %v2840 = vsel %vm879, %v1507, 0
          %v2843 = vsel %vm879, %v1508, 0
          %v2846 = vsel %vm879, %v1509, 0
          %v2849 = vsel %vm879, %v1510, 0
          %v2852 = vsel %vm879, %v1511, 0
          %v2855 = vsel %vm879, %v1512, 0
          %v2858 = vsel %vm879, %v1513, 0
          %v2861 = vsel %vm879, %v1514, 0
          %v2864 = vsel %vm879, %v1515, 0
          %v2867 = vsel %vm879, %v1516, 0
          %v2870 = vsel %vm879, %v1517, 0
          %v2873 = vsel %vm879, %v1518, 0
          %v2876 = vsel %vm879, %v1519, 0
          %v2879 = vsel %vm879, %v1520, 0
          %v2882 = vsel %vm879, %v1521, 0
          %v2885 = vsel %vm879, %v1522, 0
          %v2888 = vsel %vm879, %v1523, 0
          %v2891 = vsel %vm879, %v1524, 0
          %v2894 = vsel %vm879, %v1525, 0
          %v2897 = vsel %vm879, %v1526, 0
          %v2900 = vsel %vm879, %v1527, 0
          %v2903 = vsel %vm879, %v1528, 0
          %v2906 = vsel %vm879, %v1529, 0
          %v2909 = vsel %vm879, %v1530, 0
          %v2912 = vsel %vm879, %v1531, 0
          %v2914 = vsel %vm1648, %v2801, 0
          %v2916 = vsel %vm1648, %v2805, 0
          %v2918 = vsel %vm1648, %v2802, 0
          %2920 = vmatprep.subr.mxu0 0.0
          %2921 = vmatpush1.msra.mxu0 0.0
          %2922 = vmatprep.subr.mxu0 0.0
          %2923 = vmatpush1.msra.mxu0 0.0
          %2924 = vmatprep.subr.mxu0 0.0
          %2925 = vmatpush1.msra.mxu0 0.0
          %2926 = vmatprep.subr.mxu0 0.0
          %2927 = vmatpush1.msra.mxu0 0.0
          %2928 = vmatprep.subr.mxu0 0.0
          %2929 = vmatpush1.msra.mxu0 0.0
          %2930 = vmatprep.subr.mxu0 0.0
          %2931 = vmatpush1.msra.mxu0 0.0
          %2932 = vmatprep.subr.mxu0 0.0
          %2933 = vmatpush1.msra.mxu0 0.0
          %2934 = vmatprep.subr.mxu0 0.0
          %2935 = vmatpush1.msra.mxu0 0.0
          %2936 = vmatprep.subr.mxu0 0.0
          %2937 = vmatpush1.msra.mxu0 0.0
          %2938 = vmatprep.subr.mxu0 0.0
          %2939 = vmatpush1.msra.mxu0 0.0
          %2940 = vmatprep.subr.mxu0 0.0
          %2941 = vmatpush1.msra.mxu0 0.0
          %2942 = vmatprep.subr.mxu0 0.0
          %2943 = vmatpush1.msra.mxu0 0.0
          %2944 = vmatprep.subr.mxu0 0.0
          %2945 = vmatpush1.msra.mxu0 0.0
          %2946 = vmatprep.subr.mxu0 0.0
          %2947 = vmatpush1.msra.mxu0 0.0
          %2948 = vmatprep.subr.mxu0 0.0
          %2949 = vmatpush1.msra.mxu0 0.0
          %2950 = vmatprep.subr.mxu0 %v2916
          %2951 = vmatpush1.msra.mxu0 %v2914
          %2952 = vmatprep.subr.mxu0 0.0
          %2953 = vmatpush2.msra.mxu0 0.0
          %2954 = vmatprep.subr.mxu0 0.0
          %2955 = vmatpush2.msra.mxu0 0.0
          %2956 = vmatprep.subr.mxu0 0.0
          %2957 = vmatpush2.msra.mxu0 0.0
          %2958 = vmatprep.subr.mxu0 0.0
          %2959 = vmatpush2.msra.mxu0 0.0
          %2960 = vmatprep.subr.mxu0 0.0
          %2961 = vmatpush2.msra.mxu0 0.0
          %2962 = vmatprep.subr.mxu0 0.0
          %2963 = vmatpush2.msra.mxu0 0.0
          %2964 = vmatprep.subr.mxu0 0.0
          %2965 = vmatpush2.msra.mxu0 0.0
          %2966 = vmatprep.subr.mxu0 0.0
          %2967 = vmatpush2.msra.mxu0 0.0
          %2968 = vmatprep.subr.mxu0 0.0
          %2969 = vmatpush2.msra.mxu0 0.0
          %2970 = vmatprep.subr.mxu0 0.0
          %2971 = vmatpush2.msra.mxu0 0.0
          %2972 = vmatprep.subr.mxu0 0.0
          %2973 = vmatpush2.msra.mxu0 0.0
          %2974 = vmatprep.subr.mxu0 0.0
          %2975 = vmatpush2.msra.mxu0 0.0
          %2976 = vmatprep.subr.mxu0 0.0
          %2977 = vmatpush2.msra.mxu0 0.0
          %2978 = vmatprep.subr.mxu0 0.0
          %2979 = vmatpush2.msra.mxu0 0.0
          %2980 = vmatprep.subr.mxu0 0.0
          %2981 = vmatpush2.msra.mxu0 0.0
          %2982 = vmatprep.subr.mxu0 0.0
          %2983 = vmatpush2.msra.mxu0 0.0
          %2984 = vmatprep.mubr.f32.mxu0 0.0
          %2985 = vmatmul.mubr.f32.gmra.mxu0 %v2807
          %v2986 = vpop.f32.mrf.mxu0
          %v2987 = vadd.f32 0.0, %v2986
          %v2988 = vpop.f32.mrf.mxu0
          %2989 = vmatprep.mubr.f32.mxu0 0.0
          %2990 = vmatmul.mubr.f32.gmra.mxu0 %v2810
          %v2991 = vpop.f32.mrf.mxu0
          %v2992 = vadd.f32 0.0, %v2991
          %v2993 = vpop.f32.mrf.mxu0
          %2994 = vmatprep.mubr.f32.mxu0 0.0
          %2995 = vmatmul.mubr.f32.gmra.mxu0 %v2813
          %v2996 = vpop.f32.mrf.mxu0
          %v2997 = vadd.f32 0.0, %v2996
          %v2998 = vpop.f32.mrf.mxu0
          %v2999 = vadd.f32 0.0, %v2998
          %3000 = vmatprep.mubr.f32.mxu0 0.0
          %3001 = vmatmul.mubr.f32.gmra.mxu0 %v2816
          %v3002 = vpop.f32.mrf.mxu0
          %v3003 = vadd.f32 0.0, %v3002
          %v3004 = vpop.f32.mrf.mxu0
          %v3005 = vadd.f32 0.0, %v3004
          %3006 = vmatprep.mubr.f32.mxu0 0.0
          %3007 = vmatmul.mubr.f32.gmra.mxu0 %v2819
          %v3008 = vpop.f32.mrf.mxu0
          %v3009 = vadd.f32 0.0, %v3008
          %v3010 = vpop.f32.mrf.mxu0
          %v3011 = vadd.f32 0.0, %v3010
          %3012 = vmatprep.mubr.f32.mxu0 0.0
          %3013 = vmatmul.mubr.f32.gmra.mxu0 %v2822
          %v3014 = vpop.f32.mrf.mxu0
          %v3015 = vadd.f32 0.0, %v3014
          %v3016 = vpop.f32.mrf.mxu0
          %v3017 = vadd.f32 0.0, %v3016
          %3018 = vmatprep.mubr.f32.mxu0 0.0
          %3019 = vmatmul.mubr.f32.gmra.mxu0 %v2825
          %v3020 = vpop.f32.mrf.mxu0
          %v3021 = vadd.f32 0.0, %v3020
          %v3022 = vpop.f32.mrf.mxu0
          %v3023 = vadd.f32 0.0, %v3022
          %3024 = vmatprep.mubr.f32.mxu0 0.0
          %3025 = vmatmul.mubr.f32.gmra.mxu0 %v2828
          %v3026 = vpop.f32.mrf.mxu0
          %v3027 = vadd.f32 0.0, %v3026
          %v3028 = vpop.f32.mrf.mxu0
          %v3029 = vadd.f32 0.0, %v3028
          %3030 = vmatprep.mubr.f32.mxu0 0.0
          %3031 = vmatmul.mubr.f32.gmra.mxu0 %v2831
          %v3032 = vpop.f32.mrf.mxu0
          %v3033 = vadd.f32 0.0, %v3032
          %v3034 = vpop.f32.mrf.mxu0
          %v3035 = vadd.f32 0.0, %v3034
          %3036 = vmatprep.mubr.f32.mxu0 0.0
          %3037 = vmatmul.mubr.f32.gmra.mxu0 %v2834
          %v3038 = vpop.f32.mrf.mxu0
          %v3039 = vadd.f32 0.0, %v3038
          %v3040 = vpop.f32.mrf.mxu0
          %v3041 = vadd.f32 0.0, %v3040
          %3042 = vmatprep.mubr.f32.mxu0 0.0
          %3043 = vmatmul.mubr.f32.gmra.mxu0 %v2837
          %v3044 = vpop.f32.mrf.mxu0
          %v3045 = vadd.f32 0.0, %v3044
          %v3046 = vpop.f32.mrf.mxu0
          %v3047 = vadd.f32 0.0, %v3046
          %3048 = vmatprep.mubr.f32.mxu0 0.0
          %3049 = vmatmul.mubr.f32.gmra.mxu0 %v2840
          %v3050 = vpop.f32.mrf.mxu0
          %v3051 = vadd.f32 0.0, %v3050
          %v3052 = vpop.f32.mrf.mxu0
          %v3053 = vadd.f32 0.0, %v3052
          %3054 = vmatprep.mubr.f32.mxu0 0.0
          %3055 = vmatmul.mubr.f32.gmra.mxu0 %v2843
          %v3056 = vpop.f32.mrf.mxu0
          %v3057 = vadd.f32 0.0, %v3056
          %v3058 = vpop.f32.mrf.mxu0
          %v3059 = vadd.f32 0.0, %v3058
          %3060 = vmatprep.mubr.f32.mxu0 0.0
          %3061 = vmatmul.mubr.f32.gmra.mxu0 %v2846
          %v3062 = vpop.f32.mrf.mxu0
          %v3063 = vadd.f32 0.0, %v3062
          %v3064 = vpop.f32.mrf.mxu0
          %v3065 = vadd.f32 0.0, %v3064
          %3066 = vmatprep.mubr.f32.mxu0 0.0
          %3067 = vmatmul.mubr.f32.gmra.mxu0 %v2849
          %v3068 = vpop.f32.mrf.mxu0
          %v3069 = vadd.f32 0.0, %v3068
          %v3070 = vpop.f32.mrf.mxu0
          %v3071 = vadd.f32 0.0, %v3070
          %3072 = vmatprep.mubr.f32.mxu0 0.0
          %3073 = vmatmul.mubr.f32.gmra.mxu0 %v2852
          %v3074 = vpop.f32.mrf.mxu0
          %v3075 = vadd.f32 0.0, %v3074
          %v3076 = vpop.f32.mrf.mxu0
          %v3077 = vadd.f32 0.0, %v3076
          %3078 = vmatprep.mubr.f32.mxu0 0.0
          %3079 = vmatmul.mubr.f32.gmra.mxu0 %v2855
          %v3080 = vpop.f32.mrf.mxu0
          %v3081 = vadd.f32 0.0, %v3080
          %v3082 = vpop.f32.mrf.mxu0
          %v3083 = vadd.f32 0.0, %v3082
          %3084 = vmatprep.mubr.f32.mxu0 0.0
          %3085 = vmatmul.mubr.f32.gmra.mxu0 %v2858
          %v3086 = vpop.f32.mrf.mxu0
          %v3087 = vadd.f32 0.0, %v3086
          %v3088 = vpop.f32.mrf.mxu0
          %v3089 = vadd.f32 0.0, %v3088
          %3090 = vmatprep.mubr.f32.mxu0 0.0
          %3091 = vmatmul.mubr.f32.gmra.mxu0 %v2861
          %v3092 = vpop.f32.mrf.mxu0
          %v3093 = vadd.f32 0.0, %v3092
          %v3094 = vpop.f32.mrf.mxu0
          %v3095 = vadd.f32 0.0, %v3094
          %3096 = vmatprep.mubr.f32.mxu0 0.0
          %3097 = vmatmul.mubr.f32.gmra.mxu0 %v2864
          %v3098 = vpop.f32.mrf.mxu0
          %v3099 = vadd.f32 0.0, %v3098
          %v3100 = vpop.f32.mrf.mxu0
          %v3101 = vadd.f32 0.0, %v3100
          %3102 = vmatprep.mubr.f32.mxu0 0.0
          %3103 = vmatmul.mubr.f32.gmra.mxu0 %v2867
          %v3104 = vpop.f32.mrf.mxu0
          %v3105 = vadd.f32 0.0, %v3104
          %v3106 = vpop.f32.mrf.mxu0
          %v3107 = vadd.f32 0.0, %v3106
          %3108 = vmatprep.mubr.f32.mxu0 0.0
          %3109 = vmatmul.mubr.f32.gmra.mxu0 %v2870
          %v3110 = vpop.f32.mrf.mxu0
          %v3111 = vadd.f32 0.0, %v3110
          %v3112 = vpop.f32.mrf.mxu0
          %v3113 = vadd.f32 0.0, %v3112
          %3114 = vmatprep.mubr.f32.mxu0 0.0
          %3115 = vmatmul.mubr.f32.gmra.mxu0 %v2873
          %v3116 = vpop.f32.mrf.mxu0
          %v3117 = vadd.f32 0.0, %v3116
          %v3118 = vpop.f32.mrf.mxu0
          %v3119 = vadd.f32 0.0, %v3118
          %3120 = vmatprep.mubr.f32.mxu0 0.0
          %3121 = vmatmul.mubr.f32.gmra.mxu0 %v2876
          %v3122 = vpop.f32.mrf.mxu0
          %v3123 = vadd.f32 0.0, %v3122
          %v3124 = vpop.f32.mrf.mxu0
          %v3125 = vadd.f32 0.0, %v3124
          %3126 = vmatprep.mubr.f32.mxu0 0.0
          %3127 = vmatmul.mubr.f32.gmra.mxu0 %v2879
          %v3128 = vpop.f32.mrf.mxu0
          %v3129 = vadd.f32 0.0, %v3128
          %v3130 = vpop.f32.mrf.mxu0
          %v3131 = vadd.f32 0.0, %v3130
          %3132 = vmatprep.mubr.f32.mxu0 0.0
          %3133 = vmatmul.mubr.f32.gmra.mxu0 %v2882
          %v3134 = vpop.f32.mrf.mxu0
          %v3135 = vadd.f32 0.0, %v3134
          %v3136 = vpop.f32.mrf.mxu0
          %v3137 = vadd.f32 0.0, %v3136
          %3138 = vmatprep.mubr.f32.mxu0 0.0
          %3139 = vmatmul.mubr.f32.gmra.mxu0 %v2885
          %v3140 = vpop.f32.mrf.mxu0
          %v3141 = vadd.f32 0.0, %v3140
          %v3142 = vpop.f32.mrf.mxu0
          %v3143 = vadd.f32 0.0, %v3142
          %3144 = vmatprep.mubr.f32.mxu0 0.0
          %3145 = vmatmul.mubr.f32.gmra.mxu0 %v2888
          %v3146 = vpop.f32.mrf.mxu0
          %v3147 = vadd.f32 0.0, %v3146
          %v3148 = vpop.f32.mrf.mxu0
          %v3149 = vadd.f32 0.0, %v3148
          %3150 = vmatprep.mubr.f32.mxu0 0.0
          %3151 = vmatmul.mubr.f32.gmra.mxu0 %v2891
          %v3152 = vpop.f32.mrf.mxu0
          %v3153 = vadd.f32 0.0, %v3152
          %v3154 = vpop.f32.mrf.mxu0
          %v3155 = vadd.f32 0.0, %v3154
          %3156 = vmatprep.mubr.f32.mxu0 0.0
          %3157 = vmatmul.mubr.f32.gmra.mxu0 %v2894
          %v3158 = vpop.f32.mrf.mxu0
          %v3159 = vadd.f32 0.0, %v3158
          %v3160 = vpop.f32.mrf.mxu0
          %v3161 = vadd.f32 0.0, %v3160
          %3162 = vmatprep.mubr.f32.mxu0 0.0
          %3163 = vmatmul.mubr.f32.gmra.mxu0 %v2897
          %v3164 = vpop.f32.mrf.mxu0
          %v3165 = vadd.f32 0.0, %v3164
          %v3166 = vpop.f32.mrf.mxu0
          %v3167 = vadd.f32 0.0, %v3166
          %3168 = vmatprep.mubr.f32.mxu0 0.0
          %3169 = vmatmul.mubr.f32.gmra.mxu0 %v2900
          %v3170 = vpop.f32.mrf.mxu0
          %v3171 = vadd.f32 0.0, %v3170
          %v3172 = vpop.f32.mrf.mxu0
          %v3173 = vadd.f32 0.0, %v3172
          %3174 = vmatprep.mubr.f32.mxu0 0.0
          %3175 = vmatmul.mubr.f32.gmra.mxu0 %v2903
          %v3176 = vpop.f32.mrf.mxu0
          %v3177 = vpop.f32.mrf.mxu0
          %v3178 = vadd.f32 0.0, %v3177
          %3179 = vmatprep.mubr.f32.mxu0 0.0
          %3180 = vmatmul.mubr.f32.gmra.mxu0 %v2906
          %v3181 = vpop.f32.mrf.mxu0
          %v3182 = vpop.f32.mrf.mxu0
          %v3183 = vadd.f32 0.0, %v3182
          %3184 = vmatprep.mubr.f32.mxu0 0.0
          %3185 = vmatmul.mubr.f32.gmra.mxu0 %v2909
          %v3186 = vpop.f32.mrf.mxu0
          %v3187 = vpop.f32.mrf.mxu0
          %3188 = vmatprep.mubr.f32.mxu0 0.0
          %3189 = vmatmul.mubr.f32.gmra.mxu0 %v2912
          %v3190 = vpop.f32.mrf.mxu0
          %v3191 = vpop.f32.mrf.mxu0
          %3192 = vdwg.mxu0
          %3193 = vmatprep.subr.mxu0 0.0
          %3194 = vmatpush1.msra.mxu0 0.0
          %3195 = vmatprep.subr.mxu0 0.0
          %3196 = vmatpush1.msra.mxu0 0.0
          %3197 = vmatprep.subr.mxu0 0.0
          %3198 = vmatpush1.msra.mxu0 0.0
          %3199 = vmatprep.subr.mxu0 0.0
          %3200 = vmatpush1.msra.mxu0 0.0
          %3201 = vmatprep.subr.mxu0 0.0
          %3202 = vmatpush1.msra.mxu0 0.0
          %3203 = vmatprep.subr.mxu0 0.0
          %3204 = vmatpush1.msra.mxu0 0.0
          %3205 = vmatprep.subr.mxu0 0.0
          %3206 = vmatpush1.msra.mxu0 0.0
          %3207 = vmatprep.subr.mxu0 0.0
          %3208 = vmatpush1.msra.mxu0 0.0
          %3209 = vmatprep.subr.mxu0 0.0
          %3210 = vmatpush1.msra.mxu0 0.0
          %3211 = vmatprep.subr.mxu0 0.0
          %3212 = vmatpush1.msra.mxu0 0.0
          %3213 = vmatprep.subr.mxu0 0.0
          %3214 = vmatpush1.msra.mxu0 0.0
          %3215 = vmatprep.subr.mxu0 0.0
          %3216 = vmatpush1.msra.mxu0 0.0
          %3217 = vmatprep.subr.mxu0 0.0
          %3218 = vmatpush1.msra.mxu0 0.0
          %3219 = vmatprep.subr.mxu0 0.0
          %3220 = vmatpush1.msra.mxu0 0.0
          %3221 = vmatprep.subr.mxu0 0.0
          %3222 = vmatpush1.msra.mxu0 0.0
          %3223 = vmatprep.subr.mxu0 0.0
          %3224 = vmatpush1.msra.mxu0 %v2918
          %3225 = vmatprep.subr.mxu0 0.0
          %3226 = vmatpush2.msra.mxu0 0.0
          %3227 = vmatprep.subr.mxu0 0.0
          %3228 = vmatpush2.msra.mxu0 0.0
          %3229 = vmatprep.subr.mxu0 0.0
          %3230 = vmatpush2.msra.mxu0 0.0
          %3231 = vmatprep.subr.mxu0 0.0
          %3232 = vmatpush2.msra.mxu0 0.0
          %3233 = vmatprep.subr.mxu0 0.0
          %3234 = vmatpush2.msra.mxu0 0.0
          %3235 = vmatprep.subr.mxu0 0.0
          %3236 = vmatpush2.msra.mxu0 0.0
          %3237 = vmatprep.subr.mxu0 0.0
          %3238 = vmatpush2.msra.mxu0 0.0
          %3239 = vmatprep.subr.mxu0 0.0
          %3240 = vmatpush2.msra.mxu0 0.0
          %3241 = vmatprep.subr.mxu0 0.0
          %3242 = vmatpush2.msra.mxu0 0.0
          %3243 = vmatprep.subr.mxu0 0.0
          %3244 = vmatpush2.msra.mxu0 0.0
          %3245 = vmatprep.subr.mxu0 0.0
          %3246 = vmatpush2.msra.mxu0 0.0
          %3247 = vmatprep.subr.mxu0 0.0
          %3248 = vmatpush2.msra.mxu0 0.0
          %3249 = vmatprep.subr.mxu0 0.0
          %3250 = vmatpush2.msra.mxu0 0.0
          %3251 = vmatprep.subr.mxu0 0.0
          %3252 = vmatpush2.msra.mxu0 0.0
          %3253 = vmatprep.subr.mxu0 0.0
          %3254 = vmatpush2.msra.mxu0 0.0
          %3255 = vmatprep.subr.mxu0 0.0
          %3256 = vmatpush2.msra.mxu0 0.0
          %3257 = vmatprep.mubr.f32.mxu0 0.0
          %3258 = vmatmul.mubr.f32.gmra.mxu0 %v2807
          %v3259 = vpop.f32.mrf.mxu0
          %v3260 = vpop.f32.mrf.mxu0
          %3261 = vmatprep.mubr.f32.mxu0 0.0
          %3262 = vmatmul.mubr.f32.gmra.mxu0 %v2810
          %v3263 = vpop.f32.mrf.mxu0
          %v3264 = vpop.f32.mrf.mxu0
          %3265 = vmatprep.mubr.f32.mxu0 0.0
          %3266 = vmatmul.mubr.f32.gmra.mxu0 %v2813
          %v3267 = vpop.f32.mrf.mxu0
          %v3268 = vpop.f32.mrf.mxu0
          %3269 = vmatprep.mubr.f32.mxu0 0.0
          %3270 = vmatmul.mubr.f32.gmra.mxu0 %v2816
          %v3271 = vpop.f32.mrf.mxu0
          %v3272 = vpop.f32.mrf.mxu0
          %3273 = vmatprep.mubr.f32.mxu0 0.0
          %3274 = vmatmul.mubr.f32.gmra.mxu0 %v2819
          %v3275 = vpop.f32.mrf.mxu0
          %v3276 = vadd.f32 0.0, %v3275
          %v3277 = vpop.f32.mrf.mxu0
          %3278 = vmatprep.mubr.f32.mxu0 0.0
          %3279 = vmatmul.mubr.f32.gmra.mxu0 %v2822
          %v3280 = vpop.f32.mrf.mxu0
          %v3281 = vadd.f32 0.0, %v3280
          %v3282 = vpop.f32.mrf.mxu0
          %3283 = vmatprep.mubr.f32.mxu0 0.0
          %3284 = vmatmul.mubr.f32.gmra.mxu0 %v2825
          %v3285 = vpop.f32.mrf.mxu0
          %v3286 = vadd.f32 0.0, %v3285
          %v3287 = vpop.f32.mrf.mxu0
          %3288 = vmatprep.mubr.f32.mxu0 0.0
          %3289 = vmatmul.mubr.f32.gmra.mxu0 %v2828
          %v3290 = vpop.f32.mrf.mxu0
          %v3291 = vadd.f32 0.0, %v3290
          %v3292 = vpop.f32.mrf.mxu0
          %3293 = vmatprep.mubr.f32.mxu0 0.0
          %3294 = vmatmul.mubr.f32.gmra.mxu0 %v2831
          %v3295 = vpop.f32.mrf.mxu0
          %v3296 = vadd.f32 0.0, %v3295
          %v3297 = vpop.f32.mrf.mxu0
          %3298 = vmatprep.mubr.f32.mxu0 0.0
          %3299 = vmatmul.mubr.f32.gmra.mxu0 %v2834
          %v3300 = vpop.f32.mrf.mxu0
          %v3301 = vadd.f32 0.0, %v3300
          %v3302 = vpop.f32.mrf.mxu0
          %3303 = vmatprep.mubr.f32.mxu0 0.0
          %3304 = vmatmul.mubr.f32.gmra.mxu0 %v2837
          %v3305 = vpop.f32.mrf.mxu0
          %v3306 = vadd.f32 0.0, %v3305
          %v3307 = vpop.f32.mrf.mxu0
          %3308 = vmatprep.mubr.f32.mxu0 0.0
          %3309 = vmatmul.mubr.f32.gmra.mxu0 %v2840
          %v3310 = vpop.f32.mrf.mxu0
          %v3311 = vadd.f32 0.0, %v3310
          %v3312 = vpop.f32.mrf.mxu0
          %3313 = vmatprep.mubr.f32.mxu0 0.0
          %3314 = vmatmul.mubr.f32.gmra.mxu0 %v2843
          %v3315 = vpop.f32.mrf.mxu0
          %v3316 = vadd.f32 0.0, %v3315
          %v3317 = vpop.f32.mrf.mxu0
          %3318 = vmatprep.mubr.f32.mxu0 0.0
          %3319 = vmatmul.mubr.f32.gmra.mxu0 %v2846
          %v3320 = vpop.f32.mrf.mxu0
          %v3321 = vadd.f32 0.0, %v3320
          %v3322 = vpop.f32.mrf.mxu0
          %3323 = vmatprep.mubr.f32.mxu0 0.0
          %3324 = vmatmul.mubr.f32.gmra.mxu0 %v2849
          %v3325 = vpop.f32.mrf.mxu0
          %v3326 = vadd.f32 0.0, %v3325
          %v3327 = vpop.f32.mrf.mxu0
          %3328 = vmatprep.mubr.f32.mxu0 0.0
          %3329 = vmatmul.mubr.f32.gmra.mxu0 %v2852
          %v3330 = vpop.f32.mrf.mxu0
          %v3331 = vadd.f32 0.0, %v3330
          %v3332 = vpop.f32.mrf.mxu0
          %3333 = vmatprep.mubr.f32.mxu0 0.0
          %3334 = vmatmul.mubr.f32.gmra.mxu0 %v2855
          %v3335 = vpop.f32.mrf.mxu0
          %v3336 = vadd.f32 0.0, %v3335
          %v3337 = vpop.f32.mrf.mxu0
          %3338 = vmatprep.mubr.f32.mxu0 0.0
          %3339 = vmatmul.mubr.f32.gmra.mxu0 %v2858
          %v3340 = vpop.f32.mrf.mxu0
          %v3341 = vadd.f32 0.0, %v3340
          %v3342 = vpop.f32.mrf.mxu0
          %3343 = vmatprep.mubr.f32.mxu0 0.0
          %3344 = vmatmul.mubr.f32.gmra.mxu0 %v2861
          %v3345 = vpop.f32.mrf.mxu0
          %v3346 = vadd.f32 0.0, %v3345
          %v3347 = vpop.f32.mrf.mxu0
          %3348 = vmatprep.mubr.f32.mxu0 0.0
          %3349 = vmatmul.mubr.f32.gmra.mxu0 %v2864
          %v3350 = vpop.f32.mrf.mxu0
          %v3351 = vadd.f32 0.0, %v3350
          %v3352 = vpop.f32.mrf.mxu0
          %3353 = vmatprep.mubr.f32.mxu0 0.0
          %3354 = vmatmul.mubr.f32.gmra.mxu0 %v2867
          %v3355 = vpop.f32.mrf.mxu0
          %v3356 = vadd.f32 0.0, %v3355
          %v3357 = vpop.f32.mrf.mxu0
          %3358 = vmatprep.mubr.f32.mxu0 0.0
          %3359 = vmatmul.mubr.f32.gmra.mxu0 %v2870
          %v3360 = vpop.f32.mrf.mxu0
          %v3361 = vadd.f32 0.0, %v3360
          %v3362 = vpop.f32.mrf.mxu0
          %3363 = vmatprep.mubr.f32.mxu0 0.0
          %3364 = vmatmul.mubr.f32.gmra.mxu0 %v2873
          %v3365 = vpop.f32.mrf.mxu0
          %v3366 = vadd.f32 0.0, %v3365
          %v3367 = vpop.f32.mrf.mxu0
          %3368 = vmatprep.mubr.f32.mxu0 0.0
          %3369 = vmatmul.mubr.f32.gmra.mxu0 %v2876
          %v3370 = vpop.f32.mrf.mxu0
          %v3371 = vadd.f32 0.0, %v3370
          %v3372 = vpop.f32.mrf.mxu0
          %3373 = vmatprep.mubr.f32.mxu0 0.0
          %3374 = vmatmul.mubr.f32.gmra.mxu0 %v2879
          %v3375 = vpop.f32.mrf.mxu0
          %v3376 = vadd.f32 0.0, %v3375
          %v3377 = vpop.f32.mrf.mxu0
          %3378 = vmatprep.mubr.f32.mxu0 0.0
          %3379 = vmatmul.mubr.f32.gmra.mxu0 %v2882
          %v3380 = vpop.f32.mrf.mxu0
          %v3381 = vadd.f32 0.0, %v3380
          %v3382 = vpop.f32.mrf.mxu0
          %3383 = vmatprep.mubr.f32.mxu0 0.0
          %3384 = vmatmul.mubr.f32.gmra.mxu0 %v2885
          %v3385 = vpop.f32.mrf.mxu0
          %v3386 = vadd.f32 0.0, %v3385
          %v3387 = vpop.f32.mrf.mxu0
          %3388 = vmatprep.mubr.f32.mxu0 0.0
          %3389 = vmatmul.mubr.f32.gmra.mxu0 %v2888
          %v3390 = vpop.f32.mrf.mxu0
          %v3391 = vadd.f32 0.0, %v3390
          %v3392 = vpop.f32.mrf.mxu0
          %3393 = vmatprep.mubr.f32.mxu0 0.0
          %3394 = vmatmul.mubr.f32.gmra.mxu0 %v2891
          %v3395 = vpop.f32.mrf.mxu0
          %v3396 = vadd.f32 0.0, %v3395
          %v3397 = vpop.f32.mrf.mxu0
          %3398 = vmatprep.mubr.f32.mxu0 0.0
          %3399 = vmatmul.mubr.f32.gmra.mxu0 %v2894
          %v3400 = vpop.f32.mrf.mxu0
          %v3401 = vadd.f32 0.0, %v3400
          %v3402 = vpop.f32.mrf.mxu0
          %3403 = vmatprep.mubr.f32.mxu0 0.0
          %3404 = vmatmul.mubr.f32.gmra.mxu0 %v2897
          %v3405 = vpop.f32.mrf.mxu0
          %v3406 = vadd.f32 0.0, %v3405
          %v3407 = vpop.f32.mrf.mxu0
          %3408 = vmatprep.mubr.f32.mxu0 0.0
          %3409 = vmatmul.mubr.f32.gmra.mxu0 %v2900
          %v3410 = vpop.f32.mrf.mxu0
          %v3411 = vadd.f32 0.0, %v3410
          %v3412 = vpop.f32.mrf.mxu0
          %3413 = vmatprep.mubr.f32.mxu0 0.0
          %3414 = vmatmul.mubr.f32.gmra.mxu0 %v2903
          %v3415 = vpop.f32.mrf.mxu0
          %v3416 = vadd.f32 0.0, %v3415
          %v3417 = vpop.f32.mrf.mxu0
          %3418 = vmatprep.mubr.f32.mxu0 0.0
          %3419 = vmatmul.mubr.f32.gmra.mxu0 %v2906
          %v3420 = vpop.f32.mrf.mxu0
          %v3421 = vadd.f32 0.0, %v3420
          %v3422 = vpop.f32.mrf.mxu0
          %3423 = vmatprep.mubr.f32.mxu0 0.0
          %3424 = vmatmul.mubr.f32.gmra.mxu0 %v2909
          %v3425 = vpop.f32.mrf.mxu0
          %v3426 = vadd.f32 0.0, %v3425
          %v3427 = vpop.f32.mrf.mxu0
          %3428 = vmatprep.mubr.f32.mxu0 0.0
          %3429 = vmatmul.mubr.f32.gmra.mxu0 %v2912
          %v3430 = vpop.f32.mrf.mxu0
          %v3431 = vadd.f32 0.0, %v3430
          %v3432 = vpop.f32.mrf.mxu0
          %3433 = vdwg.mxu0
          %v3434 = vadd.f32 %v2353, %v2987
          %v3435 = vadd.f32 %v2358, %v2992
          %v3436 = vadd.f32 %v2363, %v2997
          %v3437 = vadd.f32 %v2365, %v2999
          %v3438 = vadd.f32 %v2369, %v3003
          %v3439 = vadd.f32 %v2371, %v3005
          %v3440 = vadd.f32 %v2375, %v3009
          %v3441 = vadd.f32 %v2377, %v3011
          %v3442 = vadd.f32 %v2642, %v3276
          %v3443 = vadd.f32 %v2381, %v3015
          %v3444 = vadd.f32 %v2383, %v3017
          %v3445 = vadd.f32 %v2647, %v3281
          %v3446 = vadd.f32 %v2387, %v3021
          %v3447 = vadd.f32 %v2389, %v3023
          %v3448 = vadd.f32 %v2652, %v3286
          %v3449 = vadd.f32 %v2393, %v3027
          %v3450 = vadd.f32 %v2395, %v3029
          %v3451 = vadd.f32 %v2657, %v3291
          %v3452 = vadd.f32 %v2399, %v3033
          %v3453 = vadd.f32 %v2401, %v3035
          %v3454 = vadd.f32 %v2662, %v3296
          %v3455 = vadd.f32 %v2405, %v3039
          %v3456 = vadd.f32 %v2407, %v3041
          %v3457 = vadd.f32 %v2667, %v3301
          %v3458 = vadd.f32 %v2411, %v3045
          %v3459 = vadd.f32 %v2413, %v3047
          %v3460 = vadd.f32 %v2672, %v3306
          %v3461 = vadd.f32 %v2417, %v3051
          %v3462 = vadd.f32 %v2419, %v3053
          %v3463 = vadd.f32 %v2677, %v3311
          %v3464 = vadd.f32 %v2423, %v3057
          %v3465 = vadd.f32 %v2425, %v3059
          %v3466 = vadd.f32 %v2682, %v3316
          %v3467 = vadd.f32 %v2429, %v3063
          %v3468 = vadd.f32 %v2431, %v3065
          %v3469 = vadd.f32 %v2687, %v3321
          %v3470 = vadd.f32 %v2435, %v3069
          %v3471 = vadd.f32 %v2437, %v3071
          %v3472 = vadd.f32 %v2692, %v3326
          %v3473 = vadd.f32 %v2441, %v3075
          %v3474 = vadd.f32 %v2443, %v3077
          %v3475 = vadd.f32 %v2697, %v3331
          %v3476 = vadd.f32 %v2447, %v3081
          %v3477 = vadd.f32 %v2449, %v3083
          %v3478 = vadd.f32 %v2702, %v3336
          %v3479 = vadd.f32 %v2453, %v3087
          %v3480 = vadd.f32 %v2455, %v3089
          %v3481 = vadd.f32 %v2707, %v3341
          %v3482 = vadd.f32 %v2459, %v3093
          %v3483 = vadd.f32 %v2461, %v3095
          %v3484 = vadd.f32 %v2712, %v3346
          %v3485 = vadd.f32 %v2465, %v3099
          %v3486 = vadd.f32 %v2467, %v3101
          %v3487 = vadd.f32 %v2717, %v3351
          %v3488 = vadd.f32 %v2471, %v3105
          %v3489 = vadd.f32 %v2473, %v3107
          %v3490 = vadd.f32 %v2722, %v3356
          %v3491 = vadd.f32 %v2477, %v3111
          %v3492 = vadd.f32 %v2479, %v3113
          %v3493 = vadd.f32 %v2727, %v3361
          %v3494 = vadd.f32 %v2483, %v3117
          %v3495 = vadd.f32 %v2485, %v3119
          %v3496 = vadd.f32 %v2732, %v3366
          %v3497 = vadd.f32 %v2489, %v3123
          %v3498 = vadd.f32 %v2491, %v3125
          %v3499 = vadd.f32 %v2737, %v3371
          %v3500 = vadd.f32 %v2495, %v3129
          %v3501 = vadd.f32 %v2497, %v3131
          %v3502 = vadd.f32 %v2742, %v3376
          %v3503 = vadd.f32 %v2501, %v3135
          %v3504 = vadd.f32 %v2503, %v3137
          %v3505 = vadd.f32 %v2747, %v3381
          %v3506 = vadd.f32 %v2507, %v3141
          %v3507 = vadd.f32 %v2509, %v3143
          %v3508 = vadd.f32 %v2752, %v3386
          %v3509 = vadd.f32 %v2513, %v3147
          %v3510 = vadd.f32 %v2515, %v3149
          %v3511 = vadd.f32 %v2757, %v3391
          %v3512 = vadd.f32 %v2519, %v3153
          %v3513 = vadd.f32 %v2521, %v3155
          %v3514 = vadd.f32 %v2762, %v3396
          %v3515 = vadd.f32 %v2525, %v3159
          %v3516 = vadd.f32 %v2527, %v3161
          %v3517 = vadd.f32 %v2767, %v3401
          %v3518 = vadd.f32 %v2531, %v3165
          %v3519 = vadd.f32 %v2533, %v3167
          %v3520 = vadd.f32 %v2772, %v3406
          %v3521 = vadd.f32 %v2537, %v3171
          %v3522 = vadd.f32 %v2539, %v3173
          %v3523 = vadd.f32 %v2777, %v3411
          %v3524 = vadd.f32 %v2544, %v3178
          %v3525 = vadd.f32 %v2782, %v3416
          %v3526 = vadd.f32 %v2549, %v3183
          %v3527 = vadd.f32 %v2787, %v3421
          %v3528 = vadd.f32 %v2792, %v3426
          %v3529 = vadd.f32 %v2797, %v3431
          %v3530 = vadd.f32 %v3434, %v3437
          %v3531 = vadd.f32 %v3435, %v3439
          %v3532 = vadd.f32 %v3436, %v3441
          %v3533 = vadd.f32 %v3438, %v3444
          %v3534 = vadd.f32 %v3440, %v3447
          %v3535 = vadd.f32 %v3443, %v3450
          %v3536 = vadd.f32 %v3446, %v3453
          %v3537 = vadd.f32 %v3449, %v3456
          %v3538 = vadd.f32 %v3452, %v3459
          %v3539 = vadd.f32 %v3455, %v3462
          %v3540 = vadd.f32 %v3458, %v3465
          %v3541 = vadd.f32 %v3461, %v3468
          %v3542 = vadd.f32 %v3464, %v3471
          %v3543 = vadd.f32 %v3467, %v3474
          %v3544 = vadd.f32 %v3470, %v3477
          %v3545 = vadd.f32 %v3473, %v3480
          %v3546 = vadd.f32 %v3476, %v3483
          %v3547 = vadd.f32 %v3479, %v3486
          %v3548 = vadd.f32 %v3482, %v3489
          %v3549 = vadd.f32 %v3485, %v3492
          %v3550 = vadd.f32 %v3488, %v3495
          %v3551 = vadd.f32 %v3491, %v3498
          %v3552 = vadd.f32 %v3494, %v3501
          %v3553 = vadd.f32 %v3497, %v3504
          %v3554 = vadd.f32 %v3500, %v3507
          %v3555 = vadd.f32 %v3503, %v3510
          %v3556 = vadd.f32 %v3506, %v3513
          %v3557 = vadd.f32 %v3509, %v3516
          %v3558 = vadd.f32 %v3512, %v3519
          %v3559 = vadd.f32 %v3515, %v3522
          %v3560 = vadd.f32 %v3518, %v3524
          %v3561 = vadd.f32 %v3521, %v3526
          %v3562 = vadd.f32 %v3530, %v3442
          %v3563 = vadd.f32 %v3531, %v3445
          %v3564 = vadd.f32 %v3532, %v3448
          %v3565 = vadd.f32 %v3533, %v3451
          %v3566 = vadd.f32 %v3534, %v3454
          %v3567 = vadd.f32 %v3535, %v3457
          %v3568 = vadd.f32 %v3536, %v3460
          %v3569 = vadd.f32 %v3537, %v3463
          %v3570 = vadd.f32 %v3538, %v3466
          %v3571 = vadd.f32 %v3539, %v3469
          %v3572 = vadd.f32 %v3540, %v3472
          %v3573 = vadd.f32 %v3541, %v3475
          %v3574 = vadd.f32 %v3542, %v3478
          %v3575 = vadd.f32 %v3543, %v3481
          %v3576 = vadd.f32 %v3544, %v3484
          %v3577 = vadd.f32 %v3545, %v3487
          %v3578 = vadd.f32 %v3546, %v3490
          %v3579 = vadd.f32 %v3547, %v3493
          %v3580 = vadd.f32 %v3548, %v3496
          %v3581 = vadd.f32 %v3549, %v3499
          %v3582 = vadd.f32 %v3550, %v3502
          %v3583 = vadd.f32 %v3551, %v3505
          %v3584 = vadd.f32 %v3552, %v3508
          %v3585 = vadd.f32 %v3553, %v3511
          %v3586 = vadd.f32 %v3554, %v3514
          %v3587 = vadd.f32 %v3555, %v3517
          %v3588 = vadd.f32 %v3556, %v3520
          %v3589 = vadd.f32 %v3557, %v3523
          %v3590 = vadd.f32 %v3558, %v3525
          %v3591 = vadd.f32 %v3559, %v3527
          %v3592 = vadd.f32 %v3560, %v3528
          %v3593 = vadd.f32 %v3561, %v3529
          %v3594 = vld [vmem:[%s8] sm:$0x1]
          %v3596 = vlaneseq
          %v3597 = vshrl.u32 %v3596, 7
          %v3598 = vsub.s32 0, %v3597
          %v3599 = vrot.slane %v3594, %v3598
          %v3601 = vadd.f32 %v3562, %v3599
          %v3602 = vadd.f32 %v3563, %v3599
          %v3603 = vadd.f32 %v3564, %v3599
          %v3604 = vadd.f32 %v3565, %v3599
          %v3605 = vadd.f32 %v3566, %v3599
          %v3606 = vadd.f32 %v3567, %v3599
          %v3607 = vadd.f32 %v3568, %v3599
          %v3608 = vadd.f32 %v3569, %v3599
          %v3609 = vadd.f32 %v3570, %v3599
          %v3610 = vadd.f32 %v3571, %v3599
          %v3611 = vadd.f32 %v3572, %v3599
          %v3612 = vadd.f32 %v3573, %v3599
          %v3613 = vadd.f32 %v3574, %v3599
          %v3614 = vadd.f32 %v3575, %v3599
          %v3615 = vadd.f32 %v3576, %v3599
          %v3616 = vadd.f32 %v3577, %v3599
          %v3617 = vadd.f32 %v3578, %v3599
          %v3618 = vadd.f32 %v3579, %v3599
          %v3619 = vadd.f32 %v3580, %v3599
          %v3620 = vadd.f32 %v3581, %v3599
          %v3621 = vadd.f32 %v3582, %v3599
          %v3622 = vadd.f32 %v3583, %v3599
          %v3623 = vadd.f32 %v3584, %v3599
          %v3624 = vadd.f32 %v3585, %v3599
          %v3625 = vadd.f32 %v3586, %v3599
          %v3626 = vadd.f32 %v3587, %v3599
          %v3627 = vadd.f32 %v3588, %v3599
          %v3628 = vadd.f32 %v3589, %v3599
          %v3629 = vadd.f32 %v3590, %v3599
          %v3630 = vadd.f32 %v3591, %v3599
          %v3631 = vadd.f32 %v3592, %v3599
          %v3632 = vadd.f32 %v3593, %v3599
          %3633 = vst [vmem:[#allocation2] sm:$0xff] %v3601
          %3634 = vst [vmem:[#allocation2 + $0x8] sm:$0xff] %v3602
          %3635 = vst [vmem:[#allocation2 + $0x10] sm:$0xff] %v3603
          %3636 = vst [vmem:[#allocation2 + $0x18] sm:$0xff] %v3604
          %3637 = vst [vmem:[#allocation2 + $0x20] sm:$0xff] %v3605
          %3638 = vst [vmem:[#allocation2 + $0x28] sm:$0xff] %v3606
          %3639 = vst [vmem:[#allocation2 + $0x30] sm:$0xff] %v3607
          %3640 = vst [vmem:[#allocation2 + $0x38] sm:$0xff] %v3608
          %3641 = vst [vmem:[#allocation2 + $0x40] sm:$0xff] %v3609
          %3642 = vst [vmem:[#allocation2 + $0x48] sm:$0xff] %v3610
          %3643 = vst [vmem:[#allocation2 + $0x50] sm:$0xff] %v3611
          %3644 = vst [vmem:[#allocation2 + $0x58] sm:$0xff] %v3612
          %3645 = vst [vmem:[#allocation2 + $0x60] sm:$0xff] %v3613
          %3646 = vst [vmem:[#allocation2 + $0x68] sm:$0xff] %v3614
          %3647 = vst [vmem:[#allocation2 + $0x70] sm:$0xff] %v3615
          %3648 = vst [vmem:[#allocation2 + $0x78] sm:$0xff] %v3616
          %3649 = vst [vmem:[#allocation2 + $0x80] sm:$0xff] %v3617
          %3650 = vst [vmem:[#allocation2 + $0x88] sm:$0xff] %v3618
          %3651 = vst [vmem:[#allocation2 + $0x90] sm:$0xff] %v3619
          %3652 = vst [vmem:[#allocation2 + $0x98] sm:$0xff] %v3620
          %3653 = vst [vmem:[#allocation2 + $0xa0] sm:$0xff] %v3621
          %3654 = vst [vmem:[#allocation2 + $0xa8] sm:$0xff] %v3622
          %3655 = vst [vmem:[#allocation2 + $0xb0] sm:$0xff] %v3623
          %3656 = vst [vmem:[#allocation2 + $0xb8] sm:$0xff] %v3624
          %3657 = vst [vmem:[#allocation2 + $0xc0] sm:$0xff] %v3625
          %3658 = vst [vmem:[#allocation2 + $0xc8] sm:$0xff] %v3626
          %3659 = vst [vmem:[#allocation2 + $0xd0] sm:$0xff] %v3627
          %3660 = vst [vmem:[#allocation2 + $0xd8] sm:$0xff] %v3628
          %3661 = vst [vmem:[#allocation2 + $0xe0] sm:$0xff] %v3629
          %3662 = vst [vmem:[#allocation2 + $0xe8] sm:$0xff] %v3630
          %3663 = vst [vmem:[#allocation2 + $0xf0] sm:$0xff] %v3631
          %3664 = vst [vmem:[#allocation2 + $0xf8] sm:$0xff] %v3632
        $region68: #{tpu_custom_call.1} parent=63 // pred_fallthru
          _
        %v3665 = vld [vmem:[#allocation2] sm:$0xff]
        %v3666 = vld [vmem:[#allocation2 + $0x8] sm:$0xff]
        %v3667 = vld [vmem:[#allocation2 + $0x10] sm:$0xff]
        %v3668 = vld [vmem:[#allocation2 + $0x18] sm:$0xff]
        %v3669 = vld [vmem:[#allocation2 + $0x20] sm:$0xff]
        %v3670 = vld [vmem:[#allocation2 + $0x28] sm:$0xff]
        %v3671 = vld [vmem:[#allocation2 + $0x30] sm:$0xff]
        %v3672 = vld [vmem:[#allocation2 + $0x38] sm:$0xff]
        %v3673 = vld [vmem:[#allocation2 + $0x40] sm:$0xff]
        %v3674 = vld [vmem:[#allocation2 + $0x48] sm:$0xff]
        %v3675 = vld [vmem:[#allocation2 + $0x50] sm:$0xff]
        %v3676 = vld [vmem:[#allocation2 + $0x58] sm:$0xff]
        %v3677 = vld [vmem:[#allocation2 + $0x60] sm:$0xff]
        %v3678 = vld [vmem:[#allocation2 + $0x68] sm:$0xff]
        %v3679 = vld [vmem:[#allocation2 + $0x70] sm:$0xff]
        %v3680 = vld [vmem:[#allocation2 + $0x78] sm:$0xff]
        %v3681 = vld [vmem:[#allocation2 + $0x80] sm:$0xff]
        %v3682 = vld [vmem:[#allocation2 + $0x88] sm:$0xff]
        %v3683 = vld [vmem:[#allocation2 + $0x90] sm:$0xff]
        %v3684 = vld [vmem:[#allocation2 + $0x98] sm:$0xff]
        %v3685 = vld [vmem:[#allocation2 + $0xa0] sm:$0xff]
        %v3686 = vld [vmem:[#allocation2 + $0xa8] sm:$0xff]
        %v3687 = vld [vmem:[#allocation2 + $0xb0] sm:$0xff]
        %v3688 = vld [vmem:[#allocation2 + $0xb8] sm:$0xff]
        %v3689 = vld [vmem:[#allocation2 + $0xc0] sm:$0xff]
        %v3690 = vld [vmem:[#allocation2 + $0xc8] sm:$0xff]
        %v3691 = vld [vmem:[#allocation2 + $0xd0] sm:$0xff]
        %v3692 = vld [vmem:[#allocation2 + $0xd8] sm:$0xff]
        %v3693 = vld [vmem:[#allocation2 + $0xe0] sm:$0xff]
        %v3694 = vld [vmem:[#allocation2 + $0xe8] sm:$0xff]
        %v3695 = vld [vmem:[#allocation2 + $0xf0] sm:$0xff]
        %v3696 = vld [vmem:[#allocation2 + $0xf8] sm:$0xff]
        %v3697 = vld [vmem:[%s716] sm:$0xff]
        %v3698 = vld [vmem:[%s716 + $0x8] sm:$0xff]
        %v3699 = vstv %s761
        %v3700 = vmul.f32 %v3697, %v3699
        %v3701 = vmul.f32 %v3698, %v3699
        %v3702 = vld [vmem:[%s734] sm:$0xff]
        %v3703 = vld [vmem:[%s734 + $0x8] sm:$0xff]
        %v3704 = vld [vmem:[%s734 + $0x10] sm:$0xff]
        %v3705 = vld [vmem:[%s734 + $0x18] sm:$0xff]
        %v3706 = vld [vmem:[%s734 + $0x20] sm:$0xff]
        %v3707 = vld [vmem:[%s734 + $0x28] sm:$0xff]
        %v3708 = vld [vmem:[%s734 + $0x30] sm:$0xff]
        %v3709 = vld [vmem:[%s734 + $0x38] sm:$0xff]
        %v3710 = vld [vmem:[%s734 + $0x40] sm:$0xff]
        %v3711 = vld [vmem:[%s734 + $0x48] sm:$0xff]
        %v3712 = vld [vmem:[%s734 + $0x50] sm:$0xff]
        %v3713 = vld [vmem:[%s734 + $0x58] sm:$0xff]
        %v3714 = vld [vmem:[%s734 + $0x60] sm:$0xff]
        %v3715 = vld [vmem:[%s734 + $0x68] sm:$0xff]
        %v3716 = vld [vmem:[%s734 + $0x70] sm:$0xff]
        %v3717 = vld [vmem:[%s734 + $0x78] sm:$0xff]
        %v3718 = vld [vmem:[%s734 + $0x80] sm:$0xff]
        %v3719 = vld [vmem:[%s734 + $0x88] sm:$0xff]
        %v3720 = vld [vmem:[%s734 + $0x90] sm:$0xff]
        %v3721 = vld [vmem:[%s734 + $0x98] sm:$0xff]
        %v3722 = vld [vmem:[%s734 + $0xa0] sm:$0xff]
        %v3723 = vld [vmem:[%s734 + $0xa8] sm:$0xff]
        %v3724 = vld [vmem:[%s734 + $0xb0] sm:$0xff]
        %v3725 = vld [vmem:[%s734 + $0xb8] sm:$0xff]
        %v3726 = vld [vmem:[%s734 + $0xc0] sm:$0xff]
        %v3727 = vld [vmem:[%s734 + $0xc8] sm:$0xff]
        %v3728 = vld [vmem:[%s734 + $0xd0] sm:$0xff]
        %v3729 = vld [vmem:[%s734 + $0xd8] sm:$0xff]
        %v3730 = vld [vmem:[%s734 + $0xe0] sm:$0xff]
        %v3731 = vld [vmem:[%s734 + $0xe8] sm:$0xff]
        %v3732 = vld [vmem:[%s734 + $0xf0] sm:$0xff]
        %v3733 = vld [vmem:[%s734 + $0xf8] sm:$0xff]
        %v3734 = vld [vmem:[%s752] sm:$0xff]
        %v3735 = vld [vmem:[%s752 + $0x8] sm:$0xff]
        %v3736 = vmul.f32 %v3734, %v3699
        %v3737 = vmul.f32 %v3735, %v3699
        %vm3738 = vcmask 31744
        %3739 = vst.msk [vmem:[#allocation4] sm:$0xff] %vm3738, %v3700
        %3740 = vst.msk [vmem:[#allocation4 + $0x8] sm:$0xff] %vm3738, %v3701
        %3741 = vst.msk [vmem:[#allocation4 + $0x10] sm:$0xff] %vm3738, %v3702
        %3742 = vst.msk [vmem:[#allocation4 + $0x18] sm:$0xff] %vm3738, %v3703
        %3743 = vst.msk [vmem:[#allocation4 + $0x20] sm:$0xff] %vm3738, %v3704
        %3744 = vst.msk [vmem:[#allocation4 + $0x28] sm:$0xff] %vm3738, %v3705
        %3745 = vst.msk [vmem:[#allocation4 + $0x30] sm:$0xff] %vm3738, %v3706
        %3746 = vst.msk [vmem:[#allocation4 + $0x38] sm:$0xff] %vm3738, %v3707
        %3747 = vst.msk [vmem:[#allocation4 + $0x40] sm:$0xff] %vm3738, %v3708
        %3748 = vst.msk [vmem:[#allocation4 + $0x48] sm:$0xff] %vm3738, %v3709
        %3749 = vst.msk [vmem:[#allocation4 + $0x50] sm:$0xff] %vm3738, %v3710
        %3750 = vst.msk [vmem:[#allocation4 + $0x58] sm:$0xff] %vm3738, %v3711
        %3751 = vst.msk [vmem:[#allocation4 + $0x60] sm:$0xff] %vm3738, %v3712
        %3752 = vst.msk [vmem:[#allocation4 + $0x68] sm:$0xff] %vm3738, %v3713
        %3753 = vst.msk [vmem:[#allocation4 + $0x70] sm:$0xff] %vm3738, %v3714
        %3754 = vst.msk [vmem:[#allocation4 + $0x78] sm:$0xff] %vm3738, %v3715
        %3755 = vst.msk [vmem:[#allocation4 + $0x80] sm:$0xff] %vm3738, %v3716
        %3756 = vst.msk [vmem:[#allocation4 + $0x88] sm:$0xff] %vm3738, %v3717
        %3757 = vst.msk [vmem:[#allocation4 + $0x90] sm:$0xff] %vm3738, %v3718
        %3758 = vst.msk [vmem:[#allocation4 + $0x98] sm:$0xff] %vm3738, %v3719
        %3759 = vst.msk [vmem:[#allocation4 + $0xa0] sm:$0xff] %vm3738, %v3720
        %3760 = vst.msk [vmem:[#allocation4 + $0xa8] sm:$0xff] %vm3738, %v3721
        %3761 = vst.msk [vmem:[#allocation4 + $0xb0] sm:$0xff] %vm3738, %v3722
        %3762 = vst.msk [vmem:[#allocation4 + $0xb8] sm:$0xff] %vm3738, %v3723
        %3763 = vst.msk [vmem:[#allocation4 + $0xc0] sm:$0xff] %vm3738, %v3724
        %3764 = vst.msk [vmem:[#allocation4 + $0xc8] sm:$0xff] %vm3738, %v3725
        %3765 = vst.msk [vmem:[#allocation4 + $0xd0] sm:$0xff] %vm3738, %v3726
        %3766 = vst.msk [vmem:[#allocation4 + $0xd8] sm:$0xff] %vm3738, %v3727
        %3767 = vst.msk [vmem:[#allocation4 + $0xe0] sm:$0xff] %vm3738, %v3728
        %3768 = vst.msk [vmem:[#allocation4 + $0xe8] sm:$0xff] %vm3738, %v3729
        %3769 = vst.msk [vmem:[#allocation4 + $0xf0] sm:$0xff] %vm3738, %v3730
        %3770 = vst.msk [vmem:[#allocation4 + $0xf8] sm:$0xff] %vm3738, %v3731
        %3771 = vst.msk [vmem:[#allocation4 + $0x100] sm:$0xff] %vm3738, %v3732
        %3772 = vst.msk [vmem:[#allocation4 + $0x108] sm:$0xff] %vm3738, %v3733
        %3773 = vst.msk [vmem:[#allocation4 + $0x110] sm:$0xff] %vm3738, %v3736
        %3774 = vst.msk [vmem:[#allocation4 + $0x118] sm:$0xff] %vm3738, %v3737
        %v3775 = vld [vmem:[#allocation4] sm:$0xff]
        %v3776 = vld [vmem:[#allocation4 + $0x8] sm:$0xff]
        %v3777 = vld [vmem:[#allocation4 + $0x10] sm:$0xff]
        %v3778 = vld [vmem:[#allocation4 + $0x18] sm:$0xff]
        %v3779 = vld [vmem:[#allocation4 + $0x20] sm:$0xff]
        %v3780 = vld [vmem:[#allocation4 + $0x28] sm:$0xff]
        %v3781 = vld [vmem:[#allocation4 + $0x30] sm:$0xff]
        %v3782 = vld [vmem:[#allocation4 + $0x38] sm:$0xff]
        %v3783 = vld [vmem:[#allocation4 + $0x40] sm:$0xff]
        %v3784 = vld [vmem:[#allocation4 + $0x48] sm:$0xff]
        %v3785 = vld [vmem:[#allocation4 + $0x50] sm:$0xff]
        %v3786 = vld [vmem:[#allocation4 + $0x58] sm:$0xff]
        %v3787 = vld [vmem:[#allocation4 + $0x60] sm:$0xff]
        %v3788 = vld [vmem:[#allocation4 + $0x68] sm:$0xff]
        %v3789 = vld [vmem:[#allocation4 + $0x70] sm:$0xff]
        %v3790 = vld [vmem:[#allocation4 + $0x78] sm:$0xff]
        %v3791 = vld [vmem:[#allocation4 + $0x80] sm:$0xff]
        %v3792 = vld [vmem:[#allocation4 + $0x88] sm:$0xff]
        %v3793 = vld [vmem:[#allocation4 + $0x90] sm:$0xff]
        %v3794 = vld [vmem:[#allocation4 + $0x98] sm:$0xff]
        %v3795 = vld [vmem:[#allocation4 + $0xa0] sm:$0xff]
        %v3796 = vld [vmem:[#allocation4 + $0xa8] sm:$0xff]
        %v3797 = vld [vmem:[#allocation4 + $0xb0] sm:$0xff]
        %v3798 = vld [vmem:[#allocation4 + $0xb8] sm:$0xff]
        %v3799 = vld [vmem:[#allocation4 + $0xc0] sm:$0xff]
        %v3800 = vld [vmem:[#allocation4 + $0xc8] sm:$0xff]
        %v3801 = vld [vmem:[#allocation4 + $0xd0] sm:$0xff]
        %v3802 = vld [vmem:[#allocation4 + $0xd8] sm:$0xff]
        %v3803 = vld [vmem:[#allocation4 + $0xe0] sm:$0xff]
        %v3804 = vld [vmem:[#allocation4 + $0xe8] sm:$0xff]
        %v3805 = vld [vmem:[#allocation4 + $0xf0] sm:$0xff]
        %v3806 = vld [vmem:[#allocation4 + $0xf8] sm:$0xff]
        %v3807 = vld [vmem:[#allocation4 + $0x100] sm:$0xff]
        %v3808 = vld [vmem:[#allocation4 + $0x108] sm:$0xff]
        %v3809 = vld [vmem:[#allocation4 + $0x110] sm:$0xff]
        %v3810 = vld [vmem:[#allocation4 + $0x118] sm:$0xff]
        %v3811 = vrot.slane %v3775, 7
        %v3812 = vrot.slane %v3776, 7
        %v3813 = vrot.slane %v3777, 7
        %v3814 = vrot.slane %v3778, 7
        %v3815 = vrot.slane %v3779, 7
        %v3816 = vrot.slane %v3780, 7
        %v3817 = vrot.slane %v3781, 7
        %v3818 = vrot.slane %v3782, 7
        %v3819 = vrot.slane %v3783, 7
        %v3820 = vrot.slane %v3784, 7
        %v3821 = vrot.slane %v3785, 7
        %v3822 = vrot.slane %v3786, 7
        %v3823 = vrot.slane %v3787, 7
        %v3824 = vrot.slane %v3788, 7
        %v3825 = vrot.slane %v3789, 7
        %v3826 = vrot.slane %v3790, 7
        %v3827 = vrot.slane %v3791, 7
        %v3828 = vrot.slane %v3792, 7
        %v3829 = vrot.slane %v3793, 7
        %v3830 = vrot.slane %v3794, 7
        %v3831 = vrot.slane %v3795, 7
        %v3832 = vrot.slane %v3796, 7
        %v3833 = vrot.slane %v3797, 7
        %v3834 = vrot.slane %v3798, 7
        %v3835 = vrot.slane %v3799, 7
        %v3836 = vrot.slane %v3800, 7
        %v3837 = vrot.slane %v3801, 7
        %v3838 = vrot.slane %v3802, 7
        %v3839 = vrot.slane %v3803, 7
        %v3840 = vrot.slane %v3804, 7
        %v3841 = vrot.slane %v3805, 7
        %v3842 = vrot.slane %v3806, 7
        %v3843 = vrot.slane %v3807, 7
        %v3844 = vrot.slane %v3808, 7
        %v3845 = vrot.slane %v3809, 7
        %v3846 = vrot.slane %v3810, 7
        %v3847 = vlaneseq
        %v3848 = vshrl.u32 %v3847, 7
        %vm3849 = vcmp.lt.s32.totalorder %v3848, 1
        %v3850 = vsel %vm3849, %v3845, %v3846
        %v3851 = vsel %vm3849, %v3844, %v3845
        %v3852 = vsel %vm3849, %v3843, %v3844
        %v3853 = vsel %vm3849, %v3842, %v3843
        %v3854 = vsel %vm3849, %v3841, %v3842
        %v3855 = vsel %vm3849, %v3840, %v3841
        %v3856 = vsel %vm3849, %v3839, %v3840
        %v3857 = vsel %vm3849, %v3838, %v3839
        %v3858 = vsel %vm3849, %v3837, %v3838
        %v3859 = vsel %vm3849, %v3836, %v3837
        %v3860 = vsel %vm3849, %v3835, %v3836
        %v3861 = vsel %vm3849, %v3834, %v3835
        %v3862 = vsel %vm3849, %v3833, %v3834
        %v3863 = vsel %vm3849, %v3832, %v3833
        %v3864 = vsel %vm3849, %v3831, %v3832
        %v3865 = vsel %vm3849, %v3830, %v3831
        %v3866 = vsel %vm3849, %v3829, %v3830
        %v3867 = vsel %vm3849, %v3828, %v3829
        %v3868 = vsel %vm3849, %v3827, %v3828
        %v3869 = vsel %vm3849, %v3826, %v3827
        %v3870 = vsel %vm3849, %v3825, %v3826
        %v3871 = vsel %vm3849, %v3824, %v3825
        %v3872 = vsel %vm3849, %v3823, %v3824
        %v3873 = vsel %vm3849, %v3822, %v3823
        %v3874 = vsel %vm3849, %v3821, %v3822
        %v3875 = vsel %vm3849, %v3820, %v3821
        %v3876 = vsel %vm3849, %v3819, %v3820
        %v3877 = vsel %vm3849, %v3818, %v3819
        %v3878 = vsel %vm3849, %v3817, %v3818
        %v3879 = vsel %vm3849, %v3816, %v3817
        %v3880 = vsel %vm3849, %v3815, %v3816
        %v3881 = vsel %vm3849, %v3814, %v3815
        %v3882 = vsel %vm3849, %v3813, %v3814
        %v3883 = vsel %vm3849, %v3812, %v3813
        %v3884 = vsel %vm3849, %v3811, %v3812
        %v3885 = vsel %vm3849, %v3846, %v3811
        %3887 = vset.pattern.permute.xlu0 0
        %3888 = vperm.xlu0 %3887, %v762
        %v3889 = vpop.permute.xlu0 %3888
        %3892 = vset.pattern.permute.xlu0 0
        %3893 = vperm.xlu0 %3892, %v763
        %v3894 = vpop.permute.xlu0 %3893
        %3897 = vset.pattern.permute.xlu0 0
        %3898 = vperm.xlu0 %3897, %v764
        %v3899 = vpop.permute.xlu0 %3898
        %3902 = vset.pattern.permute.xlu0 0
        %3903 = vperm.xlu0 %3902, %v765
        %v3904 = vpop.permute.xlu0 %3903
        %3907 = vset.pattern.permute.xlu0 0
        %3908 = vperm.xlu0 %3907, %v766
        %v3909 = vpop.permute.xlu0 %3908
        %3912 = vset.pattern.permute.xlu0 0
        %3913 = vperm.xlu0 %3912, %v767
        %v3914 = vpop.permute.xlu0 %3913
        %3917 = vset.pattern.permute.xlu0 0
        %3918 = vperm.xlu0 %3917, %v768
        %v3919 = vpop.permute.xlu0 %3918
        %3922 = vset.pattern.permute.xlu0 0
        %3923 = vperm.xlu0 %3922, %v769
        %v3924 = vpop.permute.xlu0 %3923
        %3927 = vset.pattern.permute.xlu0 0
        %3928 = vperm.xlu0 %3927, %v770
        %v3929 = vpop.permute.xlu0 %3928
        %3932 = vset.pattern.permute.xlu0 0
        %3933 = vperm.xlu0 %3932, %v771
        %v3934 = vpop.permute.xlu0 %3933
        %3937 = vset.pattern.permute.xlu0 0
        %3938 = vperm.xlu0 %3937, %v772
        %v3939 = vpop.permute.xlu0 %3938
        %3942 = vset.pattern.permute.xlu0 0
        %3943 = vperm.xlu0 %3942, %v773
        %v3944 = vpop.permute.xlu0 %3943
        %3947 = vset.pattern.permute.xlu0 0
        %3948 = vperm.xlu0 %3947, %v774
        %v3949 = vpop.permute.xlu0 %3948
        %3952 = vset.pattern.permute.xlu0 0
        %3953 = vperm.xlu0 %3952, %v775
        %v3954 = vpop.permute.xlu0 %3953
        %3957 = vset.pattern.permute.xlu0 0
        %3958 = vperm.xlu0 %3957, %v776
        %v3959 = vpop.permute.xlu0 %3958
        %3962 = vset.pattern.permute.xlu0 0
        %3963 = vperm.xlu0 %3962, %v777
        %v3964 = vpop.permute.xlu0 %3963
        %3967 = vset.pattern.permute.xlu0 0
        %3968 = vperm.xlu0 %3967, %v778
        %v3969 = vpop.permute.xlu0 %3968
        %3972 = vset.pattern.permute.xlu0 0
        %3973 = vperm.xlu0 %3972, %v779
        %v3974 = vpop.permute.xlu0 %3973
        %3977 = vset.pattern.permute.xlu0 0
        %3978 = vperm.xlu0 %3977, %v780
        %v3979 = vpop.permute.xlu0 %3978
        %3982 = vset.pattern.permute.xlu0 0
        %3983 = vperm.xlu0 %3982, %v781
        %v3984 = vpop.permute.xlu0 %3983
        %3987 = vset.pattern.permute.xlu0 0
        %3988 = vperm.xlu0 %3987, %v782
        %v3989 = vpop.permute.xlu0 %3988
        %3992 = vset.pattern.permute.xlu0 0
        %3993 = vperm.xlu0 %3992, %v783
        %v3994 = vpop.permute.xlu0 %3993
        %3997 = vset.pattern.permute.xlu0 0
        %3998 = vperm.xlu0 %3997, %v784
        %v3999 = vpop.permute.xlu0 %3998
        %4002 = vset.pattern.permute.xlu0 0
        %4003 = vperm.xlu0 %4002, %v785
        %v4004 = vpop.permute.xlu0 %4003
        %4007 = vset.pattern.permute.xlu0 0
        %4008 = vperm.xlu0 %4007, %v786
        %v4009 = vpop.permute.xlu0 %4008
        %4012 = vset.pattern.permute.xlu0 0
        %4013 = vperm.xlu0 %4012, %v787
        %v4014 = vpop.permute.xlu0 %4013
        %4017 = vset.pattern.permute.xlu0 0
        %4018 = vperm.xlu0 %4017, %v788
        %v4019 = vpop.permute.xlu0 %4018
        %4022 = vset.pattern.permute.xlu0 0
        %4023 = vperm.xlu0 %4022, %v789
        %v4024 = vpop.permute.xlu0 %4023
        %4027 = vset.pattern.permute.xlu0 0
        %4028 = vperm.xlu0 %4027, %v790
        %v4029 = vpop.permute.xlu0 %4028
        %4032 = vset.pattern.permute.xlu0 0
        %4033 = vperm.xlu0 %4032, %v791
        %v4034 = vpop.permute.xlu0 %4033
        %4037 = vset.pattern.permute.xlu0 0
        %4038 = vperm.xlu0 %4037, %v792
        %v4039 = vpop.permute.xlu0 %4038
        %4042 = vset.pattern.permute.xlu0 0
        %4043 = vperm.xlu0 %4042, %v793
        %v4044 = vpop.permute.xlu0 %4043
        %4047 = vset.pattern.permute.xlu0 0
        %4048 = vperm.xlu0 %4047, %v794
        %v4049 = vpop.permute.xlu0 %4048
        %4052 = vset.pattern.permute.xlu0 0
        %4053 = vperm.xlu0 %4052, %v795
        %v4054 = vpop.permute.xlu0 %4053
        %4057 = vset.pattern.permute.xlu0 0
        %4058 = vperm.xlu0 %4057, %v796
        %v4059 = vpop.permute.xlu0 %4058
        %4062 = vset.pattern.permute.xlu0 0
        %4063 = vperm.xlu0 %4062, %v797
        %v4064 = vpop.permute.xlu0 %4063
        %v4066 = vmul.f32 %v3885, %v3889
        %v4067 = vmul.f32 %v3884, %v3894
        %v4068 = vmul.f32 %v3883, %v3899
        %v4069 = vmul.f32 %v3882, %v3904
        %v4070 = vmul.f32 %v3881, %v3909
        %v4071 = vmul.f32 %v3880, %v3914
        %v4072 = vmul.f32 %v3879, %v3919
        %v4073 = vmul.f32 %v3878, %v3924
        %v4074 = vmul.f32 %v3877, %v3929
        %v4075 = vmul.f32 %v3876, %v3934
        %v4076 = vmul.f32 %v3875, %v3939
        %v4077 = vmul.f32 %v3874, %v3944
        %v4078 = vmul.f32 %v3873, %v3949
        %v4079 = vmul.f32 %v3872, %v3954
        %v4080 = vmul.f32 %v3871, %v3959
        %v4081 = vmul.f32 %v3870, %v3964
        %v4082 = vmul.f32 %v3869, %v3969
        %v4083 = vmul.f32 %v3868, %v3974
        %v4084 = vmul.f32 %v3867, %v3979
        %v4085 = vmul.f32 %v3866, %v3984
        %v4086 = vmul.f32 %v3865, %v3989
        %v4087 = vmul.f32 %v3864, %v3994
        %v4088 = vmul.f32 %v3863, %v3999
        %v4089 = vmul.f32 %v3862, %v4004
        %v4090 = vmul.f32 %v3861, %v4009
        %v4091 = vmul.f32 %v3860, %v4014
        %v4092 = vmul.f32 %v3859, %v4019
        %v4093 = vmul.f32 %v3858, %v4024
        %v4094 = vmul.f32 %v3857, %v4029
        %v4095 = vmul.f32 %v3856, %v4034
        %v4096 = vmul.f32 %v3855, %v4039
        %v4097 = vmul.f32 %v3854, %v4044
        %v4098 = vmul.f32 %v3853, %v4049
        %v4099 = vmul.f32 %v3852, %v4054
        %v4100 = vmul.f32 %v3851, %v4059
        %v4101 = vmul.f32 %v3850, %v4064
        %v4102 = vrot.slane %v3775, 1
        %v4103 = vrot.slane %v3776, 1
        %v4104 = vrot.slane %v3777, 1
        %v4105 = vrot.slane %v3778, 1
        %v4106 = vrot.slane %v3779, 1
        %v4107 = vrot.slane %v3780, 1
        %v4108 = vrot.slane %v3781, 1
        %v4109 = vrot.slane %v3782, 1
        %v4110 = vrot.slane %v3783, 1
        %v4111 = vrot.slane %v3784, 1
        %v4112 = vrot.slane %v3785, 1
        %v4113 = vrot.slane %v3786, 1
        %v4114 = vrot.slane %v3787, 1
        %v4115 = vrot.slane %v3788, 1
        %v4116 = vrot.slane %v3789, 1
        %v4117 = vrot.slane %v3790, 1
        %v4118 = vrot.slane %v3791, 1
        %v4119 = vrot.slane %v3792, 1
        %v4120 = vrot.slane %v3793, 1
        %v4121 = vrot.slane %v3794, 1
        %v4122 = vrot.slane %v3795, 1
        %v4123 = vrot.slane %v3796, 1
        %v4124 = vrot.slane %v3797, 1
        %v4125 = vrot.slane %v3798, 1
        %v4126 = vrot.slane %v3799, 1
        %v4127 = vrot.slane %v3800, 1
        %v4128 = vrot.slane %v3801, 1
        %v4129 = vrot.slane %v3802, 1
        %v4130 = vrot.slane %v3803, 1
        %v4131 = vrot.slane %v3804, 1
        %v4132 = vrot.slane %v3805, 1
        %v4133 = vrot.slane %v3806, 1
        %v4134 = vrot.slane %v3807, 1
        %v4135 = vrot.slane %v3808, 1
        %v4136 = vrot.slane %v3809, 1
        %v4137 = vrot.slane %v3810, 1
        %vm4138 = vcmp.lt.s32.totalorder %v3848, 7
        %v4139 = vsel %vm4138, %v4136, %v4137
        %v4140 = vsel %vm4138, %v4135, %v4136
        %v4141 = vsel %vm4138, %v4134, %v4135
        %v4142 = vsel %vm4138, %v4133, %v4134
        %v4143 = vsel %vm4138, %v4132, %v4133
        %v4144 = vsel %vm4138, %v4131, %v4132
        %v4145 = vsel %vm4138, %v4130, %v4131
        %v4146 = vsel %vm4138, %v4129, %v4130
        %v4147 = vsel %vm4138, %v4128, %v4129
        %v4148 = vsel %vm4138, %v4127, %v4128
        %v4149 = vsel %vm4138, %v4126, %v4127
        %v4150 = vsel %vm4138, %v4125, %v4126
        %v4151 = vsel %vm4138, %v4124, %v4125
        %v4152 = vsel %vm4138, %v4123, %v4124
        %v4153 = vsel %vm4138, %v4122, %v4123
        %v4154 = vsel %vm4138, %v4121, %v4122
        %v4155 = vsel %vm4138, %v4120, %v4121
        %v4156 = vsel %vm4138, %v4119, %v4120
        %v4157 = vsel %vm4138, %v4118, %v4119
        %v4158 = vsel %vm4138, %v4117, %v4118
        %v4159 = vsel %vm4138, %v4116, %v4117
        %v4160 = vsel %vm4138, %v4115, %v4116
        %v4161 = vsel %vm4138, %v4114, %v4115
        %v4162 = vsel %vm4138, %v4113, %v4114
        %v4163 = vsel %vm4138, %v4112, %v4113
        %v4164 = vsel %vm4138, %v4111, %v4112
        %v4165 = vsel %vm4138, %v4110, %v4111
        %v4166 = vsel %vm4138, %v4109, %v4110
        %v4167 = vsel %vm4138, %v4108, %v4109
        %v4168 = vsel %vm4138, %v4107, %v4108
        %v4169 = vsel %vm4138, %v4106, %v4107
        %v4170 = vsel %vm4138, %v4105, %v4106
        %v4171 = vsel %vm4138, %v4104, %v4105
        %v4172 = vsel %vm4138, %v4103, %v4104
        %v4173 = vsel %vm4138, %v4102, %v4103
        %v4174 = vsel %vm4138, %v4137, %v4102
        %4176 = vset.pattern.permute.xlu0 0
        %4177 = vperm.xlu0 %4176, %v798
        %v4178 = vpop.permute.xlu0 %4177
        %4181 = vset.pattern.permute.xlu0 0
        %4182 = vperm.xlu0 %4181, %v799
        %v4183 = vpop.permute.xlu0 %4182
        %4186 = vset.pattern.permute.xlu0 0
        %4187 = vperm.xlu0 %4186, %v800
        %v4188 = vpop.permute.xlu0 %4187
        %4191 = vset.pattern.permute.xlu0 0
        %4192 = vperm.xlu0 %4191, %v801
        %v4193 = vpop.permute.xlu0 %4192
        %4196 = vset.pattern.permute.xlu0 0
        %4197 = vperm.xlu0 %4196, %v802
        %v4198 = vpop.permute.xlu0 %4197
        %4201 = vset.pattern.permute.xlu0 0
        %4202 = vperm.xlu0 %4201, %v803
        %v4203 = vpop.permute.xlu0 %4202
        %4206 = vset.pattern.permute.xlu0 0
        %4207 = vperm.xlu0 %4206, %v804
        %v4208 = vpop.permute.xlu0 %4207
        %4211 = vset.pattern.permute.xlu0 0
        %4212 = vperm.xlu0 %4211, %v805
        %v4213 = vpop.permute.xlu0 %4212
        %4216 = vset.pattern.permute.xlu0 0
        %4217 = vperm.xlu0 %4216, %v806
        %v4218 = vpop.permute.xlu0 %4217
        %4221 = vset.pattern.permute.xlu0 0
        %4222 = vperm.xlu0 %4221, %v807
        %v4223 = vpop.permute.xlu0 %4222
        %4226 = vset.pattern.permute.xlu0 0
        %4227 = vperm.xlu0 %4226, %v808
        %v4228 = vpop.permute.xlu0 %4227
        %4231 = vset.pattern.permute.xlu0 0
        %4232 = vperm.xlu0 %4231, %v809
        %v4233 = vpop.permute.xlu0 %4232
        %4236 = vset.pattern.permute.xlu0 0
        %4237 = vperm.xlu0 %4236, %v810
        %v4238 = vpop.permute.xlu0 %4237
        %4241 = vset.pattern.permute.xlu0 0
        %4242 = vperm.xlu0 %4241, %v811
        %v4243 = vpop.permute.xlu0 %4242
        %4246 = vset.pattern.permute.xlu0 0
        %4247 = vperm.xlu0 %4246, %v812
        %v4248 = vpop.permute.xlu0 %4247
        %4251 = vset.pattern.permute.xlu0 0
        %4252 = vperm.xlu0 %4251, %v813
        %v4253 = vpop.permute.xlu0 %4252
        %4256 = vset.pattern.permute.xlu0 0
        %4257 = vperm.xlu0 %4256, %v814
        %v4258 = vpop.permute.xlu0 %4257
        %4261 = vset.pattern.permute.xlu0 0
        %4262 = vperm.xlu0 %4261, %v815
        %v4263 = vpop.permute.xlu0 %4262
        %4266 = vset.pattern.permute.xlu0 0
        %4267 = vperm.xlu0 %4266, %v816
        %v4268 = vpop.permute.xlu0 %4267
        %4271 = vset.pattern.permute.xlu0 0
        %4272 = vperm.xlu0 %4271, %v817
        %v4273 = vpop.permute.xlu0 %4272
        %4276 = vset.pattern.permute.xlu0 0
        %4277 = vperm.xlu0 %4276, %v818
        %v4278 = vpop.permute.xlu0 %4277
        %4281 = vset.pattern.permute.xlu0 0
        %4282 = vperm.xlu0 %4281, %v819
        %v4283 = vpop.permute.xlu0 %4282
        %4286 = vset.pattern.permute.xlu0 0
        %4287 = vperm.xlu0 %4286, %v820
        %v4288 = vpop.permute.xlu0 %4287
        %4291 = vset.pattern.permute.xlu0 0
        %4292 = vperm.xlu0 %4291, %v821
        %v4293 = vpop.permute.xlu0 %4292
        %4296 = vset.pattern.permute.xlu0 0
        %4297 = vperm.xlu0 %4296, %v822
        %v4298 = vpop.permute.xlu0 %4297
        %4301 = vset.pattern.permute.xlu0 0
        %4302 = vperm.xlu0 %4301, %v823
        %v4303 = vpop.permute.xlu0 %4302
        %4306 = vset.pattern.permute.xlu0 0
        %4307 = vperm.xlu0 %4306, %v824
        %v4308 = vpop.permute.xlu0 %4307
        %4311 = vset.pattern.permute.xlu0 0
        %4312 = vperm.xlu0 %4311, %v825
        %v4313 = vpop.permute.xlu0 %4312
        %4316 = vset.pattern.permute.xlu0 0
        %4317 = vperm.xlu0 %4316, %v826
        %v4318 = vpop.permute.xlu0 %4317
        %4321 = vset.pattern.permute.xlu0 0
        %4322 = vperm.xlu0 %4321, %v827
        %v4323 = vpop.permute.xlu0 %4322
        %4326 = vset.pattern.permute.xlu0 0
        %4327 = vperm.xlu0 %4326, %v828
        %v4328 = vpop.permute.xlu0 %4327
        %4331 = vset.pattern.permute.xlu0 0
        %4332 = vperm.xlu0 %4331, %v829
        %v4333 = vpop.permute.xlu0 %4332
        %4336 = vset.pattern.permute.xlu0 0
        %4337 = vperm.xlu0 %4336, %v830
        %v4338 = vpop.permute.xlu0 %4337
        %4341 = vset.pattern.permute.xlu0 0
        %4342 = vperm.xlu0 %4341, %v831
        %v4343 = vpop.permute.xlu0 %4342
        %4346 = vset.pattern.permute.xlu0 0
        %4347 = vperm.xlu0 %4346, %v832
        %v4348 = vpop.permute.xlu0 %4347
        %4351 = vset.pattern.permute.xlu0 0
        %4352 = vperm.xlu0 %4351, %v833
        %v4353 = vpop.permute.xlu0 %4352
        %v4355 = vmul.f32 %v4173, %v4178
        %v4356 = vmul.f32 %v4172, %v4183
        %v4357 = vmul.f32 %v4171, %v4188
        %v4358 = vmul.f32 %v4170, %v4193
        %v4359 = vmul.f32 %v4169, %v4198
        %v4360 = vmul.f32 %v4168, %v4203
        %v4361 = vmul.f32 %v4167, %v4208
        %v4362 = vmul.f32 %v4166, %v4213
        %v4363 = vmul.f32 %v4165, %v4218
        %v4364 = vmul.f32 %v4164, %v4223
        %v4365 = vmul.f32 %v4163, %v4228
        %v4366 = vmul.f32 %v4162, %v4233
        %v4367 = vmul.f32 %v4161, %v4238
        %v4368 = vmul.f32 %v4160, %v4243
        %v4369 = vmul.f32 %v4159, %v4248
        %v4370 = vmul.f32 %v4158, %v4253
        %v4371 = vmul.f32 %v4157, %v4258
        %v4372 = vmul.f32 %v4156, %v4263
        %v4373 = vmul.f32 %v4155, %v4268
        %v4374 = vmul.f32 %v4154, %v4273
        %v4375 = vmul.f32 %v4153, %v4278
        %v4376 = vmul.f32 %v4152, %v4283
        %v4377 = vmul.f32 %v4151, %v4288
        %v4378 = vmul.f32 %v4150, %v4293
        %v4379 = vmul.f32 %v4149, %v4298
        %v4380 = vmul.f32 %v4148, %v4303
        %v4381 = vmul.f32 %v4147, %v4308
        %v4382 = vmul.f32 %v4146, %v4313
        %v4383 = vmul.f32 %v4145, %v4318
        %v4384 = vmul.f32 %v4144, %v4323
        %v4385 = vmul.f32 %v4143, %v4328
        %v4386 = vmul.f32 %v4142, %v4333
        %v4387 = vmul.f32 %v4141, %v4338
        %v4388 = vmul.f32 %v4140, %v4343
        %v4389 = vmul.f32 %v4139, %v4348
        %v4390 = vmul.f32 %v4174, %v4353
        %v4391 = vld [vmem:[%s7] sm:$0xff]
        %v4392 = vld [vmem:[%s7 + $0x8] sm:$0xf]
        %s4393 = scalar_lea.vmem %s7, 12
        %v4394 = vld [vmem:[%s4393] sm:$0xff]
        %v4395 = vld [vmem:[%s4393 + $0x8] sm:$0xf]
        %v4398 = vcombine.high %v4394, %v4394
        %v4400 = vsel %vm3738, %v3775, 0
        %v4403 = vsel %vm3738, %v3776, 0
        %v4406 = vsel %vm3738, %v3777, 0
        %v4409 = vsel %vm3738, %v3778, 0
        %v4412 = vsel %vm3738, %v3779, 0
        %v4415 = vsel %vm3738, %v3780, 0
        %v4418 = vsel %vm3738, %v3781, 0
        %v4421 = vsel %vm3738, %v3782, 0
        %v4424 = vsel %vm3738, %v3783, 0
        %v4427 = vsel %vm3738, %v3784, 0
        %v4430 = vsel %vm3738, %v3785, 0
        %v4433 = vsel %vm3738, %v3786, 0
        %v4436 = vsel %vm3738, %v3787, 0
        %v4439 = vsel %vm3738, %v3788, 0
        %v4442 = vsel %vm3738, %v3789, 0
        %v4445 = vsel %vm3738, %v3790, 0
        %v4448 = vsel %vm3738, %v3791, 0
        %v4451 = vsel %vm3738, %v3792, 0
        %v4454 = vsel %vm3738, %v3793, 0
        %v4457 = vsel %vm3738, %v3794, 0
        %v4460 = vsel %vm3738, %v3795, 0
        %v4463 = vsel %vm3738, %v3796, 0
        %v4466 = vsel %vm3738, %v3797, 0
        %v4469 = vsel %vm3738, %v3798, 0
        %v4472 = vsel %vm3738, %v3799, 0
        %v4475 = vsel %vm3738, %v3800, 0
        %v4478 = vsel %vm3738, %v3801, 0
        %v4481 = vsel %vm3738, %v3802, 0
        %v4484 = vsel %vm3738, %v3803, 0
        %v4487 = vsel %vm3738, %v3804, 0
        %v4490 = vsel %vm3738, %v3805, 0
        %v4493 = vsel %vm3738, %v3806, 0
        %v4496 = vsel %vm3738, %v3807, 0
        %v4499 = vsel %vm3738, %v3808, 0
        %v4502 = vsel %vm3738, %v3809, 0
        %v4505 = vsel %vm3738, %v3810, 0
        %vm4507 = vcmask 1043456
        %v4508 = vsel %vm4507, %v4394, 0
        %v4510 = vsel %vm4507, %v4398, 0
        %v4512 = vsel %vm4507, %v4395, 0
        %4514 = vmatprep.subr.mxu0 0.0
        %4515 = vmatpush1.msra.mxu0 0.0
        %4516 = vmatprep.subr.mxu0 0.0
        %4517 = vmatpush1.msra.mxu0 0.0
        %4518 = vmatprep.subr.mxu0 0.0
        %4519 = vmatpush1.msra.mxu0 0.0
        %4520 = vmatprep.subr.mxu0 0.0
        %4521 = vmatpush1.msra.mxu0 0.0
        %4522 = vmatprep.subr.mxu0 0.0
        %4523 = vmatpush1.msra.mxu0 0.0
        %4524 = vmatprep.subr.mxu0 0.0
        %4525 = vmatpush1.msra.mxu0 0.0
        %4526 = vmatprep.subr.mxu0 0.0
        %4527 = vmatpush1.msra.mxu0 0.0
        %4528 = vmatprep.subr.mxu0 0.0
        %4529 = vmatpush1.msra.mxu0 0.0
        %4530 = vmatprep.subr.mxu0 0.0
        %4531 = vmatpush1.msra.mxu0 0.0
        %4532 = vmatprep.subr.mxu0 0.0
        %4533 = vmatpush1.msra.mxu0 0.0
        %4534 = vmatprep.subr.mxu0 0.0
        %4535 = vmatpush1.msra.mxu0 0.0
        %4536 = vmatprep.subr.mxu0 0.0
        %4537 = vmatpush1.msra.mxu0 0.0
        %4538 = vmatprep.subr.mxu0 0.0
        %4539 = vmatpush1.msra.mxu0 0.0
        %4540 = vmatprep.subr.mxu0 0.0
        %4541 = vmatpush1.msra.mxu0 0.0
        %4542 = vmatprep.subr.mxu0 0.0
        %4543 = vmatpush1.msra.mxu0 0.0
        %4544 = vmatprep.subr.mxu0 %v4510
        %4545 = vmatpush1.msra.mxu0 %v4508
        %4546 = vmatprep.subr.mxu0 0.0
        %4547 = vmatpush2.msra.mxu0 0.0
        %4548 = vmatprep.subr.mxu0 0.0
        %4549 = vmatpush2.msra.mxu0 0.0
        %4550 = vmatprep.subr.mxu0 0.0
        %4551 = vmatpush2.msra.mxu0 0.0
        %4552 = vmatprep.subr.mxu0 0.0
        %4553 = vmatpush2.msra.mxu0 0.0
        %4554 = vmatprep.subr.mxu0 0.0
        %4555 = vmatpush2.msra.mxu0 0.0
        %4556 = vmatprep.subr.mxu0 0.0
        %4557 = vmatpush2.msra.mxu0 0.0
        %4558 = vmatprep.subr.mxu0 0.0
        %4559 = vmatpush2.msra.mxu0 0.0
        %4560 = vmatprep.subr.mxu0 0.0
        %4561 = vmatpush2.msra.mxu0 0.0
        %4562 = vmatprep.subr.mxu0 0.0
        %4563 = vmatpush2.msra.mxu0 0.0
        %4564 = vmatprep.subr.mxu0 0.0
        %4565 = vmatpush2.msra.mxu0 0.0
        %4566 = vmatprep.subr.mxu0 0.0
        %4567 = vmatpush2.msra.mxu0 0.0
        %4568 = vmatprep.subr.mxu0 0.0
        %4569 = vmatpush2.msra.mxu0 0.0
        %4570 = vmatprep.subr.mxu0 0.0
        %4571 = vmatpush2.msra.mxu0 0.0
        %4572 = vmatprep.subr.mxu0 0.0
        %4573 = vmatpush2.msra.mxu0 0.0
        %4574 = vmatprep.subr.mxu0 0.0
        %4575 = vmatpush2.msra.mxu0 0.0
        %4576 = vmatprep.subr.mxu0 0.0
        %4577 = vmatpush2.msra.mxu0 0.0
        %4578 = vmatprep.mubr.f32.mxu0 0.0
        %4579 = vmatmul.mubr.f32.gmra.mxu0 %v4400
        %v4580 = vpop.f32.mrf.mxu0
        %v4581 = vadd.f32 0.0, %v4580
        %v4582 = vpop.f32.mrf.mxu0
        %4583 = vmatprep.mubr.f32.mxu0 0.0
        %4584 = vmatmul.mubr.f32.gmra.mxu0 %v4403
        %v4585 = vpop.f32.mrf.mxu0
        %v4586 = vadd.f32 0.0, %v4585
        %v4587 = vpop.f32.mrf.mxu0
        %4588 = vmatprep.mubr.f32.mxu0 0.0
        %4589 = vmatmul.mubr.f32.gmra.mxu0 %v4406
        %v4590 = vpop.f32.mrf.mxu0
        %v4591 = vadd.f32 0.0, %v4590
        %v4592 = vpop.f32.mrf.mxu0
        %v4593 = vadd.f32 0.0, %v4592
        %4594 = vmatprep.mubr.f32.mxu0 0.0
        %4595 = vmatmul.mubr.f32.gmra.mxu0 %v4409
        %v4596 = vpop.f32.mrf.mxu0
        %v4597 = vadd.f32 0.0, %v4596
        %v4598 = vpop.f32.mrf.mxu0
        %v4599 = vadd.f32 0.0, %v4598
        %4600 = vmatprep.mubr.f32.mxu0 0.0
        %4601 = vmatmul.mubr.f32.gmra.mxu0 %v4412
        %v4602 = vpop.f32.mrf.mxu0
        %v4603 = vadd.f32 0.0, %v4602
        %v4604 = vpop.f32.mrf.mxu0
        %v4605 = vadd.f32 0.0, %v4604
        %4606 = vmatprep.mubr.f32.mxu0 0.0
        %4607 = vmatmul.mubr.f32.gmra.mxu0 %v4415
        %v4608 = vpop.f32.mrf.mxu0
        %v4609 = vadd.f32 0.0, %v4608
        %v4610 = vpop.f32.mrf.mxu0
        %v4611 = vadd.f32 0.0, %v4610
        %4612 = vmatprep.mubr.f32.mxu0 0.0
        %4613 = vmatmul.mubr.f32.gmra.mxu0 %v4418
        %v4614 = vpop.f32.mrf.mxu0
        %v4615 = vadd.f32 0.0, %v4614
        %v4616 = vpop.f32.mrf.mxu0
        %v4617 = vadd.f32 0.0, %v4616
        %4618 = vmatprep.mubr.f32.mxu0 0.0
        %4619 = vmatmul.mubr.f32.gmra.mxu0 %v4421
        %v4620 = vpop.f32.mrf.mxu0
        %v4621 = vadd.f32 0.0, %v4620
        %v4622 = vpop.f32.mrf.mxu0
        %v4623 = vadd.f32 0.0, %v4622
        %4624 = vmatprep.mubr.f32.mxu0 0.0
        %4625 = vmatmul.mubr.f32.gmra.mxu0 %v4424
        %v4626 = vpop.f32.mrf.mxu0
        %v4627 = vadd.f32 0.0, %v4626
        %v4628 = vpop.f32.mrf.mxu0
        %v4629 = vadd.f32 0.0, %v4628
        %4630 = vmatprep.mubr.f32.mxu0 0.0
        %4631 = vmatmul.mubr.f32.gmra.mxu0 %v4427
        %v4632 = vpop.f32.mrf.mxu0
        %v4633 = vadd.f32 0.0, %v4632
        %v4634 = vpop.f32.mrf.mxu0
        %v4635 = vadd.f32 0.0, %v4634
        %4636 = vmatprep.mubr.f32.mxu0 0.0
        %4637 = vmatmul.mubr.f32.gmra.mxu0 %v4430
        %v4638 = vpop.f32.mrf.mxu0
        %v4639 = vadd.f32 0.0, %v4638
        %v4640 = vpop.f32.mrf.mxu0
        %v4641 = vadd.f32 0.0, %v4640
        %4642 = vmatprep.mubr.f32.mxu0 0.0
        %4643 = vmatmul.mubr.f32.gmra.mxu0 %v4433
        %v4644 = vpop.f32.mrf.mxu0
        %v4645 = vadd.f32 0.0, %v4644
        %v4646 = vpop.f32.mrf.mxu0
        %v4647 = vadd.f32 0.0, %v4646
        %4648 = vmatprep.mubr.f32.mxu0 0.0
        %4649 = vmatmul.mubr.f32.gmra.mxu0 %v4436
        %v4650 = vpop.f32.mrf.mxu0
        %v4651 = vadd.f32 0.0, %v4650
        %v4652 = vpop.f32.mrf.mxu0
        %v4653 = vadd.f32 0.0, %v4652
        %4654 = vmatprep.mubr.f32.mxu0 0.0
        %4655 = vmatmul.mubr.f32.gmra.mxu0 %v4439
        %v4656 = vpop.f32.mrf.mxu0
        %v4657 = vadd.f32 0.0, %v4656
        %v4658 = vpop.f32.mrf.mxu0
        %v4659 = vadd.f32 0.0, %v4658
        %4660 = vmatprep.mubr.f32.mxu0 0.0
        %4661 = vmatmul.mubr.f32.gmra.mxu0 %v4442
        %v4662 = vpop.f32.mrf.mxu0
        %v4663 = vadd.f32 0.0, %v4662
        %v4664 = vpop.f32.mrf.mxu0
        %v4665 = vadd.f32 0.0, %v4664
        %4666 = vmatprep.mubr.f32.mxu0 0.0
        %4667 = vmatmul.mubr.f32.gmra.mxu0 %v4445
        %v4668 = vpop.f32.mrf.mxu0
        %v4669 = vadd.f32 0.0, %v4668
        %v4670 = vpop.f32.mrf.mxu0
        %v4671 = vadd.f32 0.0, %v4670
        %4672 = vmatprep.mubr.f32.mxu0 0.0
        %4673 = vmatmul.mubr.f32.gmra.mxu0 %v4448
        %v4674 = vpop.f32.mrf.mxu0
        %v4675 = vadd.f32 0.0, %v4674
        %v4676 = vpop.f32.mrf.mxu0
        %v4677 = vadd.f32 0.0, %v4676
        %4678 = vmatprep.mubr.f32.mxu0 0.0
        %4679 = vmatmul.mubr.f32.gmra.mxu0 %v4451
        %v4680 = vpop.f32.mrf.mxu0
        %v4681 = vadd.f32 0.0, %v4680
        %v4682 = vpop.f32.mrf.mxu0
        %v4683 = vadd.f32 0.0, %v4682
        %4684 = vmatprep.mubr.f32.mxu0 0.0
        %4685 = vmatmul.mubr.f32.gmra.mxu0 %v4454
        %v4686 = vpop.f32.mrf.mxu0
        %v4687 = vadd.f32 0.0, %v4686
        %v4688 = vpop.f32.mrf.mxu0
        %v4689 = vadd.f32 0.0, %v4688
        %4690 = vmatprep.mubr.f32.mxu0 0.0
        %4691 = vmatmul.mubr.f32.gmra.mxu0 %v4457
        %v4692 = vpop.f32.mrf.mxu0
        %v4693 = vadd.f32 0.0, %v4692
        %v4694 = vpop.f32.mrf.mxu0
        %v4695 = vadd.f32 0.0, %v4694
        %4696 = vmatprep.mubr.f32.mxu0 0.0
        %4697 = vmatmul.mubr.f32.gmra.mxu0 %v4460
        %v4698 = vpop.f32.mrf.mxu0
        %v4699 = vadd.f32 0.0, %v4698
        %v4700 = vpop.f32.mrf.mxu0
        %v4701 = vadd.f32 0.0, %v4700
        %4702 = vmatprep.mubr.f32.mxu0 0.0
        %4703 = vmatmul.mubr.f32.gmra.mxu0 %v4463
        %v4704 = vpop.f32.mrf.mxu0
        %v4705 = vadd.f32 0.0, %v4704
        %v4706 = vpop.f32.mrf.mxu0
        %v4707 = vadd.f32 0.0, %v4706
        %4708 = vmatprep.mubr.f32.mxu0 0.0
        %4709 = vmatmul.mubr.f32.gmra.mxu0 %v4466
        %v4710 = vpop.f32.mrf.mxu0
        %v4711 = vadd.f32 0.0, %v4710
        %v4712 = vpop.f32.mrf.mxu0
        %v4713 = vadd.f32 0.0, %v4712
        %4714 = vmatprep.mubr.f32.mxu0 0.0
        %4715 = vmatmul.mubr.f32.gmra.mxu0 %v4469
        %v4716 = vpop.f32.mrf.mxu0
        %v4717 = vadd.f32 0.0, %v4716
        %v4718 = vpop.f32.mrf.mxu0
        %v4719 = vadd.f32 0.0, %v4718
        %4720 = vmatprep.mubr.f32.mxu0 0.0
        %4721 = vmatmul.mubr.f32.gmra.mxu0 %v4472
        %v4722 = vpop.f32.mrf.mxu0
        %v4723 = vadd.f32 0.0, %v4722
        %v4724 = vpop.f32.mrf.mxu0
        %v4725 = vadd.f32 0.0, %v4724
        %4726 = vmatprep.mubr.f32.mxu0 0.0
        %4727 = vmatmul.mubr.f32.gmra.mxu0 %v4475
        %v4728 = vpop.f32.mrf.mxu0
        %v4729 = vadd.f32 0.0, %v4728
        %v4730 = vpop.f32.mrf.mxu0
        %v4731 = vadd.f32 0.0, %v4730
        %4732 = vmatprep.mubr.f32.mxu0 0.0
        %4733 = vmatmul.mubr.f32.gmra.mxu0 %v4478
        %v4734 = vpop.f32.mrf.mxu0
        %v4735 = vadd.f32 0.0, %v4734
        %v4736 = vpop.f32.mrf.mxu0
        %v4737 = vadd.f32 0.0, %v4736
        %4738 = vmatprep.mubr.f32.mxu0 0.0
        %4739 = vmatmul.mubr.f32.gmra.mxu0 %v4481
        %v4740 = vpop.f32.mrf.mxu0
        %v4741 = vadd.f32 0.0, %v4740
        %v4742 = vpop.f32.mrf.mxu0
        %v4743 = vadd.f32 0.0, %v4742
        %4744 = vmatprep.mubr.f32.mxu0 0.0
        %4745 = vmatmul.mubr.f32.gmra.mxu0 %v4484
        %v4746 = vpop.f32.mrf.mxu0
        %v4747 = vadd.f32 0.0, %v4746
        %v4748 = vpop.f32.mrf.mxu0
        %v4749 = vadd.f32 0.0, %v4748
        %4750 = vmatprep.mubr.f32.mxu0 0.0
        %4751 = vmatmul.mubr.f32.gmra.mxu0 %v4487
        %v4752 = vpop.f32.mrf.mxu0
        %v4753 = vadd.f32 0.0, %v4752
        %v4754 = vpop.f32.mrf.mxu0
        %v4755 = vadd.f32 0.0, %v4754
        %4756 = vmatprep.mubr.f32.mxu0 0.0
        %4757 = vmatmul.mubr.f32.gmra.mxu0 %v4490
        %v4758 = vpop.f32.mrf.mxu0
        %v4759 = vadd.f32 0.0, %v4758
        %v4760 = vpop.f32.mrf.mxu0
        %v4761 = vadd.f32 0.0, %v4760
        %4762 = vmatprep.mubr.f32.mxu0 0.0
        %4763 = vmatmul.mubr.f32.gmra.mxu0 %v4493
        %v4764 = vpop.f32.mrf.mxu0
        %v4765 = vadd.f32 0.0, %v4764
        %v4766 = vpop.f32.mrf.mxu0
        %v4767 = vadd.f32 0.0, %v4766
        %4768 = vmatprep.mubr.f32.mxu0 0.0
        %4769 = vmatmul.mubr.f32.gmra.mxu0 %v4496
        %v4770 = vpop.f32.mrf.mxu0
        %v4771 = vpop.f32.mrf.mxu0
        %v4772 = vadd.f32 0.0, %v4771
        %4773 = vmatprep.mubr.f32.mxu0 0.0
        %4774 = vmatmul.mubr.f32.gmra.mxu0 %v4499
        %v4775 = vpop.f32.mrf.mxu0
        %v4776 = vpop.f32.mrf.mxu0
        %v4777 = vadd.f32 0.0, %v4776
        %4778 = vmatprep.mubr.f32.mxu0 0.0
        %4779 = vmatmul.mubr.f32.gmra.mxu0 %v4502
        %v4780 = vpop.f32.mrf.mxu0
        %v4781 = vpop.f32.mrf.mxu0
        %4782 = vmatprep.mubr.f32.mxu0 0.0
        %4783 = vmatmul.mubr.f32.gmra.mxu0 %v4505
        %v4784 = vpop.f32.mrf.mxu0
        %v4785 = vpop.f32.mrf.mxu0
        %4786 = vdwg.mxu0
        %4787 = vmatprep.subr.mxu0 0.0
        %4788 = vmatpush1.msra.mxu0 0.0
        %4789 = vmatprep.subr.mxu0 0.0
        %4790 = vmatpush1.msra.mxu0 0.0
        %4791 = vmatprep.subr.mxu0 0.0
        %4792 = vmatpush1.msra.mxu0 0.0
        %4793 = vmatprep.subr.mxu0 0.0
        %4794 = vmatpush1.msra.mxu0 0.0
        %4795 = vmatprep.subr.mxu0 0.0
        %4796 = vmatpush1.msra.mxu0 0.0
        %4797 = vmatprep.subr.mxu0 0.0
        %4798 = vmatpush1.msra.mxu0 0.0
        %4799 = vmatprep.subr.mxu0 0.0
        %4800 = vmatpush1.msra.mxu0 0.0
        %4801 = vmatprep.subr.mxu0 0.0
        %4802 = vmatpush1.msra.mxu0 0.0
        %4803 = vmatprep.subr.mxu0 0.0
        %4804 = vmatpush1.msra.mxu0 0.0
        %4805 = vmatprep.subr.mxu0 0.0
        %4806 = vmatpush1.msra.mxu0 0.0
        %4807 = vmatprep.subr.mxu0 0.0
        %4808 = vmatpush1.msra.mxu0 0.0
        %4809 = vmatprep.subr.mxu0 0.0
        %4810 = vmatpush1.msra.mxu0 0.0
        %4811 = vmatprep.subr.mxu0 0.0
        %4812 = vmatpush1.msra.mxu0 0.0
        %4813 = vmatprep.subr.mxu0 0.0
        %4814 = vmatpush1.msra.mxu0 0.0
        %4815 = vmatprep.subr.mxu0 0.0
        %4816 = vmatpush1.msra.mxu0 0.0
        %4817 = vmatprep.subr.mxu0 0.0
        %4818 = vmatpush1.msra.mxu0 %v4512
        %4819 = vmatprep.subr.mxu0 0.0
        %4820 = vmatpush2.msra.mxu0 0.0
        %4821 = vmatprep.subr.mxu0 0.0
        %4822 = vmatpush2.msra.mxu0 0.0
        %4823 = vmatprep.subr.mxu0 0.0
        %4824 = vmatpush2.msra.mxu0 0.0
        %4825 = vmatprep.subr.mxu0 0.0
        %4826 = vmatpush2.msra.mxu0 0.0
        %4827 = vmatprep.subr.mxu0 0.0
        %4828 = vmatpush2.msra.mxu0 0.0
        %4829 = vmatprep.subr.mxu0 0.0
        %4830 = vmatpush2.msra.mxu0 0.0
        %4831 = vmatprep.subr.mxu0 0.0
        %4832 = vmatpush2.msra.mxu0 0.0
        %4833 = vmatprep.subr.mxu0 0.0
        %4834 = vmatpush2.msra.mxu0 0.0
        %4835 = vmatprep.subr.mxu0 0.0
        %4836 = vmatpush2.msra.mxu0 0.0
        %4837 = vmatprep.subr.mxu0 0.0
        %4838 = vmatpush2.msra.mxu0 0.0
        %4839 = vmatprep.subr.mxu0 0.0
        %4840 = vmatpush2.msra.mxu0 0.0
        %4841 = vmatprep.subr.mxu0 0.0
        %4842 = vmatpush2.msra.mxu0 0.0
        %4843 = vmatprep.subr.mxu0 0.0
        %4844 = vmatpush2.msra.mxu0 0.0
        %4845 = vmatprep.subr.mxu0 0.0
        %4846 = vmatpush2.msra.mxu0 0.0
        %4847 = vmatprep.subr.mxu0 0.0
        %4848 = vmatpush2.msra.mxu0 0.0
        %4849 = vmatprep.subr.mxu0 0.0
        %4850 = vmatpush2.msra.mxu0 0.0
        %4851 = vmatprep.mubr.f32.mxu0 0.0
        %4852 = vmatmul.mubr.f32.gmra.mxu0 %v4400
        %v4853 = vpop.f32.mrf.mxu0
        %v4854 = vpop.f32.mrf.mxu0
        %4855 = vmatprep.mubr.f32.mxu0 0.0
        %4856 = vmatmul.mubr.f32.gmra.mxu0 %v4403
        %v4857 = vpop.f32.mrf.mxu0
        %v4858 = vpop.f32.mrf.mxu0
        %4859 = vmatprep.mubr.f32.mxu0 0.0
        %4860 = vmatmul.mubr.f32.gmra.mxu0 %v4406
        %v4861 = vpop.f32.mrf.mxu0
        %v4862 = vpop.f32.mrf.mxu0
        %4863 = vmatprep.mubr.f32.mxu0 0.0
        %4864 = vmatmul.mubr.f32.gmra.mxu0 %v4409
        %v4865 = vpop.f32.mrf.mxu0
        %v4866 = vpop.f32.mrf.mxu0
        %4867 = vmatprep.mubr.f32.mxu0 0.0
        %4868 = vmatmul.mubr.f32.gmra.mxu0 %v4412
        %v4869 = vpop.f32.mrf.mxu0
        %v4870 = vadd.f32 0.0, %v4869
        %v4871 = vpop.f32.mrf.mxu0
        %4872 = vmatprep.mubr.f32.mxu0 0.0
        %4873 = vmatmul.mubr.f32.gmra.mxu0 %v4415
        %v4874 = vpop.f32.mrf.mxu0
        %v4875 = vadd.f32 0.0, %v4874
        %v4876 = vpop.f32.mrf.mxu0
        %4877 = vmatprep.mubr.f32.mxu0 0.0
        %4878 = vmatmul.mubr.f32.gmra.mxu0 %v4418
        %v4879 = vpop.f32.mrf.mxu0
        %v4880 = vadd.f32 0.0, %v4879
        %v4881 = vpop.f32.mrf.mxu0
        %4882 = vmatprep.mubr.f32.mxu0 0.0
        %4883 = vmatmul.mubr.f32.gmra.mxu0 %v4421
        %v4884 = vpop.f32.mrf.mxu0
        %v4885 = vadd.f32 0.0, %v4884
        %v4886 = vpop.f32.mrf.mxu0
        %4887 = vmatprep.mubr.f32.mxu0 0.0
        %4888 = vmatmul.mubr.f32.gmra.mxu0 %v4424
        %v4889 = vpop.f32.mrf.mxu0
        %v4890 = vadd.f32 0.0, %v4889
        %v4891 = vpop.f32.mrf.mxu0
        %4892 = vmatprep.mubr.f32.mxu0 0.0
        %4893 = vmatmul.mubr.f32.gmra.mxu0 %v4427
        %v4894 = vpop.f32.mrf.mxu0
        %v4895 = vadd.f32 0.0, %v4894
        %v4896 = vpop.f32.mrf.mxu0
        %4897 = vmatprep.mubr.f32.mxu0 0.0
        %4898 = vmatmul.mubr.f32.gmra.mxu0 %v4430
        %v4899 = vpop.f32.mrf.mxu0
        %v4900 = vadd.f32 0.0, %v4899
        %v4901 = vpop.f32.mrf.mxu0
        %4902 = vmatprep.mubr.f32.mxu0 0.0
        %4903 = vmatmul.mubr.f32.gmra.mxu0 %v4433
        %v4904 = vpop.f32.mrf.mxu0
        %v4905 = vadd.f32 0.0, %v4904
        %v4906 = vpop.f32.mrf.mxu0
        %4907 = vmatprep.mubr.f32.mxu0 0.0
        %4908 = vmatmul.mubr.f32.gmra.mxu0 %v4436
        %v4909 = vpop.f32.mrf.mxu0
        %v4910 = vadd.f32 0.0, %v4909
        %v4911 = vpop.f32.mrf.mxu0
        %4912 = vmatprep.mubr.f32.mxu0 0.0
        %4913 = vmatmul.mubr.f32.gmra.mxu0 %v4439
        %v4914 = vpop.f32.mrf.mxu0
        %v4915 = vadd.f32 0.0, %v4914
        %v4916 = vpop.f32.mrf.mxu0
        %4917 = vmatprep.mubr.f32.mxu0 0.0
        %4918 = vmatmul.mubr.f32.gmra.mxu0 %v4442
        %v4919 = vpop.f32.mrf.mxu0
        %v4920 = vadd.f32 0.0, %v4919
        %v4921 = vpop.f32.mrf.mxu0
        %4922 = vmatprep.mubr.f32.mxu0 0.0
        %4923 = vmatmul.mubr.f32.gmra.mxu0 %v4445
        %v4924 = vpop.f32.mrf.mxu0
        %v4925 = vadd.f32 0.0, %v4924
        %v4926 = vpop.f32.mrf.mxu0
        %4927 = vmatprep.mubr.f32.mxu0 0.0
        %4928 = vmatmul.mubr.f32.gmra.mxu0 %v4448
        %v4929 = vpop.f32.mrf.mxu0
        %v4930 = vadd.f32 0.0, %v4929
        %v4931 = vpop.f32.mrf.mxu0
        %4932 = vmatprep.mubr.f32.mxu0 0.0
        %4933 = vmatmul.mubr.f32.gmra.mxu0 %v4451
        %v4934 = vpop.f32.mrf.mxu0
        %v4935 = vadd.f32 0.0, %v4934
        %v4936 = vpop.f32.mrf.mxu0
        %4937 = vmatprep.mubr.f32.mxu0 0.0
        %4938 = vmatmul.mubr.f32.gmra.mxu0 %v4454
        %v4939 = vpop.f32.mrf.mxu0
        %v4940 = vadd.f32 0.0, %v4939
        %v4941 = vpop.f32.mrf.mxu0
        %4942 = vmatprep.mubr.f32.mxu0 0.0
        %4943 = vmatmul.mubr.f32.gmra.mxu0 %v4457
        %v4944 = vpop.f32.mrf.mxu0
        %v4945 = vadd.f32 0.0, %v4944
        %v4946 = vpop.f32.mrf.mxu0
        %4947 = vmatprep.mubr.f32.mxu0 0.0
        %4948 = vmatmul.mubr.f32.gmra.mxu0 %v4460
        %v4949 = vpop.f32.mrf.mxu0
        %v4950 = vadd.f32 0.0, %v4949
        %v4951 = vpop.f32.mrf.mxu0
        %4952 = vmatprep.mubr.f32.mxu0 0.0
        %4953 = vmatmul.mubr.f32.gmra.mxu0 %v4463
        %v4954 = vpop.f32.mrf.mxu0
        %v4955 = vadd.f32 0.0, %v4954
        %v4956 = vpop.f32.mrf.mxu0
        %4957 = vmatprep.mubr.f32.mxu0 0.0
        %4958 = vmatmul.mubr.f32.gmra.mxu0 %v4466
        %v4959 = vpop.f32.mrf.mxu0
        %v4960 = vadd.f32 0.0, %v4959
        %v4961 = vpop.f32.mrf.mxu0
        %4962 = vmatprep.mubr.f32.mxu0 0.0
        %4963 = vmatmul.mubr.f32.gmra.mxu0 %v4469
        %v4964 = vpop.f32.mrf.mxu0
        %v4965 = vadd.f32 0.0, %v4964
        %v4966 = vpop.f32.mrf.mxu0
        %4967 = vmatprep.mubr.f32.mxu0 0.0
        %4968 = vmatmul.mubr.f32.gmra.mxu0 %v4472
        %v4969 = vpop.f32.mrf.mxu0
        %v4970 = vadd.f32 0.0, %v4969
        %v4971 = vpop.f32.mrf.mxu0
        %4972 = vmatprep.mubr.f32.mxu0 0.0
        %4973 = vmatmul.mubr.f32.gmra.mxu0 %v4475
        %v4974 = vpop.f32.mrf.mxu0
        %v4975 = vadd.f32 0.0, %v4974
        %v4976 = vpop.f32.mrf.mxu0
        %4977 = vmatprep.mubr.f32.mxu0 0.0
        %4978 = vmatmul.mubr.f32.gmra.mxu0 %v4478
        %v4979 = vpop.f32.mrf.mxu0
        %v4980 = vadd.f32 0.0, %v4979
        %v4981 = vpop.f32.mrf.mxu0
        %4982 = vmatprep.mubr.f32.mxu0 0.0
        %4983 = vmatmul.mubr.f32.gmra.mxu0 %v4481
        %v4984 = vpop.f32.mrf.mxu0
        %v4985 = vadd.f32 0.0, %v4984
        %v4986 = vpop.f32.mrf.mxu0
        %4987 = vmatprep.mubr.f32.mxu0 0.0
        %4988 = vmatmul.mubr.f32.gmra.mxu0 %v4484
        %v4989 = vpop.f32.mrf.mxu0
        %v4990 = vadd.f32 0.0, %v4989
        %v4991 = vpop.f32.mrf.mxu0
        %4992 = vmatprep.mubr.f32.mxu0 0.0
        %4993 = vmatmul.mubr.f32.gmra.mxu0 %v4487
        %v4994 = vpop.f32.mrf.mxu0
        %v4995 = vadd.f32 0.0, %v4994
        %v4996 = vpop.f32.mrf.mxu0
        %4997 = vmatprep.mubr.f32.mxu0 0.0
        %4998 = vmatmul.mubr.f32.gmra.mxu0 %v4490
        %v4999 = vpop.f32.mrf.mxu0
        %v5000 = vadd.f32 0.0, %v4999
        %v5001 = vpop.f32.mrf.mxu0
        %5002 = vmatprep.mubr.f32.mxu0 0.0
        %5003 = vmatmul.mubr.f32.gmra.mxu0 %v4493
        %v5004 = vpop.f32.mrf.mxu0
        %v5005 = vadd.f32 0.0, %v5004
        %v5006 = vpop.f32.mrf.mxu0
        %5007 = vmatprep.mubr.f32.mxu0 0.0
        %5008 = vmatmul.mubr.f32.gmra.mxu0 %v4496
        %v5009 = vpop.f32.mrf.mxu0
        %v5010 = vadd.f32 0.0, %v5009
        %v5011 = vpop.f32.mrf.mxu0
        %5012 = vmatprep.mubr.f32.mxu0 0.0
        %5013 = vmatmul.mubr.f32.gmra.mxu0 %v4499
        %v5014 = vpop.f32.mrf.mxu0
        %v5015 = vadd.f32 0.0, %v5014
        %v5016 = vpop.f32.mrf.mxu0
        %5017 = vmatprep.mubr.f32.mxu0 0.0
        %5018 = vmatmul.mubr.f32.gmra.mxu0 %v4502
        %v5019 = vpop.f32.mrf.mxu0
        %v5020 = vadd.f32 0.0, %v5019
        %v5021 = vpop.f32.mrf.mxu0
        %5022 = vmatprep.mubr.f32.mxu0 0.0
        %5023 = vmatmul.mubr.f32.gmra.mxu0 %v4505
        %v5024 = vpop.f32.mrf.mxu0
        %v5025 = vadd.f32 0.0, %v5024
        %v5026 = vpop.f32.mrf.mxu0
        %5027 = vdwg.mxu0
        %v5030 = vcombine.high %v4391, %v4391
        %v5032 = vsel %vm3738, %v4066, 0
        %v5035 = vsel %vm3738, %v4067, 0
        %v5038 = vsel %vm3738, %v4068, 0
        %v5041 = vsel %vm3738, %v4069, 0
        %v5044 = vsel %vm3738, %v4070, 0
        %v5047 = vsel %vm3738, %v4071, 0
        %v5050 = vsel %vm3738, %v4072, 0
        %v5053 = vsel %vm3738, %v4073, 0
        %v5056 = vsel %vm3738, %v4074, 0
        %v5059 = vsel %vm3738, %v4075, 0
        %v5062 = vsel %vm3738, %v4076, 0
        %v5065 = vsel %vm3738, %v4077, 0
        %v5068 = vsel %vm3738, %v4078, 0
        %v5071 = vsel %vm3738, %v4079, 0
        %v5074 = vsel %vm3738, %v4080, 0
        %v5077 = vsel %vm3738, %v4081, 0
        %v5080 = vsel %vm3738, %v4082, 0
        %v5083 = vsel %vm3738, %v4083, 0
        %v5086 = vsel %vm3738, %v4084, 0
        %v5089 = vsel %vm3738, %v4085, 0
        %v5092 = vsel %vm3738, %v4086, 0
        %v5095 = vsel %vm3738, %v4087, 0
        %v5098 = vsel %vm3738, %v4088, 0
        %v5101 = vsel %vm3738, %v4089, 0
        %v5104 = vsel %vm3738, %v4090, 0
        %v5107 = vsel %vm3738, %v4091, 0
        %v5110 = vsel %vm3738, %v4092, 0
        %v5113 = vsel %vm3738, %v4093, 0
        %v5116 = vsel %vm3738, %v4094, 0
        %v5119 = vsel %vm3738, %v4095, 0
        %v5122 = vsel %vm3738, %v4096, 0
        %v5125 = vsel %vm3738, %v4097, 0
        %v5128 = vsel %vm3738, %v4098, 0
        %v5131 = vsel %vm3738, %v4099, 0
        %v5134 = vsel %vm3738, %v4100, 0
        %v5137 = vsel %vm3738, %v4101, 0
        %v5139 = vsel %vm4507, %v4391, 0
        %v5141 = vsel %vm4507, %v5030, 0
        %v5143 = vsel %vm4507, %v4392, 0
        %5145 = vmatprep.subr.mxu0 0.0
        %5146 = vmatpush1.msra.mxu0 0.0
        %5147 = vmatprep.subr.mxu0 0.0
        %5148 = vmatpush1.msra.mxu0 0.0
        %5149 = vmatprep.subr.mxu0 0.0
        %5150 = vmatpush1.msra.mxu0 0.0
        %5151 = vmatprep.subr.mxu0 0.0
        %5152 = vmatpush1.msra.mxu0 0.0
        %5153 = vmatprep.subr.mxu0 0.0
        %5154 = vmatpush1.msra.mxu0 0.0
        %5155 = vmatprep.subr.mxu0 0.0
        %5156 = vmatpush1.msra.mxu0 0.0
        %5157 = vmatprep.subr.mxu0 0.0
        %5158 = vmatpush1.msra.mxu0 0.0
        %5159 = vmatprep.subr.mxu0 0.0
        %5160 = vmatpush1.msra.mxu0 0.0
        %5161 = vmatprep.subr.mxu0 0.0
        %5162 = vmatpush1.msra.mxu0 0.0
        %5163 = vmatprep.subr.mxu0 0.0
        %5164 = vmatpush1.msra.mxu0 0.0
        %5165 = vmatprep.subr.mxu0 0.0
        %5166 = vmatpush1.msra.mxu0 0.0
        %5167 = vmatprep.subr.mxu0 0.0
        %5168 = vmatpush1.msra.mxu0 0.0
        %5169 = vmatprep.subr.mxu0 0.0
        %5170 = vmatpush1.msra.mxu0 0.0
        %5171 = vmatprep.subr.mxu0 0.0
        %5172 = vmatpush1.msra.mxu0 0.0
        %5173 = vmatprep.subr.mxu0 0.0
        %5174 = vmatpush1.msra.mxu0 0.0
        %5175 = vmatprep.subr.mxu0 %v5141
        %5176 = vmatpush1.msra.mxu0 %v5139
        %5177 = vmatprep.subr.mxu0 0.0
        %5178 = vmatpush2.msra.mxu0 0.0
        %5179 = vmatprep.subr.mxu0 0.0
        %5180 = vmatpush2.msra.mxu0 0.0
        %5181 = vmatprep.subr.mxu0 0.0
        %5182 = vmatpush2.msra.mxu0 0.0
        %5183 = vmatprep.subr.mxu0 0.0
        %5184 = vmatpush2.msra.mxu0 0.0
        %5185 = vmatprep.subr.mxu0 0.0
        %5186 = vmatpush2.msra.mxu0 0.0
        %5187 = vmatprep.subr.mxu0 0.0
        %5188 = vmatpush2.msra.mxu0 0.0
        %5189 = vmatprep.subr.mxu0 0.0
        %5190 = vmatpush2.msra.mxu0 0.0
        %5191 = vmatprep.subr.mxu0 0.0
        %5192 = vmatpush2.msra.mxu0 0.0
        %5193 = vmatprep.subr.mxu0 0.0
        %5194 = vmatpush2.msra.mxu0 0.0
        %5195 = vmatprep.subr.mxu0 0.0
        %5196 = vmatpush2.msra.mxu0 0.0
        %5197 = vmatprep.subr.mxu0 0.0
        %5198 = vmatpush2.msra.mxu0 0.0
        %5199 = vmatprep.subr.mxu0 0.0
        %5200 = vmatpush2.msra.mxu0 0.0
        %5201 = vmatprep.subr.mxu0 0.0
        %5202 = vmatpush2.msra.mxu0 0.0
        %5203 = vmatprep.subr.mxu0 0.0
        %5204 = vmatpush2.msra.mxu0 0.0
        %5205 = vmatprep.subr.mxu0 0.0
        %5206 = vmatpush2.msra.mxu0 0.0
        %5207 = vmatprep.subr.mxu0 0.0
        %5208 = vmatpush2.msra.mxu0 0.0
        %5209 = vmatprep.mubr.f32.mxu0 0.0
        %5210 = vmatmul.mubr.f32.gmra.mxu0 %v5032
        %v5211 = vpop.f32.mrf.mxu0
        %v5212 = vadd.f32 %v4581, %v5211
        %v5213 = vpop.f32.mrf.mxu0
        %5214 = vmatprep.mubr.f32.mxu0 0.0
        %5215 = vmatmul.mubr.f32.gmra.mxu0 %v5035
        %v5216 = vpop.f32.mrf.mxu0
        %v5217 = vadd.f32 %v4586, %v5216
        %v5218 = vpop.f32.mrf.mxu0
        %5219 = vmatprep.mubr.f32.mxu0 0.0
        %5220 = vmatmul.mubr.f32.gmra.mxu0 %v5038
        %v5221 = vpop.f32.mrf.mxu0
        %v5222 = vadd.f32 %v4591, %v5221
        %v5223 = vpop.f32.mrf.mxu0
        %v5224 = vadd.f32 %v4593, %v5223
        %5225 = vmatprep.mubr.f32.mxu0 0.0
        %5226 = vmatmul.mubr.f32.gmra.mxu0 %v5041
        %v5227 = vpop.f32.mrf.mxu0
        %v5228 = vadd.f32 %v4597, %v5227
        %v5229 = vpop.f32.mrf.mxu0
        %v5230 = vadd.f32 %v4599, %v5229
        %5231 = vmatprep.mubr.f32.mxu0 0.0
        %5232 = vmatmul.mubr.f32.gmra.mxu0 %v5044
        %v5233 = vpop.f32.mrf.mxu0
        %v5234 = vadd.f32 %v4603, %v5233
        %v5235 = vpop.f32.mrf.mxu0
        %v5236 = vadd.f32 %v4605, %v5235
        %5237 = vmatprep.mubr.f32.mxu0 0.0
        %5238 = vmatmul.mubr.f32.gmra.mxu0 %v5047
        %v5239 = vpop.f32.mrf.mxu0
        %v5240 = vadd.f32 %v4609, %v5239
        %v5241 = vpop.f32.mrf.mxu0
        %v5242 = vadd.f32 %v4611, %v5241
        %5243 = vmatprep.mubr.f32.mxu0 0.0
        %5244 = vmatmul.mubr.f32.gmra.mxu0 %v5050
        %v5245 = vpop.f32.mrf.mxu0
        %v5246 = vadd.f32 %v4615, %v5245
        %v5247 = vpop.f32.mrf.mxu0
        %v5248 = vadd.f32 %v4617, %v5247
        %5249 = vmatprep.mubr.f32.mxu0 0.0
        %5250 = vmatmul.mubr.f32.gmra.mxu0 %v5053
        %v5251 = vpop.f32.mrf.mxu0
        %v5252 = vadd.f32 %v4621, %v5251
        %v5253 = vpop.f32.mrf.mxu0
        %v5254 = vadd.f32 %v4623, %v5253
        %5255 = vmatprep.mubr.f32.mxu0 0.0
        %5256 = vmatmul.mubr.f32.gmra.mxu0 %v5056
        %v5257 = vpop.f32.mrf.mxu0
        %v5258 = vadd.f32 %v4627, %v5257
        %v5259 = vpop.f32.mrf.mxu0
        %v5260 = vadd.f32 %v4629, %v5259
        %5261 = vmatprep.mubr.f32.mxu0 0.0
        %5262 = vmatmul.mubr.f32.gmra.mxu0 %v5059
        %v5263 = vpop.f32.mrf.mxu0
        %v5264 = vadd.f32 %v4633, %v5263
        %v5265 = vpop.f32.mrf.mxu0
        %v5266 = vadd.f32 %v4635, %v5265
        %5267 = vmatprep.mubr.f32.mxu0 0.0
        %5268 = vmatmul.mubr.f32.gmra.mxu0 %v5062
        %v5269 = vpop.f32.mrf.mxu0
        %v5270 = vadd.f32 %v4639, %v5269
        %v5271 = vpop.f32.mrf.mxu0
        %v5272 = vadd.f32 %v4641, %v5271
        %5273 = vmatprep.mubr.f32.mxu0 0.0
        %5274 = vmatmul.mubr.f32.gmra.mxu0 %v5065
        %v5275 = vpop.f32.mrf.mxu0
        %v5276 = vadd.f32 %v4645, %v5275
        %v5277 = vpop.f32.mrf.mxu0
        %v5278 = vadd.f32 %v4647, %v5277
        %5279 = vmatprep.mubr.f32.mxu0 0.0
        %5280 = vmatmul.mubr.f32.gmra.mxu0 %v5068
        %v5281 = vpop.f32.mrf.mxu0
        %v5282 = vadd.f32 %v4651, %v5281
        %v5283 = vpop.f32.mrf.mxu0
        %v5284 = vadd.f32 %v4653, %v5283
        %5285 = vmatprep.mubr.f32.mxu0 0.0
        %5286 = vmatmul.mubr.f32.gmra.mxu0 %v5071
        %v5287 = vpop.f32.mrf.mxu0
        %v5288 = vadd.f32 %v4657, %v5287
        %v5289 = vpop.f32.mrf.mxu0
        %v5290 = vadd.f32 %v4659, %v5289
        %5291 = vmatprep.mubr.f32.mxu0 0.0
        %5292 = vmatmul.mubr.f32.gmra.mxu0 %v5074
        %v5293 = vpop.f32.mrf.mxu0
        %v5294 = vadd.f32 %v4663, %v5293
        %v5295 = vpop.f32.mrf.mxu0
        %v5296 = vadd.f32 %v4665, %v5295
        %5297 = vmatprep.mubr.f32.mxu0 0.0
        %5298 = vmatmul.mubr.f32.gmra.mxu0 %v5077
        %v5299 = vpop.f32.mrf.mxu0
        %v5300 = vadd.f32 %v4669, %v5299
        %v5301 = vpop.f32.mrf.mxu0
        %v5302 = vadd.f32 %v4671, %v5301
        %5303 = vmatprep.mubr.f32.mxu0 0.0
        %5304 = vmatmul.mubr.f32.gmra.mxu0 %v5080
        %v5305 = vpop.f32.mrf.mxu0
        %v5306 = vadd.f32 %v4675, %v5305
        %v5307 = vpop.f32.mrf.mxu0
        %v5308 = vadd.f32 %v4677, %v5307
        %5309 = vmatprep.mubr.f32.mxu0 0.0
        %5310 = vmatmul.mubr.f32.gmra.mxu0 %v5083
        %v5311 = vpop.f32.mrf.mxu0
        %v5312 = vadd.f32 %v4681, %v5311
        %v5313 = vpop.f32.mrf.mxu0
        %v5314 = vadd.f32 %v4683, %v5313
        %5315 = vmatprep.mubr.f32.mxu0 0.0
        %5316 = vmatmul.mubr.f32.gmra.mxu0 %v5086
        %v5317 = vpop.f32.mrf.mxu0
        %v5318 = vadd.f32 %v4687, %v5317
        %v5319 = vpop.f32.mrf.mxu0
        %v5320 = vadd.f32 %v4689, %v5319
        %5321 = vmatprep.mubr.f32.mxu0 0.0
        %5322 = vmatmul.mubr.f32.gmra.mxu0 %v5089
        %v5323 = vpop.f32.mrf.mxu0
        %v5324 = vadd.f32 %v4693, %v5323
        %v5325 = vpop.f32.mrf.mxu0
        %v5326 = vadd.f32 %v4695, %v5325
        %5327 = vmatprep.mubr.f32.mxu0 0.0
        %5328 = vmatmul.mubr.f32.gmra.mxu0 %v5092
        %v5329 = vpop.f32.mrf.mxu0
        %v5330 = vadd.f32 %v4699, %v5329
        %v5331 = vpop.f32.mrf.mxu0
        %v5332 = vadd.f32 %v4701, %v5331
        %5333 = vmatprep.mubr.f32.mxu0 0.0
        %5334 = vmatmul.mubr.f32.gmra.mxu0 %v5095
        %v5335 = vpop.f32.mrf.mxu0
        %v5336 = vadd.f32 %v4705, %v5335
        %v5337 = vpop.f32.mrf.mxu0
        %v5338 = vadd.f32 %v4707, %v5337
        %5339 = vmatprep.mubr.f32.mxu0 0.0
        %5340 = vmatmul.mubr.f32.gmra.mxu0 %v5098
        %v5341 = vpop.f32.mrf.mxu0
        %v5342 = vadd.f32 %v4711, %v5341
        %v5343 = vpop.f32.mrf.mxu0
        %v5344 = vadd.f32 %v4713, %v5343
        %5345 = vmatprep.mubr.f32.mxu0 0.0
        %5346 = vmatmul.mubr.f32.gmra.mxu0 %v5101
        %v5347 = vpop.f32.mrf.mxu0
        %v5348 = vadd.f32 %v4717, %v5347
        %v5349 = vpop.f32.mrf.mxu0
        %v5350 = vadd.f32 %v4719, %v5349
        %5351 = vmatprep.mubr.f32.mxu0 0.0
        %5352 = vmatmul.mubr.f32.gmra.mxu0 %v5104
        %v5353 = vpop.f32.mrf.mxu0
        %v5354 = vadd.f32 %v4723, %v5353
        %v5355 = vpop.f32.mrf.mxu0
        %v5356 = vadd.f32 %v4725, %v5355
        %5357 = vmatprep.mubr.f32.mxu0 0.0
        %5358 = vmatmul.mubr.f32.gmra.mxu0 %v5107
        %v5359 = vpop.f32.mrf.mxu0
        %v5360 = vadd.f32 %v4729, %v5359
        %v5361 = vpop.f32.mrf.mxu0
        %v5362 = vadd.f32 %v4731, %v5361
        %5363 = vmatprep.mubr.f32.mxu0 0.0
        %5364 = vmatmul.mubr.f32.gmra.mxu0 %v5110
        %v5365 = vpop.f32.mrf.mxu0
        %v5366 = vadd.f32 %v4735, %v5365
        %v5367 = vpop.f32.mrf.mxu0
        %v5368 = vadd.f32 %v4737, %v5367
        %5369 = vmatprep.mubr.f32.mxu0 0.0
        %5370 = vmatmul.mubr.f32.gmra.mxu0 %v5113
        %v5371 = vpop.f32.mrf.mxu0
        %v5372 = vadd.f32 %v4741, %v5371
        %v5373 = vpop.f32.mrf.mxu0
        %v5374 = vadd.f32 %v4743, %v5373
        %5375 = vmatprep.mubr.f32.mxu0 0.0
        %5376 = vmatmul.mubr.f32.gmra.mxu0 %v5116
        %v5377 = vpop.f32.mrf.mxu0
        %v5378 = vadd.f32 %v4747, %v5377
        %v5379 = vpop.f32.mrf.mxu0
        %v5380 = vadd.f32 %v4749, %v5379
        %5381 = vmatprep.mubr.f32.mxu0 0.0
        %5382 = vmatmul.mubr.f32.gmra.mxu0 %v5119
        %v5383 = vpop.f32.mrf.mxu0
        %v5384 = vadd.f32 %v4753, %v5383
        %v5385 = vpop.f32.mrf.mxu0
        %v5386 = vadd.f32 %v4755, %v5385
        %5387 = vmatprep.mubr.f32.mxu0 0.0
        %5388 = vmatmul.mubr.f32.gmra.mxu0 %v5122
        %v5389 = vpop.f32.mrf.mxu0
        %v5390 = vadd.f32 %v4759, %v5389
        %v5391 = vpop.f32.mrf.mxu0
        %v5392 = vadd.f32 %v4761, %v5391
        %5393 = vmatprep.mubr.f32.mxu0 0.0
        %5394 = vmatmul.mubr.f32.gmra.mxu0 %v5125
        %v5395 = vpop.f32.mrf.mxu0
        %v5396 = vadd.f32 %v4765, %v5395
        %v5397 = vpop.f32.mrf.mxu0
        %v5398 = vadd.f32 %v4767, %v5397
        %5399 = vmatprep.mubr.f32.mxu0 0.0
        %5400 = vmatmul.mubr.f32.gmra.mxu0 %v5128
        %v5401 = vpop.f32.mrf.mxu0
        %v5402 = vpop.f32.mrf.mxu0
        %v5403 = vadd.f32 %v4772, %v5402
        %5404 = vmatprep.mubr.f32.mxu0 0.0
        %5405 = vmatmul.mubr.f32.gmra.mxu0 %v5131
        %v5406 = vpop.f32.mrf.mxu0
        %v5407 = vpop.f32.mrf.mxu0
        %v5408 = vadd.f32 %v4777, %v5407
        %5409 = vmatprep.mubr.f32.mxu0 0.0
        %5410 = vmatmul.mubr.f32.gmra.mxu0 %v5134
        %v5411 = vpop.f32.mrf.mxu0
        %v5412 = vpop.f32.mrf.mxu0
        %5413 = vmatprep.mubr.f32.mxu0 0.0
        %5414 = vmatmul.mubr.f32.gmra.mxu0 %v5137
        %v5415 = vpop.f32.mrf.mxu0
        %v5416 = vpop.f32.mrf.mxu0
        %5417 = vdwg.mxu0
        %5418 = vmatprep.subr.mxu0 0.0
        %5419 = vmatpush1.msra.mxu0 0.0
        %5420 = vmatprep.subr.mxu0 0.0
        %5421 = vmatpush1.msra.mxu0 0.0
        %5422 = vmatprep.subr.mxu0 0.0
        %5423 = vmatpush1.msra.mxu0 0.0
        %5424 = vmatprep.subr.mxu0 0.0
        %5425 = vmatpush1.msra.mxu0 0.0
        %5426 = vmatprep.subr.mxu0 0.0
        %5427 = vmatpush1.msra.mxu0 0.0
        %5428 = vmatprep.subr.mxu0 0.0
        %5429 = vmatpush1.msra.mxu0 0.0
        %5430 = vmatprep.subr.mxu0 0.0
        %5431 = vmatpush1.msra.mxu0 0.0
        %5432 = vmatprep.subr.mxu0 0.0
        %5433 = vmatpush1.msra.mxu0 0.0
        %5434 = vmatprep.subr.mxu0 0.0
        %5435 = vmatpush1.msra.mxu0 0.0
        %5436 = vmatprep.subr.mxu0 0.0
        %5437 = vmatpush1.msra.mxu0 0.0
        %5438 = vmatprep.subr.mxu0 0.0
        %5439 = vmatpush1.msra.mxu0 0.0
        %5440 = vmatprep.subr.mxu0 0.0
        %5441 = vmatpush1.msra.mxu0 0.0
        %5442 = vmatprep.subr.mxu0 0.0
        %5443 = vmatpush1.msra.mxu0 0.0
        %5444 = vmatprep.subr.mxu0 0.0
        %5445 = vmatpush1.msra.mxu0 0.0
        %5446 = vmatprep.subr.mxu0 0.0
        %5447 = vmatpush1.msra.mxu0 0.0
        %5448 = vmatprep.subr.mxu0 0.0
        %5449 = vmatpush1.msra.mxu0 %v5143
        %5450 = vmatprep.subr.mxu0 0.0
        %5451 = vmatpush2.msra.mxu0 0.0
        %5452 = vmatprep.subr.mxu0 0.0
        %5453 = vmatpush2.msra.mxu0 0.0
        %5454 = vmatprep.subr.mxu0 0.0
        %5455 = vmatpush2.msra.mxu0 0.0
        %5456 = vmatprep.subr.mxu0 0.0
        %5457 = vmatpush2.msra.mxu0 0.0
        %5458 = vmatprep.subr.mxu0 0.0
        %5459 = vmatpush2.msra.mxu0 0.0
        %5460 = vmatprep.subr.mxu0 0.0
        %5461 = vmatpush2.msra.mxu0 0.0
        %5462 = vmatprep.subr.mxu0 0.0
        %5463 = vmatpush2.msra.mxu0 0.0
        %5464 = vmatprep.subr.mxu0 0.0
        %5465 = vmatpush2.msra.mxu0 0.0
        %5466 = vmatprep.subr.mxu0 0.0
        %5467 = vmatpush2.msra.mxu0 0.0
        %5468 = vmatprep.subr.mxu0 0.0
        %5469 = vmatpush2.msra.mxu0 0.0
        %5470 = vmatprep.subr.mxu0 0.0
        %5471 = vmatpush2.msra.mxu0 0.0
        %5472 = vmatprep.subr.mxu0 0.0
        %5473 = vmatpush2.msra.mxu0 0.0
        %5474 = vmatprep.subr.mxu0 0.0
        %5475 = vmatpush2.msra.mxu0 0.0
        %5476 = vmatprep.subr.mxu0 0.0
        %5477 = vmatpush2.msra.mxu0 0.0
        %5478 = vmatprep.subr.mxu0 0.0
        %5479 = vmatpush2.msra.mxu0 0.0
        %5480 = vmatprep.subr.mxu0 0.0
        %5481 = vmatpush2.msra.mxu0 0.0
        %5482 = vmatprep.mubr.f32.mxu0 0.0
        %5483 = vmatmul.mubr.f32.gmra.mxu0 %v5032
        %v5484 = vpop.f32.mrf.mxu0
        %v5485 = vpop.f32.mrf.mxu0
        %5486 = vmatprep.mubr.f32.mxu0 0.0
        %5487 = vmatmul.mubr.f32.gmra.mxu0 %v5035
        %v5488 = vpop.f32.mrf.mxu0
        %v5489 = vpop.f32.mrf.mxu0
        %5490 = vmatprep.mubr.f32.mxu0 0.0
        %5491 = vmatmul.mubr.f32.gmra.mxu0 %v5038
        %v5492 = vpop.f32.mrf.mxu0
        %v5493 = vpop.f32.mrf.mxu0
        %5494 = vmatprep.mubr.f32.mxu0 0.0
        %5495 = vmatmul.mubr.f32.gmra.mxu0 %v5041
        %v5496 = vpop.f32.mrf.mxu0
        %v5497 = vpop.f32.mrf.mxu0
        %5498 = vmatprep.mubr.f32.mxu0 0.0
        %5499 = vmatmul.mubr.f32.gmra.mxu0 %v5044
        %v5500 = vpop.f32.mrf.mxu0
        %v5501 = vadd.f32 %v4870, %v5500
        %v5502 = vpop.f32.mrf.mxu0
        %5503 = vmatprep.mubr.f32.mxu0 0.0
        %5504 = vmatmul.mubr.f32.gmra.mxu0 %v5047
        %v5505 = vpop.f32.mrf.mxu0
        %v5506 = vadd.f32 %v4875, %v5505
        %v5507 = vpop.f32.mrf.mxu0
        %5508 = vmatprep.mubr.f32.mxu0 0.0
        %5509 = vmatmul.mubr.f32.gmra.mxu0 %v5050
        %v5510 = vpop.f32.mrf.mxu0
        %v5511 = vadd.f32 %v4880, %v5510
        %v5512 = vpop.f32.mrf.mxu0
        %5513 = vmatprep.mubr.f32.mxu0 0.0
        %5514 = vmatmul.mubr.f32.gmra.mxu0 %v5053
        %v5515 = vpop.f32.mrf.mxu0
        %v5516 = vadd.f32 %v4885, %v5515
        %v5517 = vpop.f32.mrf.mxu0
        %5518 = vmatprep.mubr.f32.mxu0 0.0
        %5519 = vmatmul.mubr.f32.gmra.mxu0 %v5056
        %v5520 = vpop.f32.mrf.mxu0
        %v5521 = vadd.f32 %v4890, %v5520
        %v5522 = vpop.f32.mrf.mxu0
        %5523 = vmatprep.mubr.f32.mxu0 0.0
        %5524 = vmatmul.mubr.f32.gmra.mxu0 %v5059
        %v5525 = vpop.f32.mrf.mxu0
        %v5526 = vadd.f32 %v4895, %v5525
        %v5527 = vpop.f32.mrf.mxu0
        %5528 = vmatprep.mubr.f32.mxu0 0.0
        %5529 = vmatmul.mubr.f32.gmra.mxu0 %v5062
        %v5530 = vpop.f32.mrf.mxu0
        %v5531 = vadd.f32 %v4900, %v5530
        %v5532 = vpop.f32.mrf.mxu0
        %5533 = vmatprep.mubr.f32.mxu0 0.0
        %5534 = vmatmul.mubr.f32.gmra.mxu0 %v5065
        %v5535 = vpop.f32.mrf.mxu0
        %v5536 = vadd.f32 %v4905, %v5535
        %v5537 = vpop.f32.mrf.mxu0
        %5538 = vmatprep.mubr.f32.mxu0 0.0
        %5539 = vmatmul.mubr.f32.gmra.mxu0 %v5068
        %v5540 = vpop.f32.mrf.mxu0
        %v5541 = vadd.f32 %v4910, %v5540
        %v5542 = vpop.f32.mrf.mxu0
        %5543 = vmatprep.mubr.f32.mxu0 0.0
        %5544 = vmatmul.mubr.f32.gmra.mxu0 %v5071
        %v5545 = vpop.f32.mrf.mxu0
        %v5546 = vadd.f32 %v4915, %v5545
        %v5547 = vpop.f32.mrf.mxu0
        %5548 = vmatprep.mubr.f32.mxu0 0.0
        %5549 = vmatmul.mubr.f32.gmra.mxu0 %v5074
        %v5550 = vpop.f32.mrf.mxu0
        %v5551 = vadd.f32 %v4920, %v5550
        %v5552 = vpop.f32.mrf.mxu0
        %5553 = vmatprep.mubr.f32.mxu0 0.0
        %5554 = vmatmul.mubr.f32.gmra.mxu0 %v5077
        %v5555 = vpop.f32.mrf.mxu0
        %v5556 = vadd.f32 %v4925, %v5555
        %v5557 = vpop.f32.mrf.mxu0
        %5558 = vmatprep.mubr.f32.mxu0 0.0
        %5559 = vmatmul.mubr.f32.gmra.mxu0 %v5080
        %v5560 = vpop.f32.mrf.mxu0
        %v5561 = vadd.f32 %v4930, %v5560
        %v5562 = vpop.f32.mrf.mxu0
        %5563 = vmatprep.mubr.f32.mxu0 0.0
        %5564 = vmatmul.mubr.f32.gmra.mxu0 %v5083
        %v5565 = vpop.f32.mrf.mxu0
        %v5566 = vadd.f32 %v4935, %v5565
        %v5567 = vpop.f32.mrf.mxu0
        %5568 = vmatprep.mubr.f32.mxu0 0.0
        %5569 = vmatmul.mubr.f32.gmra.mxu0 %v5086
        %v5570 = vpop.f32.mrf.mxu0
        %v5571 = vadd.f32 %v4940, %v5570
        %v5572 = vpop.f32.mrf.mxu0
        %5573 = vmatprep.mubr.f32.mxu0 0.0
        %5574 = vmatmul.mubr.f32.gmra.mxu0 %v5089
        %v5575 = vpop.f32.mrf.mxu0
        %v5576 = vadd.f32 %v4945, %v5575
        %v5577 = vpop.f32.mrf.mxu0
        %5578 = vmatprep.mubr.f32.mxu0 0.0
        %5579 = vmatmul.mubr.f32.gmra.mxu0 %v5092
        %v5580 = vpop.f32.mrf.mxu0
        %v5581 = vadd.f32 %v4950, %v5580
        %v5582 = vpop.f32.mrf.mxu0
        %5583 = vmatprep.mubr.f32.mxu0 0.0
        %5584 = vmatmul.mubr.f32.gmra.mxu0 %v5095
        %v5585 = vpop.f32.mrf.mxu0
        %v5586 = vadd.f32 %v4955, %v5585
        %v5587 = vpop.f32.mrf.mxu0
        %5588 = vmatprep.mubr.f32.mxu0 0.0
        %5589 = vmatmul.mubr.f32.gmra.mxu0 %v5098
        %v5590 = vpop.f32.mrf.mxu0
        %v5591 = vadd.f32 %v4960, %v5590
        %v5592 = vpop.f32.mrf.mxu0
        %5593 = vmatprep.mubr.f32.mxu0 0.0
        %5594 = vmatmul.mubr.f32.gmra.mxu0 %v5101
        %v5595 = vpop.f32.mrf.mxu0
        %v5596 = vadd.f32 %v4965, %v5595
        %v5597 = vpop.f32.mrf.mxu0
        %5598 = vmatprep.mubr.f32.mxu0 0.0
        %5599 = vmatmul.mubr.f32.gmra.mxu0 %v5104
        %v5600 = vpop.f32.mrf.mxu0
        %v5601 = vadd.f32 %v4970, %v5600
        %v5602 = vpop.f32.mrf.mxu0
        %5603 = vmatprep.mubr.f32.mxu0 0.0
        %5604 = vmatmul.mubr.f32.gmra.mxu0 %v5107
        %v5605 = vpop.f32.mrf.mxu0
        %v5606 = vadd.f32 %v4975, %v5605
        %v5607 = vpop.f32.mrf.mxu0
        %5608 = vmatprep.mubr.f32.mxu0 0.0
        %5609 = vmatmul.mubr.f32.gmra.mxu0 %v5110
        %v5610 = vpop.f32.mrf.mxu0
        %v5611 = vadd.f32 %v4980, %v5610
        %v5612 = vpop.f32.mrf.mxu0
        %5613 = vmatprep.mubr.f32.mxu0 0.0
        %5614 = vmatmul.mubr.f32.gmra.mxu0 %v5113
        %v5615 = vpop.f32.mrf.mxu0
        %v5616 = vadd.f32 %v4985, %v5615
        %v5617 = vpop.f32.mrf.mxu0
        %5618 = vmatprep.mubr.f32.mxu0 0.0
        %5619 = vmatmul.mubr.f32.gmra.mxu0 %v5116
        %v5620 = vpop.f32.mrf.mxu0
        %v5621 = vadd.f32 %v4990, %v5620
        %v5622 = vpop.f32.mrf.mxu0
        %5623 = vmatprep.mubr.f32.mxu0 0.0
        %5624 = vmatmul.mubr.f32.gmra.mxu0 %v5119
        %v5625 = vpop.f32.mrf.mxu0
        %v5626 = vadd.f32 %v4995, %v5625
        %v5627 = vpop.f32.mrf.mxu0
        %5628 = vmatprep.mubr.f32.mxu0 0.0
        %5629 = vmatmul.mubr.f32.gmra.mxu0 %v5122
        %v5630 = vpop.f32.mrf.mxu0
        %v5631 = vadd.f32 %v5000, %v5630
        %v5632 = vpop.f32.mrf.mxu0
        %5633 = vmatprep.mubr.f32.mxu0 0.0
        %5634 = vmatmul.mubr.f32.gmra.mxu0 %v5125
        %v5635 = vpop.f32.mrf.mxu0
        %v5636 = vadd.f32 %v5005, %v5635
        %v5637 = vpop.f32.mrf.mxu0
        %5638 = vmatprep.mubr.f32.mxu0 0.0
        %5639 = vmatmul.mubr.f32.gmra.mxu0 %v5128
        %v5640 = vpop.f32.mrf.mxu0
        %v5641 = vadd.f32 %v5010, %v5640
        %v5642 = vpop.f32.mrf.mxu0
        %5643 = vmatprep.mubr.f32.mxu0 0.0
        %5644 = vmatmul.mubr.f32.gmra.mxu0 %v5131
        %v5645 = vpop.f32.mrf.mxu0
        %v5646 = vadd.f32 %v5015, %v5645
        %v5647 = vpop.f32.mrf.mxu0
        %5648 = vmatprep.mubr.f32.mxu0 0.0
        %5649 = vmatmul.mubr.f32.gmra.mxu0 %v5134
        %v5650 = vpop.f32.mrf.mxu0
        %v5651 = vadd.f32 %v5020, %v5650
        %v5652 = vpop.f32.mrf.mxu0
        %5653 = vmatprep.mubr.f32.mxu0 0.0
        %5654 = vmatmul.mubr.f32.gmra.mxu0 %v5137
        %v5655 = vpop.f32.mrf.mxu0
        %v5656 = vadd.f32 %v5025, %v5655
        %v5657 = vpop.f32.mrf.mxu0
        %5658 = vdwg.mxu0
        %s5659 = scalar_lea.vmem %s7, 24
        %v5660 = vld [vmem:[%s5659] sm:$0xff]
        %v5661 = vld [vmem:[%s5659 + $0x8] sm:$0xf]
        %v5664 = vcombine.high %v5660, %v5660
        %v5666 = vsel %vm3738, %v4355, 0
        %v5669 = vsel %vm3738, %v4356, 0
        %v5672 = vsel %vm3738, %v4357, 0
        %v5675 = vsel %vm3738, %v4358, 0
        %v5678 = vsel %vm3738, %v4359, 0
        %v5681 = vsel %vm3738, %v4360, 0
        %v5684 = vsel %vm3738, %v4361, 0
        %v5687 = vsel %vm3738, %v4362, 0
        %v5690 = vsel %vm3738, %v4363, 0
        %v5693 = vsel %vm3738, %v4364, 0
        %v5696 = vsel %vm3738, %v4365, 0
        %v5699 = vsel %vm3738, %v4366, 0
        %v5702 = vsel %vm3738, %v4367, 0
        %v5705 = vsel %vm3738, %v4368, 0
        %v5708 = vsel %vm3738, %v4369, 0
        %v5711 = vsel %vm3738, %v4370, 0
        %v5714 = vsel %vm3738, %v4371, 0
        %v5717 = vsel %vm3738, %v4372, 0
        %v5720 = vsel %vm3738, %v4373, 0
        %v5723 = vsel %vm3738, %v4374, 0
        %v5726 = vsel %vm3738, %v4375, 0
        %v5729 = vsel %vm3738, %v4376, 0
        %v5732 = vsel %vm3738, %v4377, 0
        %v5735 = vsel %vm3738, %v4378, 0
        %v5738 = vsel %vm3738, %v4379, 0
        %v5741 = vsel %vm3738, %v4380, 0
        %v5744 = vsel %vm3738, %v4381, 0
        %v5747 = vsel %vm3738, %v4382, 0
        %v5750 = vsel %vm3738, %v4383, 0
        %v5753 = vsel %vm3738, %v4384, 0
        %v5756 = vsel %vm3738, %v4385, 0
        %v5759 = vsel %vm3738, %v4386, 0
        %v5762 = vsel %vm3738, %v4387, 0
        %v5765 = vsel %vm3738, %v4388, 0
        %v5768 = vsel %vm3738, %v4389, 0
        %v5771 = vsel %vm3738, %v4390, 0
        %v5773 = vsel %vm4507, %v5660, 0
        %v5775 = vsel %vm4507, %v5664, 0
        %v5777 = vsel %vm4507, %v5661, 0
        %5779 = vmatprep.subr.mxu0 0.0
        %5780 = vmatpush1.msra.mxu0 0.0
        %5781 = vmatprep.subr.mxu0 0.0
        %5782 = vmatpush1.msra.mxu0 0.0
        %5783 = vmatprep.subr.mxu0 0.0
        %5784 = vmatpush1.msra.mxu0 0.0
        %5785 = vmatprep.subr.mxu0 0.0
        %5786 = vmatpush1.msra.mxu0 0.0
        %5787 = vmatprep.subr.mxu0 0.0
        %5788 = vmatpush1.msra.mxu0 0.0
        %5789 = vmatprep.subr.mxu0 0.0
        %5790 = vmatpush1.msra.mxu0 0.0
        %5791 = vmatprep.subr.mxu0 0.0
        %5792 = vmatpush1.msra.mxu0 0.0
        %5793 = vmatprep.subr.mxu0 0.0
        %5794 = vmatpush1.msra.mxu0 0.0
        %5795 = vmatprep.subr.mxu0 0.0
        %5796 = vmatpush1.msra.mxu0 0.0
        %5797 = vmatprep.subr.mxu0 0.0
        %5798 = vmatpush1.msra.mxu0 0.0
        %5799 = vmatprep.subr.mxu0 0.0
        %5800 = vmatpush1.msra.mxu0 0.0
        %5801 = vmatprep.subr.mxu0 0.0
        %5802 = vmatpush1.msra.mxu0 0.0
        %5803 = vmatprep.subr.mxu0 0.0
        %5804 = vmatpush1.msra.mxu0 0.0
        %5805 = vmatprep.subr.mxu0 0.0
        %5806 = vmatpush1.msra.mxu0 0.0
        %5807 = vmatprep.subr.mxu0 0.0
        %5808 = vmatpush1.msra.mxu0 0.0
        %5809 = vmatprep.subr.mxu0 %v5775
        %5810 = vmatpush1.msra.mxu0 %v5773
        %5811 = vmatprep.subr.mxu0 0.0
        %5812 = vmatpush2.msra.mxu0 0.0
        %5813 = vmatprep.subr.mxu0 0.0
        %5814 = vmatpush2.msra.mxu0 0.0
        %5815 = vmatprep.subr.mxu0 0.0
        %5816 = vmatpush2.msra.mxu0 0.0
        %5817 = vmatprep.subr.mxu0 0.0
        %5818 = vmatpush2.msra.mxu0 0.0
        %5819 = vmatprep.subr.mxu0 0.0
        %5820 = vmatpush2.msra.mxu0 0.0
        %5821 = vmatprep.subr.mxu0 0.0
        %5822 = vmatpush2.msra.mxu0 0.0
        %5823 = vmatprep.subr.mxu0 0.0
        %5824 = vmatpush2.msra.mxu0 0.0
        %5825 = vmatprep.subr.mxu0 0.0
        %5826 = vmatpush2.msra.mxu0 0.0
        %5827 = vmatprep.subr.mxu0 0.0
        %5828 = vmatpush2.msra.mxu0 0.0
        %5829 = vmatprep.subr.mxu0 0.0
        %5830 = vmatpush2.msra.mxu0 0.0
        %5831 = vmatprep.subr.mxu0 0.0
        %5832 = vmatpush2.msra.mxu0 0.0
        %5833 = vmatprep.subr.mxu0 0.0
        %5834 = vmatpush2.msra.mxu0 0.0
        %5835 = vmatprep.subr.mxu0 0.0
        %5836 = vmatpush2.msra.mxu0 0.0
        %5837 = vmatprep.subr.mxu0 0.0
        %5838 = vmatpush2.msra.mxu0 0.0
        %5839 = vmatprep.subr.mxu0 0.0
        %5840 = vmatpush2.msra.mxu0 0.0
        %5841 = vmatprep.subr.mxu0 0.0
        %5842 = vmatpush2.msra.mxu0 0.0
        %5843 = vmatprep.mubr.f32.mxu0 0.0
        %5844 = vmatmul.mubr.f32.gmra.mxu0 %v5666
        %v5845 = vpop.f32.mrf.mxu0
        %v5846 = vadd.f32 0.0, %v5845
        %v5847 = vpop.f32.mrf.mxu0
        %5848 = vmatprep.mubr.f32.mxu0 0.0
        %5849 = vmatmul.mubr.f32.gmra.mxu0 %v5669
        %v5850 = vpop.f32.mrf.mxu0
        %v5851 = vadd.f32 0.0, %v5850
        %v5852 = vpop.f32.mrf.mxu0
        %5853 = vmatprep.mubr.f32.mxu0 0.0
        %5854 = vmatmul.mubr.f32.gmra.mxu0 %v5672
        %v5855 = vpop.f32.mrf.mxu0
        %v5856 = vadd.f32 0.0, %v5855
        %v5857 = vpop.f32.mrf.mxu0
        %v5858 = vadd.f32 0.0, %v5857
        %5859 = vmatprep.mubr.f32.mxu0 0.0
        %5860 = vmatmul.mubr.f32.gmra.mxu0 %v5675
        %v5861 = vpop.f32.mrf.mxu0
        %v5862 = vadd.f32 0.0, %v5861
        %v5863 = vpop.f32.mrf.mxu0
        %v5864 = vadd.f32 0.0, %v5863
        %5865 = vmatprep.mubr.f32.mxu0 0.0
        %5866 = vmatmul.mubr.f32.gmra.mxu0 %v5678
        %v5867 = vpop.f32.mrf.mxu0
        %v5868 = vadd.f32 0.0, %v5867
        %v5869 = vpop.f32.mrf.mxu0
        %v5870 = vadd.f32 0.0, %v5869
        %5871 = vmatprep.mubr.f32.mxu0 0.0
        %5872 = vmatmul.mubr.f32.gmra.mxu0 %v5681
        %v5873 = vpop.f32.mrf.mxu0
        %v5874 = vadd.f32 0.0, %v5873
        %v5875 = vpop.f32.mrf.mxu0
        %v5876 = vadd.f32 0.0, %v5875
        %5877 = vmatprep.mubr.f32.mxu0 0.0
        %5878 = vmatmul.mubr.f32.gmra.mxu0 %v5684
        %v5879 = vpop.f32.mrf.mxu0
        %v5880 = vadd.f32 0.0, %v5879
        %v5881 = vpop.f32.mrf.mxu0
        %v5882 = vadd.f32 0.0, %v5881
        %5883 = vmatprep.mubr.f32.mxu0 0.0
        %5884 = vmatmul.mubr.f32.gmra.mxu0 %v5687
        %v5885 = vpop.f32.mrf.mxu0
        %v5886 = vadd.f32 0.0, %v5885
        %v5887 = vpop.f32.mrf.mxu0
        %v5888 = vadd.f32 0.0, %v5887
        %5889 = vmatprep.mubr.f32.mxu0 0.0
        %5890 = vmatmul.mubr.f32.gmra.mxu0 %v5690
        %v5891 = vpop.f32.mrf.mxu0
        %v5892 = vadd.f32 0.0, %v5891
        %v5893 = vpop.f32.mrf.mxu0
        %v5894 = vadd.f32 0.0, %v5893
        %5895 = vmatprep.mubr.f32.mxu0 0.0
        %5896 = vmatmul.mubr.f32.gmra.mxu0 %v5693
        %v5897 = vpop.f32.mrf.mxu0
        %v5898 = vadd.f32 0.0, %v5897
        %v5899 = vpop.f32.mrf.mxu0
        %v5900 = vadd.f32 0.0, %v5899
        %5901 = vmatprep.mubr.f32.mxu0 0.0
        %5902 = vmatmul.mubr.f32.gmra.mxu0 %v5696
        %v5903 = vpop.f32.mrf.mxu0
        %v5904 = vadd.f32 0.0, %v5903
        %v5905 = vpop.f32.mrf.mxu0
        %v5906 = vadd.f32 0.0, %v5905
        %5907 = vmatprep.mubr.f32.mxu0 0.0
        %5908 = vmatmul.mubr.f32.gmra.mxu0 %v5699
        %v5909 = vpop.f32.mrf.mxu0
        %v5910 = vadd.f32 0.0, %v5909
        %v5911 = vpop.f32.mrf.mxu0
        %v5912 = vadd.f32 0.0, %v5911
        %5913 = vmatprep.mubr.f32.mxu0 0.0
        %5914 = vmatmul.mubr.f32.gmra.mxu0 %v5702
        %v5915 = vpop.f32.mrf.mxu0
        %v5916 = vadd.f32 0.0, %v5915
        %v5917 = vpop.f32.mrf.mxu0
        %v5918 = vadd.f32 0.0, %v5917
        %5919 = vmatprep.mubr.f32.mxu0 0.0
        %5920 = vmatmul.mubr.f32.gmra.mxu0 %v5705
        %v5921 = vpop.f32.mrf.mxu0
        %v5922 = vadd.f32 0.0, %v5921
        %v5923 = vpop.f32.mrf.mxu0
        %v5924 = vadd.f32 0.0, %v5923
        %5925 = vmatprep.mubr.f32.mxu0 0.0
        %5926 = vmatmul.mubr.f32.gmra.mxu0 %v5708
        %v5927 = vpop.f32.mrf.mxu0
        %v5928 = vadd.f32 0.0, %v5927
        %v5929 = vpop.f32.mrf.mxu0
        %v5930 = vadd.f32 0.0, %v5929
        %5931 = vmatprep.mubr.f32.mxu0 0.0
        %5932 = vmatmul.mubr.f32.gmra.mxu0 %v5711
        %v5933 = vpop.f32.mrf.mxu0
        %v5934 = vadd.f32 0.0, %v5933
        %v5935 = vpop.f32.mrf.mxu0
        %v5936 = vadd.f32 0.0, %v5935
        %5937 = vmatprep.mubr.f32.mxu0 0.0
        %5938 = vmatmul.mubr.f32.gmra.mxu0 %v5714
        %v5939 = vpop.f32.mrf.mxu0
        %v5940 = vadd.f32 0.0, %v5939
        %v5941 = vpop.f32.mrf.mxu0
        %v5942 = vadd.f32 0.0, %v5941
        %5943 = vmatprep.mubr.f32.mxu0 0.0
        %5944 = vmatmul.mubr.f32.gmra.mxu0 %v5717
        %v5945 = vpop.f32.mrf.mxu0
        %v5946 = vadd.f32 0.0, %v5945
        %v5947 = vpop.f32.mrf.mxu0
        %v5948 = vadd.f32 0.0, %v5947
        %5949 = vmatprep.mubr.f32.mxu0 0.0
        %5950 = vmatmul.mubr.f32.gmra.mxu0 %v5720
        %v5951 = vpop.f32.mrf.mxu0
        %v5952 = vadd.f32 0.0, %v5951
        %v5953 = vpop.f32.mrf.mxu0
        %v5954 = vadd.f32 0.0, %v5953
        %5955 = vmatprep.mubr.f32.mxu0 0.0
        %5956 = vmatmul.mubr.f32.gmra.mxu0 %v5723
        %v5957 = vpop.f32.mrf.mxu0
        %v5958 = vadd.f32 0.0, %v5957
        %v5959 = vpop.f32.mrf.mxu0
        %v5960 = vadd.f32 0.0, %v5959
        %5961 = vmatprep.mubr.f32.mxu0 0.0
        %5962 = vmatmul.mubr.f32.gmra.mxu0 %v5726
        %v5963 = vpop.f32.mrf.mxu0
        %v5964 = vadd.f32 0.0, %v5963
        %v5965 = vpop.f32.mrf.mxu0
        %v5966 = vadd.f32 0.0, %v5965
        %5967 = vmatprep.mubr.f32.mxu0 0.0
        %5968 = vmatmul.mubr.f32.gmra.mxu0 %v5729
        %v5969 = vpop.f32.mrf.mxu0
        %v5970 = vadd.f32 0.0, %v5969
        %v5971 = vpop.f32.mrf.mxu0
        %v5972 = vadd.f32 0.0, %v5971
        %5973 = vmatprep.mubr.f32.mxu0 0.0
        %5974 = vmatmul.mubr.f32.gmra.mxu0 %v5732
        %v5975 = vpop.f32.mrf.mxu0
        %v5976 = vadd.f32 0.0, %v5975
        %v5977 = vpop.f32.mrf.mxu0
        %v5978 = vadd.f32 0.0, %v5977
        %5979 = vmatprep.mubr.f32.mxu0 0.0
        %5980 = vmatmul.mubr.f32.gmra.mxu0 %v5735
        %v5981 = vpop.f32.mrf.mxu0
        %v5982 = vadd.f32 0.0, %v5981
        %v5983 = vpop.f32.mrf.mxu0
        %v5984 = vadd.f32 0.0, %v5983
        %5985 = vmatprep.mubr.f32.mxu0 0.0
        %5986 = vmatmul.mubr.f32.gmra.mxu0 %v5738
        %v5987 = vpop.f32.mrf.mxu0
        %v5988 = vadd.f32 0.0, %v5987
        %v5989 = vpop.f32.mrf.mxu0
        %v5990 = vadd.f32 0.0, %v5989
        %5991 = vmatprep.mubr.f32.mxu0 0.0
        %5992 = vmatmul.mubr.f32.gmra.mxu0 %v5741
        %v5993 = vpop.f32.mrf.mxu0
        %v5994 = vadd.f32 0.0, %v5993
        %v5995 = vpop.f32.mrf.mxu0
        %v5996 = vadd.f32 0.0, %v5995
        %5997 = vmatprep.mubr.f32.mxu0 0.0
        %5998 = vmatmul.mubr.f32.gmra.mxu0 %v5744
        %v5999 = vpop.f32.mrf.mxu0
        %v6000 = vadd.f32 0.0, %v5999
        %v6001 = vpop.f32.mrf.mxu0
        %v6002 = vadd.f32 0.0, %v6001
        %6003 = vmatprep.mubr.f32.mxu0 0.0
        %6004 = vmatmul.mubr.f32.gmra.mxu0 %v5747
        %v6005 = vpop.f32.mrf.mxu0
        %v6006 = vadd.f32 0.0, %v6005
        %v6007 = vpop.f32.mrf.mxu0
        %v6008 = vadd.f32 0.0, %v6007
        %6009 = vmatprep.mubr.f32.mxu0 0.0
        %6010 = vmatmul.mubr.f32.gmra.mxu0 %v5750
        %v6011 = vpop.f32.mrf.mxu0
        %v6012 = vadd.f32 0.0, %v6011
        %v6013 = vpop.f32.mrf.mxu0
        %v6014 = vadd.f32 0.0, %v6013
        %6015 = vmatprep.mubr.f32.mxu0 0.0
        %6016 = vmatmul.mubr.f32.gmra.mxu0 %v5753
        %v6017 = vpop.f32.mrf.mxu0
        %v6018 = vadd.f32 0.0, %v6017
        %v6019 = vpop.f32.mrf.mxu0
        %v6020 = vadd.f32 0.0, %v6019
        %6021 = vmatprep.mubr.f32.mxu0 0.0
        %6022 = vmatmul.mubr.f32.gmra.mxu0 %v5756
        %v6023 = vpop.f32.mrf.mxu0
        %v6024 = vadd.f32 0.0, %v6023
        %v6025 = vpop.f32.mrf.mxu0
        %v6026 = vadd.f32 0.0, %v6025
        %6027 = vmatprep.mubr.f32.mxu0 0.0
        %6028 = vmatmul.mubr.f32.gmra.mxu0 %v5759
        %v6029 = vpop.f32.mrf.mxu0
        %v6030 = vadd.f32 0.0, %v6029
        %v6031 = vpop.f32.mrf.mxu0
        %v6032 = vadd.f32 0.0, %v6031
        %6033 = vmatprep.mubr.f32.mxu0 0.0
        %6034 = vmatmul.mubr.f32.gmra.mxu0 %v5762
        %v6035 = vpop.f32.mrf.mxu0
        %v6036 = vpop.f32.mrf.mxu0
        %v6037 = vadd.f32 0.0, %v6036
        %6038 = vmatprep.mubr.f32.mxu0 0.0
        %6039 = vmatmul.mubr.f32.gmra.mxu0 %v5765
        %v6040 = vpop.f32.mrf.mxu0
        %v6041 = vpop.f32.mrf.mxu0
        %v6042 = vadd.f32 0.0, %v6041
        %6043 = vmatprep.mubr.f32.mxu0 0.0
        %6044 = vmatmul.mubr.f32.gmra.mxu0 %v5768
        %v6045 = vpop.f32.mrf.mxu0
        %v6046 = vpop.f32.mrf.mxu0
        %6047 = vmatprep.mubr.f32.mxu0 0.0
        %6048 = vmatmul.mubr.f32.gmra.mxu0 %v5771
        %v6049 = vpop.f32.mrf.mxu0
        %v6050 = vpop.f32.mrf.mxu0
        %6051 = vdwg.mxu0
        %6052 = vmatprep.subr.mxu0 0.0
        %6053 = vmatpush1.msra.mxu0 0.0
        %6054 = vmatprep.subr.mxu0 0.0
        %6055 = vmatpush1.msra.mxu0 0.0
        %6056 = vmatprep.subr.mxu0 0.0
        %6057 = vmatpush1.msra.mxu0 0.0
        %6058 = vmatprep.subr.mxu0 0.0
        %6059 = vmatpush1.msra.mxu0 0.0
        %6060 = vmatprep.subr.mxu0 0.0
        %6061 = vmatpush1.msra.mxu0 0.0
        %6062 = vmatprep.subr.mxu0 0.0
        %6063 = vmatpush1.msra.mxu0 0.0
        %6064 = vmatprep.subr.mxu0 0.0
        %6065 = vmatpush1.msra.mxu0 0.0
        %6066 = vmatprep.subr.mxu0 0.0
        %6067 = vmatpush1.msra.mxu0 0.0
        %6068 = vmatprep.subr.mxu0 0.0
        %6069 = vmatpush1.msra.mxu0 0.0
        %6070 = vmatprep.subr.mxu0 0.0
        %6071 = vmatpush1.msra.mxu0 0.0
        %6072 = vmatprep.subr.mxu0 0.0
        %6073 = vmatpush1.msra.mxu0 0.0
        %6074 = vmatprep.subr.mxu0 0.0
        %6075 = vmatpush1.msra.mxu0 0.0
        %6076 = vmatprep.subr.mxu0 0.0
        %6077 = vmatpush1.msra.mxu0 0.0
        %6078 = vmatprep.subr.mxu0 0.0
        %6079 = vmatpush1.msra.mxu0 0.0
        %6080 = vmatprep.subr.mxu0 0.0
        %6081 = vmatpush1.msra.mxu0 0.0
        %6082 = vmatprep.subr.mxu0 0.0
        %6083 = vmatpush1.msra.mxu0 %v5777
        %6084 = vmatprep.subr.mxu0 0.0
        %6085 = vmatpush2.msra.mxu0 0.0
        %6086 = vmatprep.subr.mxu0 0.0
        %6087 = vmatpush2.msra.mxu0 0.0
        %6088 = vmatprep.subr.mxu0 0.0
        %6089 = vmatpush2.msra.mxu0 0.0
        %6090 = vmatprep.subr.mxu0 0.0
        %6091 = vmatpush2.msra.mxu0 0.0
        %6092 = vmatprep.subr.mxu0 0.0
        %6093 = vmatpush2.msra.mxu0 0.0
        %6094 = vmatprep.subr.mxu0 0.0
        %6095 = vmatpush2.msra.mxu0 0.0
        %6096 = vmatprep.subr.mxu0 0.0
        %6097 = vmatpush2.msra.mxu0 0.0
        %6098 = vmatprep.subr.mxu0 0.0
        %6099 = vmatpush2.msra.mxu0 0.0
        %6100 = vmatprep.subr.mxu0 0.0
        %6101 = vmatpush2.msra.mxu0 0.0
        %6102 = vmatprep.subr.mxu0 0.0
        %6103 = vmatpush2.msra.mxu0 0.0
        %6104 = vmatprep.subr.mxu0 0.0
        %6105 = vmatpush2.msra.mxu0 0.0
        %6106 = vmatprep.subr.mxu0 0.0
        %6107 = vmatpush2.msra.mxu0 0.0
        %6108 = vmatprep.subr.mxu0 0.0
        %6109 = vmatpush2.msra.mxu0 0.0
        %6110 = vmatprep.subr.mxu0 0.0
        %6111 = vmatpush2.msra.mxu0 0.0
        %6112 = vmatprep.subr.mxu0 0.0
        %6113 = vmatpush2.msra.mxu0 0.0
        %6114 = vmatprep.subr.mxu0 0.0
        %6115 = vmatpush2.msra.mxu0 0.0
        %6116 = vmatprep.mubr.f32.mxu0 0.0
        %6117 = vmatmul.mubr.f32.gmra.mxu0 %v5666
        %v6118 = vpop.f32.mrf.mxu0
        %v6119 = vpop.f32.mrf.mxu0
        %6120 = vmatprep.mubr.f32.mxu0 0.0
        %6121 = vmatmul.mubr.f32.gmra.mxu0 %v5669
        %v6122 = vpop.f32.mrf.mxu0
        %v6123 = vpop.f32.mrf.mxu0
        %6124 = vmatprep.mubr.f32.mxu0 0.0
        %6125 = vmatmul.mubr.f32.gmra.mxu0 %v5672
        %v6126 = vpop.f32.mrf.mxu0
        %v6127 = vpop.f32.mrf.mxu0
        %6128 = vmatprep.mubr.f32.mxu0 0.0
        %6129 = vmatmul.mubr.f32.gmra.mxu0 %v5675
        %v6130 = vpop.f32.mrf.mxu0
        %v6131 = vpop.f32.mrf.mxu0
        %6132 = vmatprep.mubr.f32.mxu0 0.0
        %6133 = vmatmul.mubr.f32.gmra.mxu0 %v5678
        %v6134 = vpop.f32.mrf.mxu0
        %v6135 = vadd.f32 0.0, %v6134
        %v6136 = vpop.f32.mrf.mxu0
        %6137 = vmatprep.mubr.f32.mxu0 0.0
        %6138 = vmatmul.mubr.f32.gmra.mxu0 %v5681
        %v6139 = vpop.f32.mrf.mxu0
        %v6140 = vadd.f32 0.0, %v6139
        %v6141 = vpop.f32.mrf.mxu0
        %6142 = vmatprep.mubr.f32.mxu0 0.0
        %6143 = vmatmul.mubr.f32.gmra.mxu0 %v5684
        %v6144 = vpop.f32.mrf.mxu0
        %v6145 = vadd.f32 0.0, %v6144
        %v6146 = vpop.f32.mrf.mxu0
        %6147 = vmatprep.mubr.f32.mxu0 0.0
        %6148 = vmatmul.mubr.f32.gmra.mxu0 %v5687
        %v6149 = vpop.f32.mrf.mxu0
        %v6150 = vadd.f32 0.0, %v6149
        %v6151 = vpop.f32.mrf.mxu0
        %6152 = vmatprep.mubr.f32.mxu0 0.0
        %6153 = vmatmul.mubr.f32.gmra.mxu0 %v5690
        %v6154 = vpop.f32.mrf.mxu0
        %v6155 = vadd.f32 0.0, %v6154
        %v6156 = vpop.f32.mrf.mxu0
        %6157 = vmatprep.mubr.f32.mxu0 0.0
        %6158 = vmatmul.mubr.f32.gmra.mxu0 %v5693
        %v6159 = vpop.f32.mrf.mxu0
        %v6160 = vadd.f32 0.0, %v6159
        %v6161 = vpop.f32.mrf.mxu0
        %6162 = vmatprep.mubr.f32.mxu0 0.0
        %6163 = vmatmul.mubr.f32.gmra.mxu0 %v5696
        %v6164 = vpop.f32.mrf.mxu0
        %v6165 = vadd.f32 0.0, %v6164
        %v6166 = vpop.f32.mrf.mxu0
        %6167 = vmatprep.mubr.f32.mxu0 0.0
        %6168 = vmatmul.mubr.f32.gmra.mxu0 %v5699
        %v6169 = vpop.f32.mrf.mxu0
        %v6170 = vadd.f32 0.0, %v6169
        %v6171 = vpop.f32.mrf.mxu0
        %6172 = vmatprep.mubr.f32.mxu0 0.0
        %6173 = vmatmul.mubr.f32.gmra.mxu0 %v5702
        %v6174 = vpop.f32.mrf.mxu0
        %v6175 = vadd.f32 0.0, %v6174
        %v6176 = vpop.f32.mrf.mxu0
        %6177 = vmatprep.mubr.f32.mxu0 0.0
        %6178 = vmatmul.mubr.f32.gmra.mxu0 %v5705
        %v6179 = vpop.f32.mrf.mxu0
        %v6180 = vadd.f32 0.0, %v6179
        %v6181 = vpop.f32.mrf.mxu0
        %6182 = vmatprep.mubr.f32.mxu0 0.0
        %6183 = vmatmul.mubr.f32.gmra.mxu0 %v5708
        %v6184 = vpop.f32.mrf.mxu0
        %v6185 = vadd.f32 0.0, %v6184
        %v6186 = vpop.f32.mrf.mxu0
        %6187 = vmatprep.mubr.f32.mxu0 0.0
        %6188 = vmatmul.mubr.f32.gmra.mxu0 %v5711
        %v6189 = vpop.f32.mrf.mxu0
        %v6190 = vadd.f32 0.0, %v6189
        %v6191 = vpop.f32.mrf.mxu0
        %6192 = vmatprep.mubr.f32.mxu0 0.0
        %6193 = vmatmul.mubr.f32.gmra.mxu0 %v5714
        %v6194 = vpop.f32.mrf.mxu0
        %v6195 = vadd.f32 0.0, %v6194
        %v6196 = vpop.f32.mrf.mxu0
        %6197 = vmatprep.mubr.f32.mxu0 0.0
        %6198 = vmatmul.mubr.f32.gmra.mxu0 %v5717
        %v6199 = vpop.f32.mrf.mxu0
        %v6200 = vadd.f32 0.0, %v6199
        %v6201 = vpop.f32.mrf.mxu0
        %6202 = vmatprep.mubr.f32.mxu0 0.0
        %6203 = vmatmul.mubr.f32.gmra.mxu0 %v5720
        %v6204 = vpop.f32.mrf.mxu0
        %v6205 = vadd.f32 0.0, %v6204
        %v6206 = vpop.f32.mrf.mxu0
        %6207 = vmatprep.mubr.f32.mxu0 0.0
        %6208 = vmatmul.mubr.f32.gmra.mxu0 %v5723
        %v6209 = vpop.f32.mrf.mxu0
        %v6210 = vadd.f32 0.0, %v6209
        %v6211 = vpop.f32.mrf.mxu0
        %6212 = vmatprep.mubr.f32.mxu0 0.0
        %6213 = vmatmul.mubr.f32.gmra.mxu0 %v5726
        %v6214 = vpop.f32.mrf.mxu0
        %v6215 = vadd.f32 0.0, %v6214
        %v6216 = vpop.f32.mrf.mxu0
        %6217 = vmatprep.mubr.f32.mxu0 0.0
        %6218 = vmatmul.mubr.f32.gmra.mxu0 %v5729
        %v6219 = vpop.f32.mrf.mxu0
        %v6220 = vadd.f32 0.0, %v6219
        %v6221 = vpop.f32.mrf.mxu0
        %6222 = vmatprep.mubr.f32.mxu0 0.0
        %6223 = vmatmul.mubr.f32.gmra.mxu0 %v5732
        %v6224 = vpop.f32.mrf.mxu0
        %v6225 = vadd.f32 0.0, %v6224
        %v6226 = vpop.f32.mrf.mxu0
        %6227 = vmatprep.mubr.f32.mxu0 0.0
        %6228 = vmatmul.mubr.f32.gmra.mxu0 %v5735
        %v6229 = vpop.f32.mrf.mxu0
        %v6230 = vadd.f32 0.0, %v6229
        %v6231 = vpop.f32.mrf.mxu0
        %6232 = vmatprep.mubr.f32.mxu0 0.0
        %6233 = vmatmul.mubr.f32.gmra.mxu0 %v5738
        %v6234 = vpop.f32.mrf.mxu0
        %v6235 = vadd.f32 0.0, %v6234
        %v6236 = vpop.f32.mrf.mxu0
        %6237 = vmatprep.mubr.f32.mxu0 0.0
        %6238 = vmatmul.mubr.f32.gmra.mxu0 %v5741
        %v6239 = vpop.f32.mrf.mxu0
        %v6240 = vadd.f32 0.0, %v6239
        %v6241 = vpop.f32.mrf.mxu0
        %6242 = vmatprep.mubr.f32.mxu0 0.0
        %6243 = vmatmul.mubr.f32.gmra.mxu0 %v5744
        %v6244 = vpop.f32.mrf.mxu0
        %v6245 = vadd.f32 0.0, %v6244
        %v6246 = vpop.f32.mrf.mxu0
        %6247 = vmatprep.mubr.f32.mxu0 0.0
        %6248 = vmatmul.mubr.f32.gmra.mxu0 %v5747
        %v6249 = vpop.f32.mrf.mxu0
        %v6250 = vadd.f32 0.0, %v6249
        %v6251 = vpop.f32.mrf.mxu0
        %6252 = vmatprep.mubr.f32.mxu0 0.0
        %6253 = vmatmul.mubr.f32.gmra.mxu0 %v5750
        %v6254 = vpop.f32.mrf.mxu0
        %v6255 = vadd.f32 0.0, %v6254
        %v6256 = vpop.f32.mrf.mxu0
        %6257 = vmatprep.mubr.f32.mxu0 0.0
        %6258 = vmatmul.mubr.f32.gmra.mxu0 %v5753
        %v6259 = vpop.f32.mrf.mxu0
        %v6260 = vadd.f32 0.0, %v6259
        %v6261 = vpop.f32.mrf.mxu0
        %6262 = vmatprep.mubr.f32.mxu0 0.0
        %6263 = vmatmul.mubr.f32.gmra.mxu0 %v5756
        %v6264 = vpop.f32.mrf.mxu0
        %v6265 = vadd.f32 0.0, %v6264
        %v6266 = vpop.f32.mrf.mxu0
        %6267 = vmatprep.mubr.f32.mxu0 0.0
        %6268 = vmatmul.mubr.f32.gmra.mxu0 %v5759
        %v6269 = vpop.f32.mrf.mxu0
        %v6270 = vadd.f32 0.0, %v6269
        %v6271 = vpop.f32.mrf.mxu0
        %6272 = vmatprep.mubr.f32.mxu0 0.0
        %6273 = vmatmul.mubr.f32.gmra.mxu0 %v5762
        %v6274 = vpop.f32.mrf.mxu0
        %v6275 = vadd.f32 0.0, %v6274
        %v6276 = vpop.f32.mrf.mxu0
        %6277 = vmatprep.mubr.f32.mxu0 0.0
        %6278 = vmatmul.mubr.f32.gmra.mxu0 %v5765
        %v6279 = vpop.f32.mrf.mxu0
        %v6280 = vadd.f32 0.0, %v6279
        %v6281 = vpop.f32.mrf.mxu0
        %6282 = vmatprep.mubr.f32.mxu0 0.0
        %6283 = vmatmul.mubr.f32.gmra.mxu0 %v5768
        %v6284 = vpop.f32.mrf.mxu0
        %v6285 = vadd.f32 0.0, %v6284
        %v6286 = vpop.f32.mrf.mxu0
        %6287 = vmatprep.mubr.f32.mxu0 0.0
        %6288 = vmatmul.mubr.f32.gmra.mxu0 %v5771
        %v6289 = vpop.f32.mrf.mxu0
        %v6290 = vadd.f32 0.0, %v6289
        %v6291 = vpop.f32.mrf.mxu0
        %6292 = vdwg.mxu0
        %v6293 = vadd.f32 %v5212, %v5846
        %v6294 = vadd.f32 %v5217, %v5851
        %v6295 = vadd.f32 %v5222, %v5856
        %v6296 = vadd.f32 %v5224, %v5858
        %v6297 = vadd.f32 %v5228, %v5862
        %v6298 = vadd.f32 %v5230, %v5864
        %v6299 = vadd.f32 %v5234, %v5868
        %v6300 = vadd.f32 %v5236, %v5870
        %v6301 = vadd.f32 %v5501, %v6135
        %v6302 = vadd.f32 %v5240, %v5874
        %v6303 = vadd.f32 %v5242, %v5876
        %v6304 = vadd.f32 %v5506, %v6140
        %v6305 = vadd.f32 %v5246, %v5880
        %v6306 = vadd.f32 %v5248, %v5882
        %v6307 = vadd.f32 %v5511, %v6145
        %v6308 = vadd.f32 %v5252, %v5886
        %v6309 = vadd.f32 %v5254, %v5888
        %v6310 = vadd.f32 %v5516, %v6150
        %v6311 = vadd.f32 %v5258, %v5892
        %v6312 = vadd.f32 %v5260, %v5894
        %v6313 = vadd.f32 %v5521, %v6155
        %v6314 = vadd.f32 %v5264, %v5898
        %v6315 = vadd.f32 %v5266, %v5900
        %v6316 = vadd.f32 %v5526, %v6160
        %v6317 = vadd.f32 %v5270, %v5904
        %v6318 = vadd.f32 %v5272, %v5906
        %v6319 = vadd.f32 %v5531, %v6165
        %v6320 = vadd.f32 %v5276, %v5910
        %v6321 = vadd.f32 %v5278, %v5912
        %v6322 = vadd.f32 %v5536, %v6170
        %v6323 = vadd.f32 %v5282, %v5916
        %v6324 = vadd.f32 %v5284, %v5918
        %v6325 = vadd.f32 %v5541, %v6175
        %v6326 = vadd.f32 %v5288, %v5922
        %v6327 = vadd.f32 %v5290, %v5924
        %v6328 = vadd.f32 %v5546, %v6180
        %v6329 = vadd.f32 %v5294, %v5928
        %v6330 = vadd.f32 %v5296, %v5930
        %v6331 = vadd.f32 %v5551, %v6185
        %v6332 = vadd.f32 %v5300, %v5934
        %v6333 = vadd.f32 %v5302, %v5936
        %v6334 = vadd.f32 %v5556, %v6190
        %v6335 = vadd.f32 %v5306, %v5940
        %v6336 = vadd.f32 %v5308, %v5942
        %v6337 = vadd.f32 %v5561, %v6195
        %v6338 = vadd.f32 %v5312, %v5946
        %v6339 = vadd.f32 %v5314, %v5948
        %v6340 = vadd.f32 %v5566, %v6200
        %v6341 = vadd.f32 %v5318, %v5952
        %v6342 = vadd.f32 %v5320, %v5954
        %v6343 = vadd.f32 %v5571, %v6205
        %v6344 = vadd.f32 %v5324, %v5958
        %v6345 = vadd.f32 %v5326, %v5960
        %v6346 = vadd.f32 %v5576, %v6210
        %v6347 = vadd.f32 %v5330, %v5964
        %v6348 = vadd.f32 %v5332, %v5966
        %v6349 = vadd.f32 %v5581, %v6215
        %v6350 = vadd.f32 %v5336, %v5970
        %v6351 = vadd.f32 %v5338, %v5972
        %v6352 = vadd.f32 %v5586, %v6220
        %v6353 = vadd.f32 %v5342, %v5976
        %v6354 = vadd.f32 %v5344, %v5978
        %v6355 = vadd.f32 %v5591, %v6225
        %v6356 = vadd.f32 %v5348, %v5982
        %v6357 = vadd.f32 %v5350, %v5984
        %v6358 = vadd.f32 %v5596, %v6230
        %v6359 = vadd.f32 %v5354, %v5988
        %v6360 = vadd.f32 %v5356, %v5990
        %v6361 = vadd.f32 %v5601, %v6235
        %v6362 = vadd.f32 %v5360, %v5994
        %v6363 = vadd.f32 %v5362, %v5996
        %v6364 = vadd.f32 %v5606, %v6240
        %v6365 = vadd.f32 %v5366, %v6000
        %v6366 = vadd.f32 %v5368, %v6002
        %v6367 = vadd.f32 %v5611, %v6245
        %v6368 = vadd.f32 %v5372, %v6006
        %v6369 = vadd.f32 %v5374, %v6008
        %v6370 = vadd.f32 %v5616, %v6250
        %v6371 = vadd.f32 %v5378, %v6012
        %v6372 = vadd.f32 %v5380, %v6014
        %v6373 = vadd.f32 %v5621, %v6255
        %v6374 = vadd.f32 %v5384, %v6018
        %v6375 = vadd.f32 %v5386, %v6020
        %v6376 = vadd.f32 %v5626, %v6260
        %v6377 = vadd.f32 %v5390, %v6024
        %v6378 = vadd.f32 %v5392, %v6026
        %v6379 = vadd.f32 %v5631, %v6265
        %v6380 = vadd.f32 %v5396, %v6030
        %v6381 = vadd.f32 %v5398, %v6032
        %v6382 = vadd.f32 %v5636, %v6270
        %v6383 = vadd.f32 %v5403, %v6037
        %v6384 = vadd.f32 %v5641, %v6275
        %v6385 = vadd.f32 %v5408, %v6042
        %v6386 = vadd.f32 %v5646, %v6280
        %v6387 = vadd.f32 %v5651, %v6285
        %v6388 = vadd.f32 %v5656, %v6290
        %v6389 = vadd.f32 %v6293, %v6296
        %v6390 = vadd.f32 %v6294, %v6298
        %v6391 = vadd.f32 %v6295, %v6300
        %v6392 = vadd.f32 %v6297, %v6303
        %v6393 = vadd.f32 %v6299, %v6306
        %v6394 = vadd.f32 %v6302, %v6309
        %v6395 = vadd.f32 %v6305, %v6312
        %v6396 = vadd.f32 %v6308, %v6315
        %v6397 = vadd.f32 %v6311, %v6318
        %v6398 = vadd.f32 %v6314, %v6321
        %v6399 = vadd.f32 %v6317, %v6324
        %v6400 = vadd.f32 %v6320, %v6327
        %v6401 = vadd.f32 %v6323, %v6330
        %v6402 = vadd.f32 %v6326, %v6333
        %v6403 = vadd.f32 %v6329, %v6336
        %v6404 = vadd.f32 %v6332, %v6339
        %v6405 = vadd.f32 %v6335, %v6342
        %v6406 = vadd.f32 %v6338, %v6345
        %v6407 = vadd.f32 %v6341, %v6348
        %v6408 = vadd.f32 %v6344, %v6351
        %v6409 = vadd.f32 %v6347, %v6354
        %v6410 = vadd.f32 %v6350, %v6357
        %v6411 = vadd.f32 %v6353, %v6360
        %v6412 = vadd.f32 %v6356, %v6363
        %v6413 = vadd.f32 %v6359, %v6366
        %v6414 = vadd.f32 %v6362, %v6369
        %v6415 = vadd.f32 %v6365, %v6372
        %v6416 = vadd.f32 %v6368, %v6375
        %v6417 = vadd.f32 %v6371, %v6378
        %v6418 = vadd.f32 %v6374, %v6381
        %v6419 = vadd.f32 %v6377, %v6383
        %v6420 = vadd.f32 %v6380, %v6385
        %v6421 = vadd.f32 %v6389, %v6301
        %v6422 = vadd.f32 %v6390, %v6304
        %v6423 = vadd.f32 %v6391, %v6307
        %v6424 = vadd.f32 %v6392, %v6310
        %v6425 = vadd.f32 %v6393, %v6313
        %v6426 = vadd.f32 %v6394, %v6316
        %v6427 = vadd.f32 %v6395, %v6319
        %v6428 = vadd.f32 %v6396, %v6322
        %v6429 = vadd.f32 %v6397, %v6325
        %v6430 = vadd.f32 %v6398, %v6328
        %v6431 = vadd.f32 %v6399, %v6331
        %v6432 = vadd.f32 %v6400, %v6334
        %v6433 = vadd.f32 %v6401, %v6337
        %v6434 = vadd.f32 %v6402, %v6340
        %v6435 = vadd.f32 %v6403, %v6343
        %v6436 = vadd.f32 %v6404, %v6346
        %v6437 = vadd.f32 %v6405, %v6349
        %v6438 = vadd.f32 %v6406, %v6352
        %v6439 = vadd.f32 %v6407, %v6355
        %v6440 = vadd.f32 %v6408, %v6358
        %v6441 = vadd.f32 %v6409, %v6361
        %v6442 = vadd.f32 %v6410, %v6364
        %v6443 = vadd.f32 %v6411, %v6367
        %v6444 = vadd.f32 %v6412, %v6370
        %v6445 = vadd.f32 %v6413, %v6373
        %v6446 = vadd.f32 %v6414, %v6376
        %v6447 = vadd.f32 %v6415, %v6379
        %v6448 = vadd.f32 %v6416, %v6382
        %v6449 = vadd.f32 %v6417, %v6384
        %v6450 = vadd.f32 %v6418, %v6386
        %v6451 = vadd.f32 %v6419, %v6387
        %v6452 = vadd.f32 %v6420, %v6388
        %v6453 = vadd.f32 %v3665, %v6421
        %v6454 = vadd.f32 %v3666, %v6422
        %v6455 = vadd.f32 %v3667, %v6423
        %v6456 = vadd.f32 %v3668, %v6424
        %v6457 = vadd.f32 %v3669, %v6425
        %v6458 = vadd.f32 %v3670, %v6426
        %v6459 = vadd.f32 %v3671, %v6427
        %v6460 = vadd.f32 %v3672, %v6428
        %v6461 = vadd.f32 %v3673, %v6429
        %v6462 = vadd.f32 %v3674, %v6430
        %v6463 = vadd.f32 %v3675, %v6431
        %v6464 = vadd.f32 %v3676, %v6432
        %v6465 = vadd.f32 %v3677, %v6433
        %v6466 = vadd.f32 %v3678, %v6434
        %v6467 = vadd.f32 %v3679, %v6435
        %v6468 = vadd.f32 %v3680, %v6436
        %v6469 = vadd.f32 %v3681, %v6437
        %v6470 = vadd.f32 %v3682, %v6438
        %v6471 = vadd.f32 %v3683, %v6439
        %v6472 = vadd.f32 %v3684, %v6440
        %v6473 = vadd.f32 %v3685, %v6441
        %v6474 = vadd.f32 %v3686, %v6442
        %v6475 = vadd.f32 %v3687, %v6443
        %v6476 = vadd.f32 %v3688, %v6444
        %v6477 = vadd.f32 %v3689, %v6445
        %v6478 = vadd.f32 %v3690, %v6446
        %v6479 = vadd.f32 %v3691, %v6447
        %v6480 = vadd.f32 %v3692, %v6448
        %v6481 = vadd.f32 %v3693, %v6449
        %v6482 = vadd.f32 %v3694, %v6450
        %v6483 = vadd.f32 %v3695, %v6451
        %v6484 = vadd.f32 %v3696, %v6452
        %6485 = vst [vmem:[%s653] sm:$0xff] %v6453
        %6486 = vst [vmem:[%s653 + $0x8] sm:$0xff] %v6454
        %6487 = vst [vmem:[%s653 + $0x10] sm:$0xff] %v6455
        %6488 = vst [vmem:[%s653 + $0x18] sm:$0xff] %v6456
        %6489 = vst [vmem:[%s653 + $0x20] sm:$0xff] %v6457
        %6490 = vst [vmem:[%s653 + $0x28] sm:$0xff] %v6458
        %6491 = vst [vmem:[%s653 + $0x30] sm:$0xff] %v6459
        %6492 = vst [vmem:[%s653 + $0x38] sm:$0xff] %v6460
        %6493 = vst [vmem:[%s653 + $0x40] sm:$0xff] %v6461
        %6494 = vst [vmem:[%s653 + $0x48] sm:$0xff] %v6462
        %6495 = vst [vmem:[%s653 + $0x50] sm:$0xff] %v6463
        %6496 = vst [vmem:[%s653 + $0x58] sm:$0xff] %v6464
        %6497 = vst [vmem:[%s653 + $0x60] sm:$0xff] %v6465
        %6498 = vst [vmem:[%s653 + $0x68] sm:$0xff] %v6466
        %6499 = vst [vmem:[%s653 + $0x70] sm:$0xff] %v6467
        %6500 = vst [vmem:[%s653 + $0x78] sm:$0xff] %v6468
        %6501 = vst [vmem:[%s653 + $0x80] sm:$0xff] %v6469
        %6502 = vst [vmem:[%s653 + $0x88] sm:$0xff] %v6470
        %6503 = vst [vmem:[%s653 + $0x90] sm:$0xff] %v6471
        %6504 = vst [vmem:[%s653 + $0x98] sm:$0xff] %v6472
        %6505 = vst [vmem:[%s653 + $0xa0] sm:$0xff] %v6473
        %6506 = vst [vmem:[%s653 + $0xa8] sm:$0xff] %v6474
        %6507 = vst [vmem:[%s653 + $0xb0] sm:$0xff] %v6475
        %6508 = vst [vmem:[%s653 + $0xb8] sm:$0xff] %v6476
        %6509 = vst [vmem:[%s653 + $0xc0] sm:$0xff] %v6477
        %6510 = vst [vmem:[%s653 + $0xc8] sm:$0xff] %v6478
        %6511 = vst [vmem:[%s653 + $0xd0] sm:$0xff] %v6479
        %6512 = vst [vmem:[%s653 + $0xd8] sm:$0xff] %v6480
        %6513 = vst [vmem:[%s653 + $0xe0] sm:$0xff] %v6481
        %6514 = vst [vmem:[%s653 + $0xe8] sm:$0xff] %v6482
        %6515 = vst [vmem:[%s653 + $0xf0] sm:$0xff] %v6483
        %6516 = vst [vmem:[%s653 + $0xf8] sm:$0xff] %v6484
        %s6517 = sand.u32 %s367, 1
        %s6518 = scalar_lea.sflag [#allocation6], %s6517
        %s6519 = sand.u32 %s367, 1
        %s6520 = smul.addr %s6519, 256
        %s6521 = scalar_lea.vmem [#allocation5], %s6520
        // Predicated region
        $region69: #{tpu_custom_call.1} parent=63 // pred_check
          %p6522 = pneg %p377
        $region70: #{tpu_custom_call.1} parent=63 // pred_check_branch
          %6524 = sbr.rel (%p6522) target = $region72
        $region71: #{tpu_custom_call.1} parent=63 // pred_region
          %s6525 = smul.u32 32, %s31
          %s6527 = ssub.s32 4096, 4096
          %6528 = vsyncadd %s6518, %s6527
          %s6529 = smul.addr %s30, 32
          %s6530 = sadd.s32 %s6525, %s6529
          %s6531 = smul.addr %s32, 64
          %s6532 = sadd.s32 %s6530, %s6531
          %s6533 = smul.addr %s6532, 128
          %s6534 = scalar_lea.hbm %s11, %s6533
          %s6535 = sshll.u32 %s6521, 4
          %s6536 = int_to_ptr.vmem [resolvable:$true] %s6535
          %6541 = dma.vmem_to_hbm [thread:$0]  %s6536, 4096, %s6534, %s6518, 128, 128, 8
        $region72: #{tpu_custom_call.1} parent=63 // pred_fallthru
          _
      $region64: #{tpu_custom_call.1} parent=5 // pred_fallthru
        _
      %p6542 = scmp.le.s32.totalorder 2, %s20
      // Predicated region
      $region73: #{tpu_custom_call.1} parent=5 // pred_check
        %p6543 = pneg %p6542
      $region74: #{tpu_custom_call.1} parent=5 // pred_check_branch
        %6545 = sbr.rel (%p6543) target = $region76
      $region75: #{tpu_custom_call.1} parent=5 // pred_region
        %s6546 = ssub.s32 %s20, 2
        // Predicated region
        $region77: #{tpu_custom_call.1} parent=75 // pred_check
          %p6547 = pneg %p383
        $region78: #{tpu_custom_call.1} parent=75 // pred_check_branch
          %6549 = sbr.rel (%p6547) target = $region80
        $region79: #{tpu_custom_call.1} parent=75 // pred_region
          %s6550 = sand.u32 %s368, 1
          %s6551 = scalar_lea.sflag [#allocation6], %s6550
          %s6552 = sand.u32 %s368, 1
          %s6553 = smul.addr %s6552, 256
          %s6554 = scalar_lea.vmem [#allocation5], %s6553
          %6555 = dma.done %s6551, 4096
        $region80: #{tpu_custom_call.1} parent=75 // pred_fallthru
          _
      $region76: #{tpu_custom_call.1} parent=5 // pred_fallthru
        _
    $region6: #{tpu_custom_call.1} parent=1 // loop_footer
      %s24 = sadd.s32 1, %s20
    $region7: #{tpu_custom_call.1} parent=1 // loop_footer_branch
      %19 = sbr.rel target = $region3
    $region8: #{tpu_custom_call.1} parent=1 // loop_exit
      _
    %6556 = vsyncpa [#allocation6], 1
    %s6557 = scalar_lea.sflag [#allocation6], 1
    %6558 = vsyncpa %s6557, 1

</llo_original>
